<compile_context>
chip_gen: v7x
topology: tpu7x:2x2x1
jax: 0.10.0
libtpu: 0.0.40
codegen_flags: <defaults>
</compile_context>

<pallas_src>
import functools
import math

import jax
import jax.numpy as jnp
from jax.experimental import pallas as pl
from jax.experimental.pallas import tpu as pltpu

EPS = 1e-6
NEG_INF = -1e9

_PAR = pltpu.CompilerParams(dimension_semantics=("parallel",))


# --------------------------- in-kernel helpers ------------------------------

def _layer_norm(x, a, b, eps):
    """Tutorial Norm: alpha * (x - mean) / (std_unbiased + eps) + bias."""
    d = x.shape[-1]
    mean = jnp.mean(x, axis=-1, keepdims=True)
    var = jnp.sum((x - mean) ** 2, axis=-1, keepdims=True) / (d - 1)
    inv = pl.reciprocal(jnp.sqrt(var) + eps, approx=True)
    return a * (x - mean) * inv + b


def _attention_core(xq, xkv, keep, wqkv, bqkv, wo, bo, *, heads, fused_qkv):
    """All heads of attention for one batch item.

    xq: (Sq, D) f32 (already normed), xkv: (Sk, D) f32, keep: boolean mask
    broadcastable to (Sq, Sk).  Weights bf16, biases f32.  The output
    projection is decomposed per head (sum_h attn_h @ Wo[h*dk:(h+1)*dk, :]),
    so no head concat / transpose is needed.
    """
    Sq, D = xq.shape
    dk = D // heads
    scale = 1.0 / math.sqrt(dk)

    if fused_qkv:
        qkv = jnp.dot(xq.astype(jnp.bfloat16), wqkv,
                      preferred_element_type=jnp.float32) + bqkv
        q, k, v = qkv[:, :D], qkv[:, D:2 * D], qkv[:, 2 * D:]
    else:
        q = jnp.dot(xq.astype(jnp.bfloat16), wqkv[:, :D],
                    preferred_element_type=jnp.float32) + bqkv[:, :D]
        kv = jnp.dot(xkv.astype(jnp.bfloat16), wqkv[:, D:],
                     preferred_element_type=jnp.float32) + bqkv[:, D:]
        k, v = kv[:, :D], kv[:, D:]

    acc = jnp.zeros((Sq, D), jnp.float32)
    for h in range(heads):
        sl = slice(h * dk, (h + 1) * dk)
        qh = q[:, sl].astype(jnp.bfloat16)
        kh = k[:, sl].astype(jnp.bfloat16)
        vh = v[:, sl].astype(jnp.bfloat16)
        s = jax.lax.dot_general(qh, kh, (((1,), (1,)), ((), ())),
                                preferred_element_type=jnp.float32) * scale
        s = jnp.where(keep, s, NEG_INF)
        s = s - jnp.max(s, axis=-1, keepdims=True)
        p = jnp.exp(s)
        p = p * pl.reciprocal(jnp.sum(p, axis=-1, keepdims=True), approx=True)
        oh = jnp.dot(p.astype(jnp.bfloat16), vh,
                     preferred_element_type=jnp.float32)            # (Sq, dk)
        acc = acc + jnp.dot(oh.astype(jnp.bfloat16), wo[sl, :],
                            preferred_element_type=jnp.float32)     # (Sq, D)
    return acc + bo


# ----------------------------- Pallas kernels -------------------------------

def _self_attn_kernel(x_ref, pm_ref, na_ref, nb_ref,
                      wqkv_ref, bqkv_ref, wo_ref, bo_ref, o_ref,
                      *, heads, causal, eps):
    x = x_ref[0]                                     # (S, D) f32
    S = x.shape[0]
    x2 = _layer_norm(x, na_ref[...], nb_ref[...], eps)
    keep = pm_ref[0] > 0.5                           # (1, S) key-padding mask
    if causal:
        rows = jax.lax.broadcasted_iota(jnp.int32, (S, S), 0)
        cols = jax.lax.broadcasted_iota(jnp.int32, (S, S), 1)
        keep = jnp.logical_and(keep, cols <= rows)   # (S, S)
    attn = _attention_core(x2, x2, keep,
                           wqkv_ref[...], bqkv_ref[...],
                           wo_ref[...], bo_ref[...],
                           heads=heads, fused_qkv=True)
    o_ref[0] = x + attn                              # residual fused


def _cross_attn_kernel(x_ref, kv_ref, pm_ref, na_ref, nb_ref,
                       wqkv_ref, bqkv_ref, wo_ref, bo_ref, o_ref,
                       *, heads, eps):
    x = x_ref[0]                                     # (Sq, D)
    kv = kv_ref[0]                                   # (Sk, D) encoder output
    x2 = _layer_norm(x, na_ref[...], nb_ref[...], eps)
    keep = pm_ref[0] > 0.5                           # (1, Sk)
    attn = _attention_core(x2, kv, keep,
                           wqkv_ref[...], bqkv_ref[...],
                           wo_ref[...], bo_ref[...],
                           heads=heads, fused_qkv=False)
    o_ref[0] = x + attn


def _ff_kernel(x_ref, na_ref, nb_ref, w1_ref, b1_ref, w2_ref, b2_ref, o_ref,
               *, eps):
    x = x_ref[0]                                     # (S, D)
    x2 = _layer_norm(x, na_ref[...], nb_ref[...], eps)
    h = jnp.dot(x2.astype(jnp.bfloat16), w1_ref[...],
                preferred_element_type=jnp.float32) + b1_ref[...]
    h = jnp.maximum(h, 0.0)
    y = jnp.dot(h.astype(jnp.bfloat16), w2_ref[...],
                preferred_element_type=jnp.float32) + b2_ref[...]
    o_ref[0] = x + y                                 # residual fused


def _norm_kernel(x_ref, a_ref, b_ref, o_ref, *, eps):
    o_ref[0] = _layer_norm(x_ref[0], a_ref[...], b_ref[...], eps)


def _out_kernel(x_ref, a_ref, b_ref, w_ref, bv_ref, o_ref, *, eps):
    x2 = _layer_norm(x_ref[0], a_ref[...], b_ref[...], eps)
    o_ref[0] = jnp.dot(x2.astype(jnp.bfloat16), w_ref[...],
                       preferred_element_type=jnp.float32) + bv_ref[...]


# ------------------------------- wrappers ------------------------------------

def _full2d(arr):
    r, c = arr.shape
    return pl.BlockSpec((r, c), lambda b: (0, 0))


def self_attention_block(x, key_pad, norm_p, attn_p, *, heads, causal):
    B, S, D = x.shape
    return pl.pallas_call(
        functools.partial(_self_attn_kernel, heads=heads, causal=causal, eps=EPS),
        out_shape=jax.ShapeDtypeStruct((B, S, D), jnp.float32),
        grid=(B,),
        in_specs=[
            pl.BlockSpec((1, S, D), lambda b: (b, 0, 0)),
            pl.BlockSpec((1, 1, S), lambda b: (b, 0, 0)),
            _full2d(norm_p["a"]), _full2d(norm_p["b"]),
            _full2d(attn_p["wqkv"]), _full2d(attn_p["bqkv"]),
            _full2d(attn_p["wo"]), _full2d(attn_p["bo"]),
        ],
        out_specs=pl.BlockSpec((1, S, D), lambda b: (b, 0, 0)),
        compiler_params=_PAR,
    )(x, key_pad, norm_p["a"], norm_p["b"],
      attn_p["wqkv"], attn_p["bqkv"], attn_p["wo"], attn_p["bo"])


def cross_attention_block(x, e_out, key_pad, norm_p, attn_p, *, heads):
    B, Sq, D = x.shape
    Sk = e_out.shape[1]
    return pl.pallas_call(
        functools.partial(_cross_attn_kernel, heads=heads, eps=EPS),
        out_shape=jax.ShapeDtypeStruct((B, Sq, D), jnp.float32),
        grid=(B,),
        in_specs=[
            pl.BlockSpec((1, Sq, D), lambda b: (b, 0, 0)),
            pl.BlockSpec((1, Sk, D), lambda b: (b, 0, 0)),
            pl.BlockSpec((1, 1, Sk), lambda b: (b, 0, 0)),
            _full2d(norm_p["a"]), _full2d(norm_p["b"]),
            _full2d(attn_p["wqkv"]), _full2d(attn_p["bqkv"]),
            _full2d(attn_p["wo"]), _full2d(attn_p["bo"]),
        ],
        out_specs=pl.BlockSpec((1, Sq, D), lambda b: (b, 0, 0)),
        compiler_params=_PAR,
    )(x, e_out, key_pad, norm_p["a"], norm_p["b"],
      attn_p["wqkv"], attn_p["bqkv"], attn_p["wo"], attn_p["bo"])


def feed_forward_block(x, norm_p, ff_p):
    B, S, D = x.shape
    return pl.pallas_call(
        functools.partial(_ff_kernel, eps=EPS),
        out_shape=jax.ShapeDtypeStruct((B, S, D), jnp.float32),
        grid=(B,),
        in_specs=[
            pl.BlockSpec((1, S, D), lambda b: (b, 0, 0)),
            _full2d(norm_p["a"]), _full2d(norm_p["b"]),
            _full2d(ff_p["w1"]), _full2d(ff_p["b1"]),
            _full2d(ff_p["w2"]), _full2d(ff_p["b2"]),
        ],
        out_specs=pl.BlockSpec((1, S, D), lambda b: (b, 0, 0)),
        compiler_params=_PAR,
    )(x, norm_p["a"], norm_p["b"],
      ff_p["w1"], ff_p["b1"], ff_p["w2"], ff_p["b2"])


def norm_block(x, norm_p):
    B, S, D = x.shape
    return pl.pallas_call(
        functools.partial(_norm_kernel, eps=EPS),
        out_shape=jax.ShapeDtypeStruct((B, S, D), jnp.float32),
        grid=(B,),
        in_specs=[
            pl.BlockSpec((1, S, D), lambda b: (b, 0, 0)),
            _full2d(norm_p["a"]), _full2d(norm_p["b"]),
        ],
        out_specs=pl.BlockSpec((1, S, D), lambda b: (b, 0, 0)),
        compiler_params=_PAR,
    )(x, norm_p["a"], norm_p["b"])


def output_block(x, norm_p, out_p):
    B, S, D = x.shape
    Vp = out_p["w"].shape[1]                 # already padded to multiple of 128
    return pl.pallas_call(
        functools.partial(_out_kernel, eps=EPS),
        out_shape=jax.ShapeDtypeStruct((B, S, Vp), jnp.float32),
        grid=(B,),
        in_specs=[
            pl.BlockSpec((1, S, D), lambda b: (b, 0, 0)),
            _full2d(norm_p["a"]), _full2d(norm_p["b"]),
            _full2d(out_p["w"]), _full2d(out_p["b"]),
        ],
        out_specs=pl.BlockSpec((1, S, Vp), lambda b: (b, 0, 0)),
        compiler_params=_PAR,
    )(x, norm_p["a"], norm_p["b"], out_p["w"], out_p["b"])


# ------------------------------ model pieces ---------------------------------

def positional_encoding(seq_len, d_model):
    pos = jnp.arange(seq_len, dtype=jnp.float32)[:, None]
    idx = jnp.arange(d_model, dtype=jnp.float32)[None, :]
    angles = pos / jnp.power(10000.0, (2.0 * idx) / d_model)
    even = (jnp.arange(d_model)[None, :] % 2) == 0
    return jnp.where(even, jnp.sin(angles), jnp.cos(angles))


def embed_and_position(embed_table, seq):
    D = embed_table.shape[1]
    S = seq.shape[1]
    x = jnp.take(embed_table, seq, axis=0) * math.sqrt(D)
    return x + positional_encoding(S, D)[None]


def encoder(p, src_seq, src_pad, heads):
    x = embed_and_position(p["embed"], src_seq)
    for lp in p["layers"]:
        x = self_attention_block(x, src_pad, lp["norm1"], lp["attn"],
                                 heads=heads, causal=False)
        x = feed_forward_block(x, lp["norm2"], lp["ff"])
    return norm_block(x, p["norm"])


def decoder(p, trg_seq, trg_pad, e_out, src_pad, heads):
    x = embed_and_position(p["embed"], trg_seq)
    for lp in p["layers"]:
        x = self_attention_block(x, trg_pad, lp["norm1"], lp["attn1"],
                                 heads=heads, causal=True)
        x = cross_attention_block(x, e_out, src_pad, lp["norm2"], lp["attn2"],
                                  heads=heads)
        x = feed_forward_block(x, lp["norm3"], lp["ff"])
    return x                                   # final norm fused into output_block


def transformer_forward(params, src_seq, src_mask, trg_seq, trg_mask,
                        *, heads, out_vocab):
    # Tutorial masks: src_mask (B,1,S_src) key padding; trg_mask (B,S,S) =
    # padding & no-peek.  Only key-padding rows are DMA'd into the kernels;
    # the causal part is rebuilt in-kernel via iota (no quadratic f32 mask).
    src_pad = src_mask[:, :1, :].astype(jnp.float32)        # (B, 1, S_src)
    trg_pad = trg_mask[:, -1:, :].astype(jnp.float32)       # (B, 1, S_trg)
    e_output = encoder(params["enc"], src_seq, src_pad, heads)
    d_output = decoder(params["dec"], trg_seq, trg_pad, e_output, src_pad, heads)
    logits = output_block(d_output, params["dec"]["norm"], params["out"])
    return logits[..., :out_vocab]             # drop lane padding of vocab axis


# ------------------------------ init (synthetic) -----------------------------

def init_params(key, in_vocab, out_vocab, d_model, n_layers, d_ff):
    keys = iter(jax.random.split(key, 4096))

    def w(fi, fo):
        return jax.random.normal(next(keys), (fi, fo), jnp.float32) / math.sqrt(fi)

    def b(fo):
        return jax.random.normal(next(keys), (1, fo), jnp.float32) * 0.01

    def attn():
        # fused QKV weight: columns [Wq | Wk | Wv]; matmul weights kept in bf16
        return {"wqkv": jnp.concatenate([w(d_model, d_model) for _ in range(3)],
                                        axis=1).astype(jnp.bfloat16),
                "bqkv": jnp.concatenate([b(d_model) for _ in range(3)], axis=1),
                "wo": w(d_model, d_model).astype(jnp.bfloat16),
                "bo": b(d_model)}

    def norm():
        return {"a": jnp.ones((1, d_model), jnp.float32),
                "b": jnp.zeros((1, d_model), jnp.float32)}

    def ff():
        return {"w1": w(d_model, d_ff).astype(jnp.bfloat16), "b1": b(d_ff),
                "w2": w(d_ff, d_model).astype(jnp.bfloat16), "b2": b(d_model)}

    def enc_layer():
        return {"norm1": norm(), "norm2": norm(), "attn": attn(), "ff": ff()}

    def dec_layer():
        return {"norm1": norm(), "norm2": norm(), "norm3": norm(),
                "attn1": attn(), "attn2": attn(), "ff": ff()}

    # lane-dense vocab projection: pad N up to a multiple of 128
    v_pad = ((out_vocab + 127) // 128) * 128
    w_out = jnp.pad(w(d_model, out_vocab), ((0, 0), (0, v_pad - out_vocab)))
    b_out = jnp.pad(b(out_vocab), ((0, 0), (0, v_pad - out_vocab)))

    return {
        "enc": {"embed": jax.random.normal(next(keys), (in_vocab, d_model),
                                           jnp.float32) * 0.1,
                "layers": [enc_layer() for _ in range(n_layers)],
                "norm": norm()},
        "dec": {"embed": jax.random.normal(next(keys), (out_vocab, d_model),
                                           jnp.float32) * 0.1,
                "layers": [dec_layer() for _ in range(n_layers)],
                "norm": norm()},
        "out": {"w": w_out.astype(jnp.bfloat16), "b": b_out},
    }


# ---------------------------------- main -------------------------------------

if __name__ == "__main__":
    in_vocab, out_vocab = 37, 41
    d_model, n_layers, heads = 32, 2, 4
    d_ff = 64  # tutorial default is 2048; kept small for the synthetic test
    B, S_src, S_trg = 2, 8, 8

    key = jax.random.PRNGKey(0)
    pkey, skey, tkey = jax.random.split(key, 3)

    params = init_params(pkey, in_vocab, out_vocab, d_model, n_layers, d_ff)
    src_seq = jax.random.randint(skey, (B, S_src), 1, in_vocab, dtype=jnp.int32)
    trg_seq = jax.random.randint(tkey, (B, S_trg), 1, out_vocab, dtype=jnp.int32)

    pad = 0
    src_mask = (src_seq != pad)[:, None, :]                        # (B, 1, S_src)
    nopeak = jnp.tril(jnp.ones((S_trg, S_trg), dtype=jnp.bool_))
    trg_mask = (trg_seq != pad)[:, None, :] & nopeak[None]         # (B, S_trg, S_trg)

    fwd = jax.jit(functools.partial(transformer_forward,
                                    heads=heads, out_vocab=out_vocab))
    out = fwd(params, src_seq, src_mask, trg_seq, trg_mask)
    out = jax.block_until_ready(out)

    assert out.shape == (B, S_trg, out_vocab), out.shape
    assert jnp.all(jnp.isfinite(out))
    print("KERNEL_OK")
</pallas_src>

<mosaic_0001>
module attributes {stable_mosaic.version = 11 : i64} {
  func.func @_self_attn_kernel(%arg0: i32, %arg1: memref<1x8x32xf32, #tpu.memory_space<vmem>>, %arg2: memref<1x1x8xf32, #tpu.memory_space<vmem>>, %arg3: memref<1x32xf32, #tpu.memory_space<vmem>>, %arg4: memref<1x32xf32, #tpu.memory_space<vmem>>, %arg5: memref<32x96xbf16, #tpu.memory_space<vmem>>, %arg6: memref<1x96xf32, #tpu.memory_space<vmem>>, %arg7: memref<32x32xbf16, #tpu.memory_space<vmem>>, %arg8: memref<1x32xf32, #tpu.memory_space<vmem>>, %arg9: memref<1x8x32xf32, #tpu.memory_space<vmem>>) attributes {dimension_semantics = [#tpu.dimension_semantics<parallel>], iteration_bounds = array<i64: 2>, scalar_prefetch = 0 : i64, scratch_operands = 0 : i64, tpu.core_type = #tpu.core_type<tc>, window_params = [{transform_indices = @transform_0, window_bounds = array<i64: 1, 8, 32>}, {transform_indices = @transform_1, window_bounds = array<i64: 1, 1, 8>}, {pipeline_mode = #tpu.pipeline_mode<synchronous>, transform_indices = @transform_2, window_bounds = array<i64: 1, 32>}, {pipeline_mode = #tpu.pipeline_mode<synchronous>, transform_indices = @transform_3, window_bounds = array<i64: 1, 32>}, {pipeline_mode = #tpu.pipeline_mode<synchronous>, transform_indices = @transform_4, window_bounds = array<i64: 32, 96>}, {pipeline_mode = #tpu.pipeline_mode<synchronous>, transform_indices = @transform_5, window_bounds = array<i64: 1, 96>}, {pipeline_mode = #tpu.pipeline_mode<synchronous>, transform_indices = @transform_6, window_bounds = array<i64: 32, 32>}, {pipeline_mode = #tpu.pipeline_mode<synchronous>, transform_indices = @transform_7, window_bounds = array<i64: 1, 32>}, {transform_indices = @transform_8, window_bounds = array<i64: 1, 8, 32>}]} {
    %c0 = arith.constant 0 : index
    %c0_0 = arith.constant 0 : index
    %c0_1 = arith.constant 0 : index
    %0 = vector.load %arg1[%c0, %c0_0, %c0_1] : memref<1x8x32xf32, #tpu.memory_space<vmem>>, vector<1x8x32xf32>
    %1 = vector.shape_cast %0 : vector<1x8x32xf32> to vector<8x32xf32>
    %c0_2 = arith.constant 0 : index
    %c0_3 = arith.constant 0 : index
    %2 = vector.load %arg3[%c0_2, %c0_3] : memref<1x32xf32, #tpu.memory_space<vmem>>, vector<1x32xf32>
    %c0_4 = arith.constant 0 : index
    %c0_5 = arith.constant 0 : index
    %3 = vector.load %arg4[%c0_4, %c0_5] : memref<1x32xf32, #tpu.memory_space<vmem>>, vector<1x32xf32>
    %cst = arith.constant dense<0.000000e+00> : vector<8xf32>
    %4 = vector.multi_reduction <add>, %1, %cst [1] : vector<8x32xf32> to vector<8xf32>
    %5 = vector.shape_cast %4 : vector<8xf32> to vector<8x1xf32>
    %cst_6 = arith.constant 3.200000e+01 : f32
    %6 = vector.broadcast %cst_6 : f32 to vector<8x1xf32>
    %7 = arith.divf %5, %6 : vector<8x1xf32>
    %8 = vector.broadcast %7 : vector<8x1xf32> to vector<8x32xf32>
    %9 = arith.subf %1, %8 : vector<8x32xf32>
    %10 = arith.mulf %9, %9 : vector<8x32xf32>
    %cst_7 = arith.constant dense<0.000000e+00> : vector<8xf32>
    %11 = vector.multi_reduction <add>, %10, %cst_7 [1] : vector<8x32xf32> to vector<8xf32>
    %12 = vector.shape_cast %11 : vector<8xf32> to vector<8x1xf32>
    %cst_8 = arith.constant 3.100000e+01 : f32
    %13 = vector.broadcast %cst_8 : f32 to vector<8x1xf32>
    %14 = arith.divf %12, %13 : vector<8x1xf32>
    %15 = math.sqrt %14 : vector<8x1xf32>
    %cst_9 = arith.constant 9.99999997E-7 : f32
    %16 = vector.broadcast %cst_9 : f32 to vector<8x1xf32>
    %17 = arith.addf %15, %16 : vector<8x1xf32>
    %18 = tpu.reciprocal %17 {approx = true} : vector<8x1xf32> -> vector<8x1xf32>
    %19 = vector.broadcast %7 : vector<8x1xf32> to vector<8x32xf32>
    %20 = arith.subf %1, %19 : vector<8x32xf32>
    %21 = vector.broadcast %2 : vector<1x32xf32> to vector<8x32xf32>
    %22 = arith.mulf %21, %20 : vector<8x32xf32>
    %23 = vector.broadcast %18 : vector<8x1xf32> to vector<8x32xf32>
    %24 = arith.mulf %22, %23 : vector<8x32xf32>
    %25 = vector.broadcast %3 : vector<1x32xf32> to vector<8x32xf32>
    %26 = arith.addf %24, %25 : vector<8x32xf32>
    %c0_10 = arith.constant 0 : index
    %c0_11 = arith.constant 0 : index
    %c0_12 = arith.constant 0 : index
    %27 = vector.load %arg2[%c0_10, %c0_11, %c0_12] : memref<1x1x8xf32, #tpu.memory_space<vmem>>, vector<1x1x8xf32>
    %28 = vector.shape_cast %27 : vector<1x1x8xf32> to vector<1x8xf32>
    %cst_13 = arith.constant 5.000000e-01 : f32
    %29 = vector.broadcast %cst_13 : f32 to vector<1x8xf32>
    %30 = arith.cmpf ogt, %28, %29 : vector<1x8xf32>
    %c0_14 = arith.constant 0 : index
    %c0_15 = arith.constant 0 : index
    %31 = vector.load %arg5[%c0_14, %c0_15] : memref<32x96xbf16, #tpu.memory_space<vmem>>, vector<32x96xbf16>
    %c0_16 = arith.constant 0 : index
    %c0_17 = arith.constant 0 : index
    %32 = vector.load %arg6[%c0_16, %c0_17] : memref<1x96xf32, #tpu.memory_space<vmem>>, vector<1x96xf32>
    %c0_18 = arith.constant 0 : index
    %c0_19 = arith.constant 0 : index
    %33 = vector.load %arg7[%c0_18, %c0_19] : memref<32x32xbf16, #tpu.memory_space<vmem>>, vector<32x32xbf16>
    %c0_20 = arith.constant 0 : index
    %c0_21 = arith.constant 0 : index
    %34 = vector.load %arg8[%c0_20, %c0_21] : memref<1x32xf32, #tpu.memory_space<vmem>>, vector<1x32xf32>
    %35 = arith.truncf %26 : vector<8x32xf32> to vector<8x32xbf16>
    %cst_22 = arith.constant dense<0.000000e+00> : vector<8x96xf32>
    %36 = tpu.matmul %35, %31, %cst_22 {dimension_numbers = #tpu.dot_dimension_numbers<[1], [0], [0], [1], [0, 0, 1, 1], [], []>} : vector<8x32xbf16>, vector<32x96xbf16>, vector<8x96xf32> -> vector<8x96xf32>
    %37 = vector.broadcast %32 : vector<1x96xf32> to vector<8x96xf32>
    %38 = arith.addf %36, %37 : vector<8x96xf32>
    %39 = vector.extract_strided_slice %38 {offsets = [0, 0], sizes = [8, 32], strides = [1, 1]} : vector<8x96xf32> to vector<8x32xf32>
    %40 = vector.extract_strided_slice %38 {offsets = [0, 32], sizes = [8, 32], strides = [1, 1]} : vector<8x96xf32> to vector<8x32xf32>
    %41 = vector.extract_strided_slice %38 {offsets = [0, 64], sizes = [8, 32], strides = [1, 1]} : vector<8x96xf32> to vector<8x32xf32>
    %cst_23 = arith.constant 0.000000e+00 : f32
    %42 = vector.broadcast %cst_23 : f32 to vector<8x32xf32>
    %43 = vector.extract_strided_slice %39 {offsets = [0, 0], sizes = [8, 8], strides = [1, 1]} : vector<8x32xf32> to vector<8x8xf32>
    %44 = arith.truncf %43 : vector<8x8xf32> to vector<8x8xbf16>
    %45 = vector.extract_strided_slice %40 {offsets = [0, 0], sizes = [8, 8], strides = [1, 1]} : vector<8x32xf32> to vector<8x8xf32>
    %46 = arith.truncf %45 : vector<8x8xf32> to vector<8x8xbf16>
    %47 = vector.extract_strided_slice %41 {offsets = [0, 0], sizes = [8, 8], strides = [1, 1]} : vector<8x32xf32> to vector<8x8xf32>
    %48 = arith.truncf %47 : vector<8x8xf32> to vector<8x8xbf16>
    %cst_24 = arith.constant dense<0.000000e+00> : vector<8x8xf32>
    %49 = tpu.matmul %44, %46, %cst_24 {dimension_numbers = #tpu.dot_dimension_numbers<[1], [1], [0], [0], [0, 0, 1, 0], [], []>} : vector<8x8xbf16>, vector<8x8xbf16>, vector<8x8xf32> -> vector<8x8xf32>
    %cst_25 = arith.constant 0.353553385 : f32
    %50 = vector.broadcast %cst_25 : f32 to vector<8x8xf32>
    %51 = arith.mulf %49, %50 : vector<8x8xf32>
    %cst_26 = arith.constant -1.000000e+09 : f32
    %52 = vector.shape_cast %30 : vector<1x8xi1> to vector<1x8xi1>
    %53 = vector.broadcast %52 : vector<1x8xi1> to vector<8x8xi1>
    %54 = vector.broadcast %cst_26 : f32 to vector<8x8xf32>
    %55 = arith.select %53, %51, %54 : vector<8x8xi1>, vector<8x8xf32>
    %cst_27 = arith.constant dense<0xFF800000> : vector<8xf32>
    %56 = vector.multi_reduction <maximumf>, %55, %cst_27 [1] : vector<8x8xf32> to vector<8xf32>
    %57 = vector.shape_cast %56 : vector<8xf32> to vector<8x1xf32>
    %58 = vector.broadcast %57 : vector<8x1xf32> to vector<8x8xf32>
    %59 = arith.subf %55, %58 : vector<8x8xf32>
    %60 = math.exp %59 : vector<8x8xf32>
    %cst_28 = arith.constant dense<0.000000e+00> : vector<8xf32>
    %61 = vector.multi_reduction <add>, %60, %cst_28 [1] : vector<8x8xf32> to vector<8xf32>
    %62 = vector.shape_cast %61 : vector<8xf32> to vector<8x1xf32>
    %63 = tpu.reciprocal %62 {approx = true} : vector<8x1xf32> -> vector<8x1xf32>
    %64 = vector.broadcast %63 : vector<8x1xf32> to vector<8x8xf32>
    %65 = arith.mulf %60, %64 : vector<8x8xf32>
    %66 = arith.truncf %65 : vector<8x8xf32> to vector<8x8xbf16>
    %cst_29 = arith.constant dense<0.000000e+00> : vector<8x8xf32>
    %67 = tpu.matmul %66, %48, %cst_29 {dimension_numbers = #tpu.dot_dimension_numbers<[1], [0], [0], [1], [0, 0, 1, 1], [], []>} : vector<8x8xbf16>, vector<8x8xbf16>, vector<8x8xf32> -> vector<8x8xf32>
    %68 = arith.truncf %67 : vector<8x8xf32> to vector<8x8xbf16>
    %69 = vector.extract_strided_slice %33 {offsets = [0, 0], sizes = [8, 32], strides = [1, 1]} : vector<32x32xbf16> to vector<8x32xbf16>
    %cst_30 = arith.constant dense<0.000000e+00> : vector<8x32xf32>
    %70 = tpu.matmul %68, %69, %cst_30 {dimension_numbers = #tpu.dot_dimension_numbers<[1], [0], [0], [1], [0, 0, 1, 1], [], []>} : vector<8x8xbf16>, vector<8x32xbf16>, vector<8x32xf32> -> vector<8x32xf32>
    %71 = arith.addf %42, %70 : vector<8x32xf32>
    %72 = vector.extract_strided_slice %39 {offsets = [0, 8], sizes = [8, 8], strides = [1, 1]} : vector<8x32xf32> to vector<8x8xf32>
    %73 = arith.truncf %72 : vector<8x8xf32> to vector<8x8xbf16>
    %74 = vector.extract_strided_slice %40 {offsets = [0, 8], sizes = [8, 8], strides = [1, 1]} : vector<8x32xf32> to vector<8x8xf32>
    %75 = arith.truncf %74 : vector<8x8xf32> to vector<8x8xbf16>
    %76 = vector.extract_strided_slice %41 {offsets = [0, 8], sizes = [8, 8], strides = [1, 1]} : vector<8x32xf32> to vector<8x8xf32>
    %77 = arith.truncf %76 : vector<8x8xf32> to vector<8x8xbf16>
    %cst_31 = arith.constant dense<0.000000e+00> : vector<8x8xf32>
    %78 = tpu.matmul %73, %75, %cst_31 {dimension_numbers = #tpu.dot_dimension_numbers<[1], [1], [0], [0], [0, 0, 1, 0], [], []>} : vector<8x8xbf16>, vector<8x8xbf16>, vector<8x8xf32> -> vector<8x8xf32>
    %cst_32 = arith.constant 0.353553385 : f32
    %79 = vector.broadcast %cst_32 : f32 to vector<8x8xf32>
    %80 = arith.mulf %78, %79 : vector<8x8xf32>
    %cst_33 = arith.constant -1.000000e+09 : f32
    %81 = vector.shape_cast %30 : vector<1x8xi1> to vector<1x8xi1>
    %82 = vector.broadcast %81 : vector<1x8xi1> to vector<8x8xi1>
    %83 = vector.broadcast %cst_33 : f32 to vector<8x8xf32>
    %84 = arith.select %82, %80, %83 : vector<8x8xi1>, vector<8x8xf32>
    %cst_34 = arith.constant dense<0xFF800000> : vector<8xf32>
    %85 = vector.multi_reduction <maximumf>, %84, %cst_34 [1] : vector<8x8xf32> to vector<8xf32>
    %86 = vector.shape_cast %85 : vector<8xf32> to vector<8x1xf32>
    %87 = vector.broadcast %86 : vector<8x1xf32> to vector<8x8xf32>
    %88 = arith.subf %84, %87 : vector<8x8xf32>
    %89 = math.exp %88 : vector<8x8xf32>
    %cst_35 = arith.constant dense<0.000000e+00> : vector<8xf32>
    %90 = vector.multi_reduction <add>, %89, %cst_35 [1] : vector<8x8xf32> to vector<8xf32>
    %91 = vector.shape_cast %90 : vector<8xf32> to vector<8x1xf32>
    %92 = tpu.reciprocal %91 {approx = true} : vector<8x1xf32> -> vector<8x1xf32>
    %93 = vector.broadcast %92 : vector<8x1xf32> to vector<8x8xf32>
    %94 = arith.mulf %89, %93 : vector<8x8xf32>
    %95 = arith.truncf %94 : vector<8x8xf32> to vector<8x8xbf16>
    %cst_36 = arith.constant dense<0.000000e+00> : vector<8x8xf32>
    %96 = tpu.matmul %95, %77, %cst_36 {dimension_numbers = #tpu.dot_dimension_numbers<[1], [0], [0], [1], [0, 0, 1, 1], [], []>} : vector<8x8xbf16>, vector<8x8xbf16>, vector<8x8xf32> -> vector<8x8xf32>
    %97 = arith.truncf %96 : vector<8x8xf32> to vector<8x8xbf16>
    %98 = vector.extract_strided_slice %33 {offsets = [8, 0], sizes = [8, 32], strides = [1, 1]} : vector<32x32xbf16> to vector<8x32xbf16>
    %cst_37 = arith.constant dense<0.000000e+00> : vector<8x32xf32>
    %99 = tpu.matmul %97, %98, %cst_37 {dimension_numbers = #tpu.dot_dimension_numbers<[1], [0], [0], [1], [0, 0, 1, 1], [], []>} : vector<8x8xbf16>, vector<8x32xbf16>, vector<8x32xf32> -> vector<8x32xf32>
    %100 = arith.addf %71, %99 : vector<8x32xf32>
    %101 = vector.extract_strided_slice %39 {offsets = [0, 16], sizes = [8, 8], strides = [1, 1]} : vector<8x32xf32> to vector<8x8xf32>
    %102 = arith.truncf %101 : vector<8x8xf32> to vector<8x8xbf16>
    %103 = vector.extract_strided_slice %40 {offsets = [0, 16], sizes = [8, 8], strides = [1, 1]} : vector<8x32xf32> to vector<8x8xf32>
    %104 = arith.truncf %103 : vector<8x8xf32> to vector<8x8xbf16>
    %105 = vector.extract_strided_slice %41 {offsets = [0, 16], sizes = [8, 8], strides = [1, 1]} : vector<8x32xf32> to vector<8x8xf32>
    %106 = arith.truncf %105 : vector<8x8xf32> to vector<8x8xbf16>
    %cst_38 = arith.constant dense<0.000000e+00> : vector<8x8xf32>
    %107 = tpu.matmul %102, %104, %cst_38 {dimension_numbers = #tpu.dot_dimension_numbers<[1], [1], [0], [0], [0, 0, 1, 0], [], []>} : vector<8x8xbf16>, vector<8x8xbf16>, vector<8x8xf32> -> vector<8x8xf32>
    %cst_39 = arith.constant 0.353553385 : f32
    %108 = vector.broadcast %cst_39 : f32 to vector<8x8xf32>
    %109 = arith.mulf %107, %108 : vector<8x8xf32>
    %cst_40 = arith.constant -1.000000e+09 : f32
    %110 = vector.shape_cast %30 : vector<1x8xi1> to vector<1x8xi1>
    %111 = vector.broadcast %110 : vector<1x8xi1> to vector<8x8xi1>
    %112 = vector.broadcast %cst_40 : f32 to vector<8x8xf32>
    %113 = arith.select %111, %109, %112 : vector<8x8xi1>, vector<8x8xf32>
    %cst_41 = arith.constant dense<0xFF800000> : vector<8xf32>
    %114 = vector.multi_reduction <maximumf>, %113, %cst_41 [1] : vector<8x8xf32> to vector<8xf32>
    %115 = vector.shape_cast %114 : vector<8xf32> to vector<8x1xf32>
    %116 = vector.broadcast %115 : vector<8x1xf32> to vector<8x8xf32>
    %117 = arith.subf %113, %116 : vector<8x8xf32>
    %118 = math.exp %117 : vector<8x8xf32>
    %cst_42 = arith.constant dense<0.000000e+00> : vector<8xf32>
    %119 = vector.multi_reduction <add>, %118, %cst_42 [1] : vector<8x8xf32> to vector<8xf32>
    %120 = vector.shape_cast %119 : vector<8xf32> to vector<8x1xf32>
    %121 = tpu.reciprocal %120 {approx = true} : vector<8x1xf32> -> vector<8x1xf32>
    %122 = vector.broadcast %121 : vector<8x1xf32> to vector<8x8xf32>
    %123 = arith.mulf %118, %122 : vector<8x8xf32>
    %124 = arith.truncf %123 : vector<8x8xf32> to vector<8x8xbf16>
    %cst_43 = arith.constant dense<0.000000e+00> : vector<8x8xf32>
    %125 = tpu.matmul %124, %106, %cst_43 {dimension_numbers = #tpu.dot_dimension_numbers<[1], [0], [0], [1], [0, 0, 1, 1], [], []>} : vector<8x8xbf16>, vector<8x8xbf16>, vector<8x8xf32> -> vector<8x8xf32>
    %126 = arith.truncf %125 : vector<8x8xf32> to vector<8x8xbf16>
    %127 = vector.extract_strided_slice %33 {offsets = [16, 0], sizes = [8, 32], strides = [1, 1]} : vector<32x32xbf16> to vector<8x32xbf16>
    %cst_44 = arith.constant dense<0.000000e+00> : vector<8x32xf32>
    %128 = tpu.matmul %126, %127, %cst_44 {dimension_numbers = #tpu.dot_dimension_numbers<[1], [0], [0], [1], [0, 0, 1, 1], [], []>} : vector<8x8xbf16>, vector<8x32xbf16>, vector<8x32xf32> -> vector<8x32xf32>
    %129 = arith.addf %100, %128 : vector<8x32xf32>
    %130 = vector.extract_strided_slice %39 {offsets = [0, 24], sizes = [8, 8], strides = [1, 1]} : vector<8x32xf32> to vector<8x8xf32>
    %131 = arith.truncf %130 : vector<8x8xf32> to vector<8x8xbf16>
    %132 = vector.extract_strided_slice %40 {offsets = [0, 24], sizes = [8, 8], strides = [1, 1]} : vector<8x32xf32> to vector<8x8xf32>
    %133 = arith.truncf %132 : vector<8x8xf32> to vector<8x8xbf16>
    %134 = vector.extract_strided_slice %41 {offsets = [0, 24], sizes = [8, 8], strides = [1, 1]} : vector<8x32xf32> to vector<8x8xf32>
    %135 = arith.truncf %134 : vector<8x8xf32> to vector<8x8xbf16>
    %cst_45 = arith.constant dense<0.000000e+00> : vector<8x8xf32>
    %136 = tpu.matmul %131, %133, %cst_45 {dimension_numbers = #tpu.dot_dimension_numbers<[1], [1], [0], [0], [0, 0, 1, 0], [], []>} : vector<8x8xbf16>, vector<8x8xbf16>, vector<8x8xf32> -> vector<8x8xf32>
    %cst_46 = arith.constant 0.353553385 : f32
    %137 = vector.broadcast %cst_46 : f32 to vector<8x8xf32>
    %138 = arith.mulf %136, %137 : vector<8x8xf32>
    %cst_47 = arith.constant -1.000000e+09 : f32
    %139 = vector.shape_cast %30 : vector<1x8xi1> to vector<1x8xi1>
    %140 = vector.broadcast %139 : vector<1x8xi1> to vector<8x8xi1>
    %141 = vector.broadcast %cst_47 : f32 to vector<8x8xf32>
    %142 = arith.select %140, %138, %141 : vector<8x8xi1>, vector<8x8xf32>
    %cst_48 = arith.constant dense<0xFF800000> : vector<8xf32>
    %143 = vector.multi_reduction <maximumf>, %142, %cst_48 [1] : vector<8x8xf32> to vector<8xf32>
    %144 = vector.shape_cast %143 : vector<8xf32> to vector<8x1xf32>
    %145 = vector.broadcast %144 : vector<8x1xf32> to vector<8x8xf32>
    %146 = arith.subf %142, %145 : vector<8x8xf32>
    %147 = math.exp %146 : vector<8x8xf32>
    %cst_49 = arith.constant dense<0.000000e+00> : vector<8xf32>
    %148 = vector.multi_reduction <add>, %147, %cst_49 [1] : vector<8x8xf32> to vector<8xf32>
    %149 = vector.shape_cast %148 : vector<8xf32> to vector<8x1xf32>
    %150 = tpu.reciprocal %149 {approx = true} : vector<8x1xf32> -> vector<8x1xf32>
    %151 = vector.broadcast %150 : vector<8x1xf32> to vector<8x8xf32>
    %152 = arith.mulf %147, %151 : vector<8x8xf32>
    %153 = arith.truncf %152 : vector<8x8xf32> to vector<8x8xbf16>
    %cst_50 = arith.constant dense<0.000000e+00> : vector<8x8xf32>
    %154 = tpu.matmul %153, %135, %cst_50 {dimension_numbers = #tpu.dot_dimension_numbers<[1], [0], [0], [1], [0, 0, 1, 1], [], []>} : vector<8x8xbf16>, vector<8x8xbf16>, vector<8x8xf32> -> vector<8x8xf32>
    %155 = arith.truncf %154 : vector<8x8xf32> to vector<8x8xbf16>
    %156 = vector.extract_strided_slice %33 {offsets = [24, 0], sizes = [8, 32], strides = [1, 1]} : vector<32x32xbf16> to vector<8x32xbf16>
    %cst_51 = arith.constant dense<0.000000e+00> : vector<8x32xf32>
    %157 = tpu.matmul %155, %156, %cst_51 {dimension_numbers = #tpu.dot_dimension_numbers<[1], [0], [0], [1], [0, 0, 1, 1], [], []>} : vector<8x8xbf16>, vector<8x32xbf16>, vector<8x32xf32> -> vector<8x32xf32>
    %158 = arith.addf %129, %157 : vector<8x32xf32>
    %159 = vector.broadcast %34 : vector<1x32xf32> to vector<8x32xf32>
    %160 = arith.addf %158, %159 : vector<8x32xf32>
    %161 = arith.addf %1, %160 : vector<8x32xf32>
    %c0_52 = arith.constant 0 : index
    %c0_53 = arith.constant 0 : index
    %c0_54 = arith.constant 0 : index
    %162 = vector.load %arg9[%c0_52, %c0_53, %c0_54] : memref<1x8x32xf32, #tpu.memory_space<vmem>>, vector<1x8x32xf32>
    %163 = vector.shape_cast %162 : vector<1x8x32xf32> to vector<8x32xf32>
    %164 = vector.shape_cast %161 : vector<8x32xf32> to vector<1x8x32xf32>
    tpu.vector_store %arg9[%c0_52, %c0_53, %c0_54], %164 {strides = array<i32>} : memref<1x8x32xf32, #tpu.memory_space<vmem>>, vector<1x8x32xf32>,
    return
  }
  func.func @transform_0(%arg0: i32) -> (i32, i32, i32) {
    %c0_i32 = arith.constant 0 : i32
    %c0_i32_0 = arith.constant 0 : i32
    %c0_i32_1 = arith.constant 0 : i32
    return %arg0, %c0_i32, %c0_i32_0 : i32, i32, i32
  }
  func.func @transform_1(%arg0: i32) -> (i32, i32, i32) {
    %c0_i32 = arith.constant 0 : i32
    %c0_i32_0 = arith.constant 0 : i32
    %c0_i32_1 = arith.constant 0 : i32
    return %arg0, %c0_i32, %c0_i32_0 : i32, i32, i32
  }
  func.func @transform_2(%arg0: i32) -> (i32, i32) {
    %c0_i32 = arith.constant 0 : i32
    %c0_i32_0 = arith.constant 0 : i32
    %c0_i32_1 = arith.constant 0 : i32
    return %c0_i32, %c0_i32_0 : i32, i32
  }
  func.func @transform_3(%arg0: i32) -> (i32, i32) {
    %c0_i32 = arith.constant 0 : i32
    %c0_i32_0 = arith.constant 0 : i32
    %c0_i32_1 = arith.constant 0 : i32
    return %c0_i32, %c0_i32_0 : i32, i32
  }
  func.func @transform_4(%arg0: i32) -> (i32, i32) {
    %c0_i32 = arith.constant 0 : i32
    %c0_i32_0 = arith.constant 0 : i32
    %c0_i32_1 = arith.constant 0 : i32
    return %c0_i32, %c0_i32_0 : i32, i32
  }
  func.func @transform_5(%arg0: i32) -> (i32, i32) {
    %c0_i32 = arith.constant 0 : i32
    %c0_i32_0 = arith.constant 0 : i32
    %c0_i32_1 = arith.constant 0 : i32
    return %c0_i32, %c0_i32_0 : i32, i32
  }
  func.func @transform_6(%arg0: i32) -> (i32, i32) {
    %c0_i32 = arith.constant 0 : i32
    %c0_i32_0 = arith.constant 0 : i32
    %c0_i32_1 = arith.constant 0 : i32
    return %c0_i32, %c0_i32_0 : i32, i32
  }
  func.func @transform_7(%arg0: i32) -> (i32, i32) {
    %c0_i32 = arith.constant 0 : i32
    %c0_i32_0 = arith.constant 0 : i32
    %c0_i32_1 = arith.constant 0 : i32
    return %c0_i32, %c0_i32_0 : i32, i32
  }
  func.func @transform_8(%arg0: i32) -> (i32, i32, i32) {
    %c0_i32 = arith.constant 0 : i32
    %c0_i32_0 = arith.constant 0 : i32
    %c0_i32_1 = arith.constant 0 : i32
    return %arg0, %c0_i32, %c0_i32_0 : i32, i32, i32
  }
}

module attributes {stable_mosaic.version = 11 : i64} {
  func.func @_norm_kernel(%arg0: i32, %arg1: memref<1x8x32xf32, #tpu.memory_space<vmem>>, %arg2: memref<1x32xf32, #tpu.memory_space<vmem>>, %arg3: memref<1x32xf32, #tpu.memory_space<vmem>>, %arg4: memref<1x8x32xf32, #tpu.memory_space<vmem>>) attributes {dimension_semantics = [#tpu.dimension_semantics<parallel>], iteration_bounds = array<i64: 2>, scalar_prefetch = 0 : i64, scratch_operands = 0 : i64, tpu.core_type = #tpu.core_type<tc>, window_params = [{transform_indices = @transform_0, window_bounds = array<i64: 1, 8, 32>}, {pipeline_mode = #tpu.pipeline_mode<synchronous>, transform_indices = @transform_1, window_bounds = array<i64: 1, 32>}, {pipeline_mode = #tpu.pipeline_mode<synchronous>, transform_indices = @transform_2, window_bounds = array<i64: 1, 32>}, {transform_indices = @transform_3, window_bounds = array<i64: 1, 8, 32>}]} {
    %c0 = arith.constant 0 : index
    %c0_0 = arith.constant 0 : index
    %c0_1 = arith.constant 0 : index
    %0 = vector.load %arg1[%c0, %c0_0, %c0_1] : memref<1x8x32xf32, #tpu.memory_space<vmem>>, vector<1x8x32xf32>
    %1 = vector.shape_cast %0 : vector<1x8x32xf32> to vector<8x32xf32>
    %c0_2 = arith.constant 0 : index
    %c0_3 = arith.constant 0 : index
    %2 = vector.load %arg2[%c0_2, %c0_3] : memref<1x32xf32, #tpu.memory_space<vmem>>, vector<1x32xf32>
    %c0_4 = arith.constant 0 : index
    %c0_5 = arith.constant 0 : index
    %3 = vector.load %arg3[%c0_4, %c0_5] : memref<1x32xf32, #tpu.memory_space<vmem>>, vector<1x32xf32>
    %cst = arith.constant dense<0.000000e+00> : vector<8xf32>
    %4 = vector.multi_reduction <add>, %1, %cst [1] : vector<8x32xf32> to vector<8xf32>
    %5 = vector.shape_cast %4 : vector<8xf32> to vector<8x1xf32>
    %cst_6 = arith.constant 3.200000e+01 : f32
    %6 = vector.broadcast %cst_6 : f32 to vector<8x1xf32>
    %7 = arith.divf %5, %6 : vector<8x1xf32>
    %8 = vector.broadcast %7 : vector<8x1xf32> to vector<8x32xf32>
    %9 = arith.subf %1, %8 : vector<8x32xf32>
    %10 = arith.mulf %9, %9 : vector<8x32xf32>
    %cst_7 = arith.constant dense<0.000000e+00> : vector<8xf32>
    %11 = vector.multi_reduction <add>, %10, %cst_7 [1] : vector<8x32xf32> to vector<8xf32>
    %12 = vector.shape_cast %11 : vector<8xf32> to vector<8x1xf32>
    %cst_8 = arith.constant 3.100000e+01 : f32
    %13 = vector.broadcast %cst_8 : f32 to vector<8x1xf32>
    %14 = arith.divf %12, %13 : vector<8x1xf32>
    %15 = math.sqrt %14 : vector<8x1xf32>
    %cst_9 = arith.constant 9.99999997E-7 : f32
    %16 = vector.broadcast %cst_9 : f32 to vector<8x1xf32>
    %17 = arith.addf %15, %16 : vector<8x1xf32>
    %18 = tpu.reciprocal %17 {approx = true} : vector<8x1xf32> -> vector<8x1xf32>
    %19 = vector.broadcast %7 : vector<8x1xf32> to vector<8x32xf32>
    %20 = arith.subf %1, %19 : vector<8x32xf32>
    %21 = vector.broadcast %2 : vector<1x32xf32> to vector<8x32xf32>
    %22 = arith.mulf %21, %20 : vector<8x32xf32>
    %23 = vector.broadcast %18 : vector<8x1xf32> to vector<8x32xf32>
    %24 = arith.mulf %22, %23 : vector<8x32xf32>
    %25 = vector.broadcast %3 : vector<1x32xf32> to vector<8x32xf32>
    %26 = arith.addf %24, %25 : vector<8x32xf32>
    %c0_10 = arith.constant 0 : index
    %c0_11 = arith.constant 0 : index
    %c0_12 = arith.constant 0 : index
    %27 = vector.load %arg4[%c0_10, %c0_11, %c0_12] : memref<1x8x32xf32, #tpu.memory_space<vmem>>, vector<1x8x32xf32>
    %28 = vector.shape_cast %27 : vector<1x8x32xf32> to vector<8x32xf32>
    %29 = vector.shape_cast %26 : vector<8x32xf32> to vector<1x8x32xf32>
    tpu.vector_store %arg4[%c0_10, %c0_11, %c0_12], %29 {strides = array<i32>} : memref<1x8x32xf32, #tpu.memory_space<vmem>>, vector<1x8x32xf32>,
    return
  }
  func.func @transform_0(%arg0: i32) -> (i32, i32, i32) {
    %c0_i32 = arith.constant 0 : i32
    %c0_i32_0 = arith.constant 0 : i32
    %c0_i32_1 = arith.constant 0 : i32
    return %arg0, %c0_i32, %c0_i32_0 : i32, i32, i32
  }
  func.func @transform_1(%arg0: i32) -> (i32, i32) {
    %c0_i32 = arith.constant 0 : i32
    %c0_i32_0 = arith.constant 0 : i32
    %c0_i32_1 = arith.constant 0 : i32
    return %c0_i32, %c0_i32_0 : i32, i32
  }
  func.func @transform_2(%arg0: i32) -> (i32, i32) {
    %c0_i32 = arith.constant 0 : i32
    %c0_i32_0 = arith.constant 0 : i32
    %c0_i32_1 = arith.constant 0 : i32
    return %c0_i32, %c0_i32_0 : i32, i32
  }
  func.func @transform_3(%arg0: i32) -> (i32, i32, i32) {
    %c0_i32 = arith.constant 0 : i32
    %c0_i32_0 = arith.constant 0 : i32
    %c0_i32_1 = arith.constant 0 : i32
    return %arg0, %c0_i32, %c0_i32_0 : i32, i32, i32
  }
}

module attributes {stable_mosaic.version = 11 : i64} {
  func.func @_ff_kernel(%arg0: i32, %arg1: memref<1x8x32xf32, #tpu.memory_space<vmem>>, %arg2: memref<1x32xf32, #tpu.memory_space<vmem>>, %arg3: memref<1x32xf32, #tpu.memory_space<vmem>>, %arg4: memref<32x64xbf16, #tpu.memory_space<vmem>>, %arg5: memref<1x64xf32, #tpu.memory_space<vmem>>, %arg6: memref<64x32xbf16, #tpu.memory_space<vmem>>, %arg7: memref<1x32xf32, #tpu.memory_space<vmem>>, %arg8: memref<1x8x32xf32, #tpu.memory_space<vmem>>) attributes {dimension_semantics = [#tpu.dimension_semantics<parallel>], iteration_bounds = array<i64: 2>, scalar_prefetch = 0 : i64, scratch_operands = 0 : i64, tpu.core_type = #tpu.core_type<tc>, window_params = [{transform_indices = @transform_0, window_bounds = array<i64: 1, 8, 32>}, {pipeline_mode = #tpu.pipeline_mode<synchronous>, transform_indices = @transform_1, window_bounds = array<i64: 1, 32>}, {pipeline_mode = #tpu.pipeline_mode<synchronous>, transform_indices = @transform_2, window_bounds = array<i64: 1, 32>}, {pipeline_mode = #tpu.pipeline_mode<synchronous>, transform_indices = @transform_3, window_bounds = array<i64: 32, 64>}, {pipeline_mode = #tpu.pipeline_mode<synchronous>, transform_indices = @transform_4, window_bounds = array<i64: 1, 64>}, {pipeline_mode = #tpu.pipeline_mode<synchronous>, transform_indices = @transform_5, window_bounds = array<i64: 64, 32>}, {pipeline_mode = #tpu.pipeline_mode<synchronous>, transform_indices = @transform_6, window_bounds = array<i64: 1, 32>}, {transform_indices = @transform_7, window_bounds = array<i64: 1, 8, 32>}]} {
    %c0 = arith.constant 0 : index
    %c0_0 = arith.constant 0 : index
    %c0_1 = arith.constant 0 : index
    %0 = vector.load %arg1[%c0, %c0_0, %c0_1] : memref<1x8x32xf32, #tpu.memory_space<vmem>>, vector<1x8x32xf32>
    %1 = vector.shape_cast %0 : vector<1x8x32xf32> to vector<8x32xf32>
    %c0_2 = arith.constant 0 : index
    %c0_3 = arith.constant 0 : index
    %2 = vector.load %arg2[%c0_2, %c0_3] : memref<1x32xf32, #tpu.memory_space<vmem>>, vector<1x32xf32>
    %c0_4 = arith.constant 0 : index
    %c0_5 = arith.constant 0 : index
    %3 = vector.load %arg3[%c0_4, %c0_5] : memref<1x32xf32, #tpu.memory_space<vmem>>, vector<1x32xf32>
    %cst = arith.constant dense<0.000000e+00> : vector<8xf32>
    %4 = vector.multi_reduction <add>, %1, %cst [1] : vector<8x32xf32> to vector<8xf32>
    %5 = vector.shape_cast %4 : vector<8xf32> to vector<8x1xf32>
    %cst_6 = arith.constant 3.200000e+01 : f32
    %6 = vector.broadcast %cst_6 : f32 to vector<8x1xf32>
    %7 = arith.divf %5, %6 : vector<8x1xf32>
    %8 = vector.broadcast %7 : vector<8x1xf32> to vector<8x32xf32>
    %9 = arith.subf %1, %8 : vector<8x32xf32>
    %10 = arith.mulf %9, %9 : vector<8x32xf32>
    %cst_7 = arith.constant dense<0.000000e+00> : vector<8xf32>
    %11 = vector.multi_reduction <add>, %10, %cst_7 [1] : vector<8x32xf32> to vector<8xf32>
    %12 = vector.shape_cast %11 : vector<8xf32> to vector<8x1xf32>
    %cst_8 = arith.constant 3.100000e+01 : f32
    %13 = vector.broadcast %cst_8 : f32 to vector<8x1xf32>
    %14 = arith.divf %12, %13 : vector<8x1xf32>
    %15 = math.sqrt %14 : vector<8x1xf32>
    %cst_9 = arith.constant 9.99999997E-7 : f32
    %16 = vector.broadcast %cst_9 : f32 to vector<8x1xf32>
    %17 = arith.addf %15, %16 : vector<8x1xf32>
    %18 = tpu.reciprocal %17 {approx = true} : vector<8x1xf32> -> vector<8x1xf32>
    %19 = vector.broadcast %7 : vector<8x1xf32> to vector<8x32xf32>
    %20 = arith.subf %1, %19 : vector<8x32xf32>
    %21 = vector.broadcast %2 : vector<1x32xf32> to vector<8x32xf32>
    %22 = arith.mulf %21, %20 : vector<8x32xf32>
    %23 = vector.broadcast %18 : vector<8x1xf32> to vector<8x32xf32>
    %24 = arith.mulf %22, %23 : vector<8x32xf32>
    %25 = vector.broadcast %3 : vector<1x32xf32> to vector<8x32xf32>
    %26 = arith.addf %24, %25 : vector<8x32xf32>
    %27 = arith.truncf %26 : vector<8x32xf32> to vector<8x32xbf16>
    %c0_10 = arith.constant 0 : index
    %c0_11 = arith.constant 0 : index
    %28 = vector.load %arg4[%c0_10, %c0_11] : memref<32x64xbf16, #tpu.memory_space<vmem>>, vector<32x64xbf16>
    %cst_12 = arith.constant dense<0.000000e+00> : vector<8x64xf32>
    %29 = tpu.matmul %27, %28, %cst_12 {dimension_numbers = #tpu.dot_dimension_numbers<[1], [0], [0], [1], [0, 0, 1, 1], [], []>} : vector<8x32xbf16>, vector<32x64xbf16>, vector<8x64xf32> -> vector<8x64xf32>
    %c0_13 = arith.constant 0 : index
    %c0_14 = arith.constant 0 : index
    %30 = vector.load %arg5[%c0_13, %c0_14] : memref<1x64xf32, #tpu.memory_space<vmem>>, vector<1x64xf32>
    %31 = vector.broadcast %30 : vector<1x64xf32> to vector<8x64xf32>
    %32 = arith.addf %29, %31 : vector<8x64xf32>
    %cst_15 = arith.constant 0.000000e+00 : f32
    %33 = vector.broadcast %cst_15 : f32 to vector<8x64xf32>
    %34 = arith.maximumf %32, %33 : vector<8x64xf32>
    %35 = arith.truncf %34 : vector<8x64xf32> to vector<8x64xbf16>
    %c0_16 = arith.constant 0 : index
    %c0_17 = arith.constant 0 : index
    %36 = vector.load %arg6[%c0_16, %c0_17] : memref<64x32xbf16, #tpu.memory_space<vmem>>, vector<64x32xbf16>
    %cst_18 = arith.constant dense<0.000000e+00> : vector<8x32xf32>
    %37 = tpu.matmul %35, %36, %cst_18 {dimension_numbers = #tpu.dot_dimension_numbers<[1], [0], [0], [1], [0, 0, 1, 1], [], []>} : vector<8x64xbf16>, vector<64x32xbf16>, vector<8x32xf32> -> vector<8x32xf32>
    %c0_19 = arith.constant 0 : index
    %c0_20 = arith.constant 0 : index
    %38 = vector.load %arg7[%c0_19, %c0_20] : memref<1x32xf32, #tpu.memory_space<vmem>>, vector<1x32xf32>
    %39 = vector.broadcast %38 : vector<1x32xf32> to vector<8x32xf32>
    %40 = arith.addf %37, %39 : vector<8x32xf32>
    %41 = arith.addf %1, %40 : vector<8x32xf32>
    %c0_21 = arith.constant 0 : index
    %c0_22 = arith.constant 0 : index
    %c0_23 = arith.constant 0 : index
    %42 = vector.load %arg8[%c0_21, %c0_22, %c0_23] : memref<1x8x32xf32, #tpu.memory_space<vmem>>, vector<1x8x32xf32>
    %43 = vector.shape_cast %42 : vector<1x8x32xf32> to vector<8x32xf32>
    %44 = vector.shape_cast %41 : vector<8x32xf32> to vector<1x8x32xf32>
    tpu.vector_store %arg8[%c0_21, %c0_22, %c0_23], %44 {strides = array<i32>} : memref<1x8x32xf32, #tpu.memory_space<vmem>>, vector<1x8x32xf32>,
    return
  }
  func.func @transform_0(%arg0: i32) -> (i32, i32, i32) {
    %c0_i32 = arith.constant 0 : i32
    %c0_i32_0 = arith.constant 0 : i32
    %c0_i32_1 = arith.constant 0 : i32
    return %arg0, %c0_i32, %c0_i32_0 : i32, i32, i32
  }
  func.func @transform_1(%arg0: i32) -> (i32, i32) {
    %c0_i32 = arith.constant 0 : i32
    %c0_i32_0 = arith.constant 0 : i32
    %c0_i32_1 = arith.constant 0 : i32
    return %c0_i32, %c0_i32_0 : i32, i32
  }
  func.func @transform_2(%arg0: i32) -> (i32, i32) {
    %c0_i32 = arith.constant 0 : i32
    %c0_i32_0 = arith.constant 0 : i32
    %c0_i32_1 = arith.constant 0 : i32
    return %c0_i32, %c0_i32_0 : i32, i32
  }
  func.func @transform_3(%arg0: i32) -> (i32, i32) {
    %c0_i32 = arith.constant 0 : i32
    %c0_i32_0 = arith.constant 0 : i32
    %c0_i32_1 = arith.constant 0 : i32
    return %c0_i32, %c0_i32_0 : i32, i32
  }
  func.func @transform_4(%arg0: i32) -> (i32, i32) {
    %c0_i32 = arith.constant 0 : i32
    %c0_i32_0 = arith.constant 0 : i32
    %c0_i32_1 = arith.constant 0 : i32
    return %c0_i32, %c0_i32_0 : i32, i32
  }
  func.func @transform_5(%arg0: i32) -> (i32, i32) {
    %c0_i32 = arith.constant 0 : i32
    %c0_i32_0 = arith.constant 0 : i32
    %c0_i32_1 = arith.constant 0 : i32
    return %c0_i32, %c0_i32_0 : i32, i32
  }
  func.func @transform_6(%arg0: i32) -> (i32, i32) {
    %c0_i32 = arith.constant 0 : i32
    %c0_i32_0 = arith.constant 0 : i32
    %c0_i32_1 = arith.constant 0 : i32
    return %c0_i32, %c0_i32_0 : i32, i32
  }
  func.func @transform_7(%arg0: i32) -> (i32, i32, i32) {
    %c0_i32 = arith.constant 0 : i32
    %c0_i32_0 = arith.constant 0 : i32
    %c0_i32_1 = arith.constant 0 : i32
    return %arg0, %c0_i32, %c0_i32_0 : i32, i32, i32
  }
}

module attributes {stable_mosaic.version = 11 : i64} {
  func.func @_self_attn_kernel(%arg0: i32, %arg1: memref<1x8x32xf32, #tpu.memory_space<vmem>>, %arg2: memref<1x1x8xf32, #tpu.memory_space<vmem>>, %arg3: memref<1x32xf32, #tpu.memory_space<vmem>>, %arg4: memref<1x32xf32, #tpu.memory_space<vmem>>, %arg5: memref<32x96xbf16, #tpu.memory_space<vmem>>, %arg6: memref<1x96xf32, #tpu.memory_space<vmem>>, %arg7: memref<32x32xbf16, #tpu.memory_space<vmem>>, %arg8: memref<1x32xf32, #tpu.memory_space<vmem>>, %arg9: memref<1x8x32xf32, #tpu.memory_space<vmem>>) attributes {dimension_semantics = [#tpu.dimension_semantics<parallel>], iteration_bounds = array<i64: 2>, scalar_prefetch = 0 : i64, scratch_operands = 0 : i64, tpu.core_type = #tpu.core_type<tc>, window_params = [{transform_indices = @transform_0, window_bounds = array<i64: 1, 8, 32>}, {transform_indices = @transform_1, window_bounds = array<i64: 1, 1, 8>}, {pipeline_mode = #tpu.pipeline_mode<synchronous>, transform_indices = @transform_2, window_bounds = array<i64: 1, 32>}, {pipeline_mode = #tpu.pipeline_mode<synchronous>, transform_indices = @transform_3, window_bounds = array<i64: 1, 32>}, {pipeline_mode = #tpu.pipeline_mode<synchronous>, transform_indices = @transform_4, window_bounds = array<i64: 32, 96>}, {pipeline_mode = #tpu.pipeline_mode<synchronous>, transform_indices = @transform_5, window_bounds = array<i64: 1, 96>}, {pipeline_mode = #tpu.pipeline_mode<synchronous>, transform_indices = @transform_6, window_bounds = array<i64: 32, 32>}, {pipeline_mode = #tpu.pipeline_mode<synchronous>, transform_indices = @transform_7, window_bounds = array<i64: 1, 32>}, {transform_indices = @transform_8, window_bounds = array<i64: 1, 8, 32>}]} {
    %c0 = arith.constant 0 : index
    %c0_0 = arith.constant 0 : index
    %c0_1 = arith.constant 0 : index
    %0 = vector.load %arg1[%c0, %c0_0, %c0_1] : memref<1x8x32xf32, #tpu.memory_space<vmem>>, vector<1x8x32xf32>
    %1 = vector.shape_cast %0 : vector<1x8x32xf32> to vector<8x32xf32>
    %c0_2 = arith.constant 0 : index
    %c0_3 = arith.constant 0 : index
    %2 = vector.load %arg3[%c0_2, %c0_3] : memref<1x32xf32, #tpu.memory_space<vmem>>, vector<1x32xf32>
    %c0_4 = arith.constant 0 : index
    %c0_5 = arith.constant 0 : index
    %3 = vector.load %arg4[%c0_4, %c0_5] : memref<1x32xf32, #tpu.memory_space<vmem>>, vector<1x32xf32>
    %cst = arith.constant dense<0.000000e+00> : vector<8xf32>
    %4 = vector.multi_reduction <add>, %1, %cst [1] : vector<8x32xf32> to vector<8xf32>
    %5 = vector.shape_cast %4 : vector<8xf32> to vector<8x1xf32>
    %cst_6 = arith.constant 3.200000e+01 : f32
    %6 = vector.broadcast %cst_6 : f32 to vector<8x1xf32>
    %7 = arith.divf %5, %6 : vector<8x1xf32>
    %8 = vector.broadcast %7 : vector<8x1xf32> to vector<8x32xf32>
    %9 = arith.subf %1, %8 : vector<8x32xf32>
    %10 = arith.mulf %9, %9 : vector<8x32xf32>
    %cst_7 = arith.constant dense<0.000000e+00> : vector<8xf32>
    %11 = vector.multi_reduction <add>, %10, %cst_7 [1] : vector<8x32xf32> to vector<8xf32>
    %12 = vector.shape_cast %11 : vector<8xf32> to vector<8x1xf32>
    %cst_8 = arith.constant 3.100000e+01 : f32
    %13 = vector.broadcast %cst_8 : f32 to vector<8x1xf32>
    %14 = arith.divf %12, %13 : vector<8x1xf32>
    %15 = math.sqrt %14 : vector<8x1xf32>
    %cst_9 = arith.constant 9.99999997E-7 : f32
    %16 = vector.broadcast %cst_9 : f32 to vector<8x1xf32>
    %17 = arith.addf %15, %16 : vector<8x1xf32>
    %18 = tpu.reciprocal %17 {approx = true} : vector<8x1xf32> -> vector<8x1xf32>
    %19 = vector.broadcast %7 : vector<8x1xf32> to vector<8x32xf32>
    %20 = arith.subf %1, %19 : vector<8x32xf32>
    %21 = vector.broadcast %2 : vector<1x32xf32> to vector<8x32xf32>
    %22 = arith.mulf %21, %20 : vector<8x32xf32>
    %23 = vector.broadcast %18 : vector<8x1xf32> to vector<8x32xf32>
    %24 = arith.mulf %22, %23 : vector<8x32xf32>
    %25 = vector.broadcast %3 : vector<1x32xf32> to vector<8x32xf32>
    %26 = arith.addf %24, %25 : vector<8x32xf32>
    %c0_10 = arith.constant 0 : index
    %c0_11 = arith.constant 0 : index
    %c0_12 = arith.constant 0 : index
    %27 = vector.load %arg2[%c0_10, %c0_11, %c0_12] : memref<1x1x8xf32, #tpu.memory_space<vmem>>, vector<1x1x8xf32>
    %28 = vector.shape_cast %27 : vector<1x1x8xf32> to vector<1x8xf32>
    %cst_13 = arith.constant 5.000000e-01 : f32
    %29 = vector.broadcast %cst_13 : f32 to vector<1x8xf32>
    %30 = arith.cmpf ogt, %28, %29 : vector<1x8xf32>
    %31 = tpu.iota {dimensions = array<i32: 0>} : vector<8x8xi32>
    %32 = tpu.iota {dimensions = array<i32: 1>} : vector<8x8xi32>
    %33 = arith.cmpi sle, %32, %31 : vector<8x8xi32>
    %34 = vector.broadcast %30 : vector<1x8xi1> to vector<8x8xi1>
    %35 = arith.andi %34, %33 : vector<8x8xi1>
    %c0_14 = arith.constant 0 : index
    %c0_15 = arith.constant 0 : index
    %36 = vector.load %arg5[%c0_14, %c0_15] : memref<32x96xbf16, #tpu.memory_space<vmem>>, vector<32x96xbf16>
    %c0_16 = arith.constant 0 : index
    %c0_17 = arith.constant 0 : index
    %37 = vector.load %arg6[%c0_16, %c0_17] : memref<1x96xf32, #tpu.memory_space<vmem>>, vector<1x96xf32>
    %c0_18 = arith.constant 0 : index
    %c0_19 = arith.constant 0 : index
    %38 = vector.load %arg7[%c0_18, %c0_19] : memref<32x32xbf16, #tpu.memory_space<vmem>>, vector<32x32xbf16>
    %c0_20 = arith.constant 0 : index
    %c0_21 = arith.constant 0 : index
    %39 = vector.load %arg8[%c0_20, %c0_21] : memref<1x32xf32, #tpu.memory_space<vmem>>, vector<1x32xf32>
    %40 = arith.truncf %26 : vector<8x32xf32> to vector<8x32xbf16>
    %cst_22 = arith.constant dense<0.000000e+00> : vector<8x96xf32>
    %41 = tpu.matmul %40, %36, %cst_22 {dimension_numbers = #tpu.dot_dimension_numbers<[1], [0], [0], [1], [0, 0, 1, 1], [], []>} : vector<8x32xbf16>, vector<32x96xbf16>, vector<8x96xf32> -> vector<8x96xf32>
    %42 = vector.broadcast %37 : vector<1x96xf32> to vector<8x96xf32>
    %43 = arith.addf %41, %42 : vector<8x96xf32>
    %44 = vector.extract_strided_slice %43 {offsets = [0, 0], sizes = [8, 32], strides = [1, 1]} : vector<8x96xf32> to vector<8x32xf32>
    %45 = vector.extract_strided_slice %43 {offsets = [0, 32], sizes = [8, 32], strides = [1, 1]} : vector<8x96xf32> to vector<8x32xf32>
    %46 = vector.extract_strided_slice %43 {offsets = [0, 64], sizes = [8, 32], strides = [1, 1]} : vector<8x96xf32> to vector<8x32xf32>
    %cst_23 = arith.constant 0.000000e+00 : f32
    %47 = vector.broadcast %cst_23 : f32 to vector<8x32xf32>
    %48 = vector.extract_strided_slice %44 {offsets = [0, 0], sizes = [8, 8], strides = [1, 1]} : vector<8x32xf32> to vector<8x8xf32>
    %49 = arith.truncf %48 : vector<8x8xf32> to vector<8x8xbf16>
    %50 = vector.extract_strided_slice %45 {offsets = [0, 0], sizes = [8, 8], strides = [1, 1]} : vector<8x32xf32> to vector<8x8xf32>
    %51 = arith.truncf %50 : vector<8x8xf32> to vector<8x8xbf16>
    %52 = vector.extract_strided_slice %46 {offsets = [0, 0], sizes = [8, 8], strides = [1, 1]} : vector<8x32xf32> to vector<8x8xf32>
    %53 = arith.truncf %52 : vector<8x8xf32> to vector<8x8xbf16>
    %cst_24 = arith.constant dense<0.000000e+00> : vector<8x8xf32>
    %54 = tpu.matmul %49, %51, %cst_24 {dimension_numbers = #tpu.dot_dimension_numbers<[1], [1], [0], [0], [0, 0, 1, 0], [], []>} : vector<8x8xbf16>, vector<8x8xbf16>, vector<8x8xf32> -> vector<8x8xf32>
    %cst_25 = arith.constant 0.353553385 : f32
    %55 = vector.broadcast %cst_25 : f32 to vector<8x8xf32>
    %56 = arith.mulf %54, %55 : vector<8x8xf32>
    %cst_26 = arith.constant -1.000000e+09 : f32
    %57 = vector.broadcast %cst_26 : f32 to vector<8x8xf32>
    %58 = arith.select %35, %56, %57 : vector<8x8xi1>, vector<8x8xf32>
    %cst_27 = arith.constant dense<0xFF800000> : vector<8xf32>
    %59 = vector.multi_reduction <maximumf>, %58, %cst_27 [1] : vector<8x8xf32> to vector<8xf32>
    %60 = vector.shape_cast %59 : vector<8xf32> to vector<8x1xf32>
    %61 = vector.broadcast %60 : vector<8x1xf32> to vector<8x8xf32>
    %62 = arith.subf %58, %61 : vector<8x8xf32>
    %63 = math.exp %62 : vector<8x8xf32>
    %cst_28 = arith.constant dense<0.000000e+00> : vector<8xf32>
    %64 = vector.multi_reduction <add>, %63, %cst_28 [1] : vector<8x8xf32> to vector<8xf32>
    %65 = vector.shape_cast %64 : vector<8xf32> to vector<8x1xf32>
    %66 = tpu.reciprocal %65 {approx = true} : vector<8x1xf32> -> vector<8x1xf32>
    %67 = vector.broadcast %66 : vector<8x1xf32> to vector<8x8xf32>
    %68 = arith.mulf %63, %67 : vector<8x8xf32>
    %69 = arith.truncf %68 : vector<8x8xf32> to vector<8x8xbf16>
    %cst_29 = arith.constant dense<0.000000e+00> : vector<8x8xf32>
    %70 = tpu.matmul %69, %53, %cst_29 {dimension_numbers = #tpu.dot_dimension_numbers<[1], [0], [0], [1], [0, 0, 1, 1], [], []>} : vector<8x8xbf16>, vector<8x8xbf16>, vector<8x8xf32> -> vector<8x8xf32>
    %71 = arith.truncf %70 : vector<8x8xf32> to vector<8x8xbf16>
    %72 = vector.extract_strided_slice %38 {offsets = [0, 0], sizes = [8, 32], strides = [1, 1]} : vector<32x32xbf16> to vector<8x32xbf16>
    %cst_30 = arith.constant dense<0.000000e+00> : vector<8x32xf32>
    %73 = tpu.matmul %71, %72, %cst_30 {dimension_numbers = #tpu.dot_dimension_numbers<[1], [0], [0], [1], [0, 0, 1, 1], [], []>} : vector<8x8xbf16>, vector<8x32xbf16>, vector<8x32xf32> -> vector<8x32xf32>
    %74 = arith.addf %47, %73 : vector<8x32xf32>
    %75 = vector.extract_strided_slice %44 {offsets = [0, 8], sizes = [8, 8], strides = [1, 1]} : vector<8x32xf32> to vector<8x8xf32>
    %76 = arith.truncf %75 : vector<8x8xf32> to vector<8x8xbf16>
    %77 = vector.extract_strided_slice %45 {offsets = [0, 8], sizes = [8, 8], strides = [1, 1]} : vector<8x32xf32> to vector<8x8xf32>
    %78 = arith.truncf %77 : vector<8x8xf32> to vector<8x8xbf16>
    %79 = vector.extract_strided_slice %46 {offsets = [0, 8], sizes = [8, 8], strides = [1, 1]} : vector<8x32xf32> to vector<8x8xf32>
    %80 = arith.truncf %79 : vector<8x8xf32> to vector<8x8xbf16>
    %cst_31 = arith.constant dense<0.000000e+00> : vector<8x8xf32>
    %81 = tpu.matmul %76, %78, %cst_31 {dimension_numbers = #tpu.dot_dimension_numbers<[1], [1], [0], [0], [0, 0, 1, 0], [], []>} : vector<8x8xbf16>, vector<8x8xbf16>, vector<8x8xf32> -> vector<8x8xf32>
    %cst_32 = arith.constant 0.353553385 : f32
    %82 = vector.broadcast %cst_32 : f32 to vector<8x8xf32>
    %83 = arith.mulf %81, %82 : vector<8x8xf32>
    %cst_33 = arith.constant -1.000000e+09 : f32
    %84 = vector.broadcast %cst_33 : f32 to vector<8x8xf32>
    %85 = arith.select %35, %83, %84 : vector<8x8xi1>, vector<8x8xf32>
    %cst_34 = arith.constant dense<0xFF800000> : vector<8xf32>
    %86 = vector.multi_reduction <maximumf>, %85, %cst_34 [1] : vector<8x8xf32> to vector<8xf32>
    %87 = vector.shape_cast %86 : vector<8xf32> to vector<8x1xf32>
    %88 = vector.broadcast %87 : vector<8x1xf32> to vector<8x8xf32>
    %89 = arith.subf %85, %88 : vector<8x8xf32>
    %90 = math.exp %89 : vector<8x8xf32>
    %cst_35 = arith.constant dense<0.000000e+00> : vector<8xf32>
    %91 = vector.multi_reduction <add>, %90, %cst_35 [1] : vector<8x8xf32> to vector<8xf32>
    %92 = vector.shape_cast %91 : vector<8xf32> to vector<8x1xf32>
    %93 = tpu.reciprocal %92 {approx = true} : vector<8x1xf32> -> vector<8x1xf32>
    %94 = vector.broadcast %93 : vector<8x1xf32> to vector<8x8xf32>
    %95 = arith.mulf %90, %94 : vector<8x8xf32>
    %96 = arith.truncf %95 : vector<8x8xf32> to vector<8x8xbf16>
    %cst_36 = arith.constant dense<0.000000e+00> : vector<8x8xf32>
    %97 = tpu.matmul %96, %80, %cst_36 {dimension_numbers = #tpu.dot_dimension_numbers<[1], [0], [0], [1], [0, 0, 1, 1], [], []>} : vector<8x8xbf16>, vector<8x8xbf16>, vector<8x8xf32> -> vector<8x8xf32>
    %98 = arith.truncf %97 : vector<8x8xf32> to vector<8x8xbf16>
    %99 = vector.extract_strided_slice %38 {offsets = [8, 0], sizes = [8, 32], strides = [1, 1]} : vector<32x32xbf16> to vector<8x32xbf16>
    %cst_37 = arith.constant dense<0.000000e+00> : vector<8x32xf32>
    %100 = tpu.matmul %98, %99, %cst_37 {dimension_numbers = #tpu.dot_dimension_numbers<[1], [0], [0], [1], [0, 0, 1, 1], [], []>} : vector<8x8xbf16>, vector<8x32xbf16>, vector<8x32xf32> -> vector<8x32xf32>
    %101 = arith.addf %74, %100 : vector<8x32xf32>
    %102 = vector.extract_strided_slice %44 {offsets = [0, 16], sizes = [8, 8], strides = [1, 1]} : vector<8x32xf32> to vector<8x8xf32>
    %103 = arith.truncf %102 : vector<8x8xf32> to vector<8x8xbf16>
    %104 = vector.extract_strided_slice %45 {offsets = [0, 16], sizes = [8, 8], strides = [1, 1]} : vector<8x32xf32> to vector<8x8xf32>
    %105 = arith.truncf %104 : vector<8x8xf32> to vector<8x8xbf16>
    %106 = vector.extract_strided_slice %46 {offsets = [0, 16], sizes = [8, 8], strides = [1, 1]} : vector<8x32xf32> to vector<8x8xf32>
    %107 = arith.truncf %106 : vector<8x8xf32> to vector<8x8xbf16>
    %cst_38 = arith.constant dense<0.000000e+00> : vector<8x8xf32>
    %108 = tpu.matmul %103, %105, %cst_38 {dimension_numbers = #tpu.dot_dimension_numbers<[1], [1], [0], [0], [0, 0, 1, 0], [], []>} : vector<8x8xbf16>, vector<8x8xbf16>, vector<8x8xf32> -> vector<8x8xf32>
    %cst_39 = arith.constant 0.353553385 : f32
    %109 = vector.broadcast %cst_39 : f32 to vector<8x8xf32>
    %110 = arith.mulf %108, %109 : vector<8x8xf32>
    %cst_40 = arith.constant -1.000000e+09 : f32
    %111 = vector.broadcast %cst_40 : f32 to vector<8x8xf32>
    %112 = arith.select %35, %110, %111 : vector<8x8xi1>, vector<8x8xf32>
    %cst_41 = arith.constant dense<0xFF800000> : vector<8xf32>
    %113 = vector.multi_reduction <maximumf>, %112, %cst_41 [1] : vector<8x8xf32> to vector<8xf32>
    %114 = vector.shape_cast %113 : vector<8xf32> to vector<8x1xf32>
    %115 = vector.broadcast %114 : vector<8x1xf32> to vector<8x8xf32>
    %116 = arith.subf %112, %115 : vector<8x8xf32>
    %117 = math.exp %116 : vector<8x8xf32>
    %cst_42 = arith.constant dense<0.000000e+00> : vector<8xf32>
    %118 = vector.multi_reduction <add>, %117, %cst_42 [1] : vector<8x8xf32> to vector<8xf32>
    %119 = vector.shape_cast %118 : vector<8xf32> to vector<8x1xf32>
    %120 = tpu.reciprocal %119 {approx = true} : vector<8x1xf32> -> vector<8x1xf32>
    %121 = vector.broadcast %120 : vector<8x1xf32> to vector<8x8xf32>
    %122 = arith.mulf %117, %121 : vector<8x8xf32>
    %123 = arith.truncf %122 : vector<8x8xf32> to vector<8x8xbf16>
    %cst_43 = arith.constant dense<0.000000e+00> : vector<8x8xf32>
    %124 = tpu.matmul %123, %107, %cst_43 {dimension_numbers = #tpu.dot_dimension_numbers<[1], [0], [0], [1], [0, 0, 1, 1], [], []>} : vector<8x8xbf16>, vector<8x8xbf16>, vector<8x8xf32> -> vector<8x8xf32>
    %125 = arith.truncf %124 : vector<8x8xf32> to vector<8x8xbf16>
    %126 = vector.extract_strided_slice %38 {offsets = [16, 0], sizes = [8, 32], strides = [1, 1]} : vector<32x32xbf16> to vector<8x32xbf16>
    %cst_44 = arith.constant dense<0.000000e+00> : vector<8x32xf32>
    %127 = tpu.matmul %125, %126, %cst_44 {dimension_numbers = #tpu.dot_dimension_numbers<[1], [0], [0], [1], [0, 0, 1, 1], [], []>} : vector<8x8xbf16>, vector<8x32xbf16>, vector<8x32xf32> -> vector<8x32xf32>
    %128 = arith.addf %101, %127 : vector<8x32xf32>
    %129 = vector.extract_strided_slice %44 {offsets = [0, 24], sizes = [8, 8], strides = [1, 1]} : vector<8x32xf32> to vector<8x8xf32>
    %130 = arith.truncf %129 : vector<8x8xf32> to vector<8x8xbf16>
    %131 = vector.extract_strided_slice %45 {offsets = [0, 24], sizes = [8, 8], strides = [1, 1]} : vector<8x32xf32> to vector<8x8xf32>
    %132 = arith.truncf %131 : vector<8x8xf32> to vector<8x8xbf16>
    %133 = vector.extract_strided_slice %46 {offsets = [0, 24], sizes = [8, 8], strides = [1, 1]} : vector<8x32xf32> to vector<8x8xf32>
    %134 = arith.truncf %133 : vector<8x8xf32> to vector<8x8xbf16>
    %cst_45 = arith.constant dense<0.000000e+00> : vector<8x8xf32>
    %135 = tpu.matmul %130, %132, %cst_45 {dimension_numbers = #tpu.dot_dimension_numbers<[1], [1], [0], [0], [0, 0, 1, 0], [], []>} : vector<8x8xbf16>, vector<8x8xbf16>, vector<8x8xf32> -> vector<8x8xf32>
    %cst_46 = arith.constant 0.353553385 : f32
    %136 = vector.broadcast %cst_46 : f32 to vector<8x8xf32>
    %137 = arith.mulf %135, %136 : vector<8x8xf32>
    %cst_47 = arith.constant -1.000000e+09 : f32
    %138 = vector.broadcast %cst_47 : f32 to vector<8x8xf32>
    %139 = arith.select %35, %137, %138 : vector<8x8xi1>, vector<8x8xf32>
    %cst_48 = arith.constant dense<0xFF800000> : vector<8xf32>
    %140 = vector.multi_reduction <maximumf>, %139, %cst_48 [1] : vector<8x8xf32> to vector<8xf32>
    %141 = vector.shape_cast %140 : vector<8xf32> to vector<8x1xf32>
    %142 = vector.broadcast %141 : vector<8x1xf32> to vector<8x8xf32>
    %143 = arith.subf %139, %142 : vector<8x8xf32>
    %144 = math.exp %143 : vector<8x8xf32>
    %cst_49 = arith.constant dense<0.000000e+00> : vector<8xf32>
    %145 = vector.multi_reduction <add>, %144, %cst_49 [1] : vector<8x8xf32> to vector<8xf32>
    %146 = vector.shape_cast %145 : vector<8xf32> to vector<8x1xf32>
    %147 = tpu.reciprocal %146 {approx = true} : vector<8x1xf32> -> vector<8x1xf32>
    %148 = vector.broadcast %147 : vector<8x1xf32> to vector<8x8xf32>
    %149 = arith.mulf %144, %148 : vector<8x8xf32>
    %150 = arith.truncf %149 : vector<8x8xf32> to vector<8x8xbf16>
    %cst_50 = arith.constant dense<0.000000e+00> : vector<8x8xf32>
    %151 = tpu.matmul %150, %134, %cst_50 {dimension_numbers = #tpu.dot_dimension_numbers<[1], [0], [0], [1], [0, 0, 1, 1], [], []>} : vector<8x8xbf16>, vector<8x8xbf16>, vector<8x8xf32> -> vector<8x8xf32>
    %152 = arith.truncf %151 : vector<8x8xf32> to vector<8x8xbf16>
    %153 = vector.extract_strided_slice %38 {offsets = [24, 0], sizes = [8, 32], strides = [1, 1]} : vector<32x32xbf16> to vector<8x32xbf16>
    %cst_51 = arith.constant dense<0.000000e+00> : vector<8x32xf32>
    %154 = tpu.matmul %152, %153, %cst_51 {dimension_numbers = #tpu.dot_dimension_numbers<[1], [0], [0], [1], [0, 0, 1, 1], [], []>} : vector<8x8xbf16>, vector<8x32xbf16>, vector<8x32xf32> -> vector<8x32xf32>
    %155 = arith.addf %128, %154 : vector<8x32xf32>
    %156 = vector.broadcast %39 : vector<1x32xf32> to vector<8x32xf32>
    %157 = arith.addf %155, %156 : vector<8x32xf32>
    %158 = arith.addf %1, %157 : vector<8x32xf32>
    %c0_52 = arith.constant 0 : index
    %c0_53 = arith.constant 0 : index
    %c0_54 = arith.constant 0 : index
    %159 = vector.load %arg9[%c0_52, %c0_53, %c0_54] : memref<1x8x32xf32, #tpu.memory_space<vmem>>, vector<1x8x32xf32>
    %160 = vector.shape_cast %159 : vector<1x8x32xf32> to vector<8x32xf32>
    %161 = vector.shape_cast %158 : vector<8x32xf32> to vector<1x8x32xf32>
    tpu.vector_store %arg9[%c0_52, %c0_53, %c0_54], %161 {strides = array<i32>} : memref<1x8x32xf32, #tpu.memory_space<vmem>>, vector<1x8x32xf32>,
    return
  }
  func.func @transform_0(%arg0: i32) -> (i32, i32, i32) {
    %c0_i32 = arith.constant 0 : i32
    %c0_i32_0 = arith.constant 0 : i32
    %c0_i32_1 = arith.constant 0 : i32
    return %arg0, %c0_i32, %c0_i32_0 : i32, i32, i32
  }
  func.func @transform_1(%arg0: i32) -> (i32, i32, i32) {
    %c0_i32 = arith.constant 0 : i32
    %c0_i32_0 = arith.constant 0 : i32
    %c0_i32_1 = arith.constant 0 : i32
    return %arg0, %c0_i32, %c0_i32_0 : i32, i32, i32
  }
  func.func @transform_2(%arg0: i32) -> (i32, i32) {
    %c0_i32 = arith.constant 0 : i32
    %c0_i32_0 = arith.constant 0 : i32
    %c0_i32_1 = arith.constant 0 : i32
    return %c0_i32, %c0_i32_0 : i32, i32
  }
  func.func @transform_3(%arg0: i32) -> (i32, i32) {
    %c0_i32 = arith.constant 0 : i32
    %c0_i32_0 = arith.constant 0 : i32
    %c0_i32_1 = arith.constant 0 : i32
    return %c0_i32, %c0_i32_0 : i32, i32
  }
  func.func @transform_4(%arg0: i32) -> (i32, i32) {
    %c0_i32 = arith.constant 0 : i32
    %c0_i32_0 = arith.constant 0 : i32
    %c0_i32_1 = arith.constant 0 : i32
    return %c0_i32, %c0_i32_0 : i32, i32
  }
  func.func @transform_5(%arg0: i32) -> (i32, i32) {
    %c0_i32 = arith.constant 0 : i32
    %c0_i32_0 = arith.constant 0 : i32
    %c0_i32_1 = arith.constant 0 : i32
    return %c0_i32, %c0_i32_0 : i32, i32
  }
  func.func @transform_6(%arg0: i32) -> (i32, i32) {
    %c0_i32 = arith.constant 0 : i32
    %c0_i32_0 = arith.constant 0 : i32
    %c0_i32_1 = arith.constant 0 : i32
    return %c0_i32, %c0_i32_0 : i32, i32
  }
  func.func @transform_7(%arg0: i32) -> (i32, i32) {
    %c0_i32 = arith.constant 0 : i32
    %c0_i32_0 = arith.constant 0 : i32
    %c0_i32_1 = arith.constant 0 : i32
    return %c0_i32, %c0_i32_0 : i32, i32
  }
  func.func @transform_8(%arg0: i32) -> (i32, i32, i32) {
    %c0_i32 = arith.constant 0 : i32
    %c0_i32_0 = arith.constant 0 : i32
    %c0_i32_1 = arith.constant 0 : i32
    return %arg0, %c0_i32, %c0_i32_0 : i32, i32, i32
  }
}

module attributes {stable_mosaic.version = 11 : i64} {
  func.func @_cross_attn_kernel(%arg0: i32, %arg1: memref<1x8x32xf32, #tpu.memory_space<vmem>>, %arg2: memref<1x8x32xf32, #tpu.memory_space<vmem>>, %arg3: memref<1x1x8xf32, #tpu.memory_space<vmem>>, %arg4: memref<1x32xf32, #tpu.memory_space<vmem>>, %arg5: memref<1x32xf32, #tpu.memory_space<vmem>>, %arg6: memref<32x96xbf16, #tpu.memory_space<vmem>>, %arg7: memref<1x96xf32, #tpu.memory_space<vmem>>, %arg8: memref<32x32xbf16, #tpu.memory_space<vmem>>, %arg9: memref<1x32xf32, #tpu.memory_space<vmem>>, %arg10: memref<1x8x32xf32, #tpu.memory_space<vmem>>) attributes {dimension_semantics = [#tpu.dimension_semantics<parallel>], iteration_bounds = array<i64: 2>, scalar_prefetch = 0 : i64, scratch_operands = 0 : i64, tpu.core_type = #tpu.core_type<tc>, window_params = [{transform_indices = @transform_0, window_bounds = array<i64: 1, 8, 32>}, {transform_indices = @transform_1, window_bounds = array<i64: 1, 8, 32>}, {transform_indices = @transform_2, window_bounds = array<i64: 1, 1, 8>}, {pipeline_mode = #tpu.pipeline_mode<synchronous>, transform_indices = @transform_3, window_bounds = array<i64: 1, 32>}, {pipeline_mode = #tpu.pipeline_mode<synchronous>, transform_indices = @transform_4, window_bounds = array<i64: 1, 32>}, {pipeline_mode = #tpu.pipeline_mode<synchronous>, transform_indices = @transform_5, window_bounds = array<i64: 32, 96>}, {pipeline_mode = #tpu.pipeline_mode<synchronous>, transform_indices = @transform_6, window_bounds = array<i64: 1, 96>}, {pipeline_mode = #tpu.pipeline_mode<synchronous>, transform_indices = @transform_7, window_bounds = array<i64: 32, 32>}, {pipeline_mode = #tpu.pipeline_mode<synchronous>, transform_indices = @transform_8, window_bounds = array<i64: 1, 32>}, {transform_indices = @transform_9, window_bounds = array<i64: 1, 8, 32>}]} {
    %c0 = arith.constant 0 : index
    %c0_0 = arith.constant 0 : index
    %c0_1 = arith.constant 0 : index
    %0 = vector.load %arg1[%c0, %c0_0, %c0_1] : memref<1x8x32xf32, #tpu.memory_space<vmem>>, vector<1x8x32xf32>
    %1 = vector.shape_cast %0 : vector<1x8x32xf32> to vector<8x32xf32>
    %c0_2 = arith.constant 0 : index
    %c0_3 = arith.constant 0 : index
    %c0_4 = arith.constant 0 : index
    %2 = vector.load %arg2[%c0_2, %c0_3, %c0_4] : memref<1x8x32xf32, #tpu.memory_space<vmem>>, vector<1x8x32xf32>
    %3 = vector.shape_cast %2 : vector<1x8x32xf32> to vector<8x32xf32>
    %c0_5 = arith.constant 0 : index
    %c0_6 = arith.constant 0 : index
    %4 = vector.load %arg4[%c0_5, %c0_6] : memref<1x32xf32, #tpu.memory_space<vmem>>, vector<1x32xf32>
    %c0_7 = arith.constant 0 : index
    %c0_8 = arith.constant 0 : index
    %5 = vector.load %arg5[%c0_7, %c0_8] : memref<1x32xf32, #tpu.memory_space<vmem>>, vector<1x32xf32>
    %cst = arith.constant dense<0.000000e+00> : vector<8xf32>
    %6 = vector.multi_reduction <add>, %1, %cst [1] : vector<8x32xf32> to vector<8xf32>
    %7 = vector.shape_cast %6 : vector<8xf32> to vector<8x1xf32>
    %cst_9 = arith.constant 3.200000e+01 : f32
    %8 = vector.broadcast %cst_9 : f32 to vector<8x1xf32>
    %9 = arith.divf %7, %8 : vector<8x1xf32>
    %10 = vector.broadcast %9 : vector<8x1xf32> to vector<8x32xf32>
    %11 = arith.subf %1, %10 : vector<8x32xf32>
    %12 = arith.mulf %11, %11 : vector<8x32xf32>
    %cst_10 = arith.constant dense<0.000000e+00> : vector<8xf32>
    %13 = vector.multi_reduction <add>, %12, %cst_10 [1] : vector<8x32xf32> to vector<8xf32>
    %14 = vector.shape_cast %13 : vector<8xf32> to vector<8x1xf32>
    %cst_11 = arith.constant 3.100000e+01 : f32
    %15 = vector.broadcast %cst_11 : f32 to vector<8x1xf32>
    %16 = arith.divf %14, %15 : vector<8x1xf32>
    %17 = math.sqrt %16 : vector<8x1xf32>
    %cst_12 = arith.constant 9.99999997E-7 : f32
    %18 = vector.broadcast %cst_12 : f32 to vector<8x1xf32>
    %19 = arith.addf %17, %18 : vector<8x1xf32>
    %20 = tpu.reciprocal %19 {approx = true} : vector<8x1xf32> -> vector<8x1xf32>
    %21 = vector.broadcast %9 : vector<8x1xf32> to vector<8x32xf32>
    %22 = arith.subf %1, %21 : vector<8x32xf32>
    %23 = vector.broadcast %4 : vector<1x32xf32> to vector<8x32xf32>
    %24 = arith.mulf %23, %22 : vector<8x32xf32>
    %25 = vector.broadcast %20 : vector<8x1xf32> to vector<8x32xf32>
    %26 = arith.mulf %24, %25 : vector<8x32xf32>
    %27 = vector.broadcast %5 : vector<1x32xf32> to vector<8x32xf32>
    %28 = arith.addf %26, %27 : vector<8x32xf32>
    %c0_13 = arith.constant 0 : index
    %c0_14 = arith.constant 0 : index
    %c0_15 = arith.constant 0 : index
    %29 = vector.load %arg3[%c0_13, %c0_14, %c0_15] : memref<1x1x8xf32, #tpu.memory_space<vmem>>, vector<1x1x8xf32>
    %30 = vector.shape_cast %29 : vector<1x1x8xf32> to vector<1x8xf32>
    %cst_16 = arith.constant 5.000000e-01 : f32
    %31 = vector.broadcast %cst_16 : f32 to vector<1x8xf32>
    %32 = arith.cmpf ogt, %30, %31 : vector<1x8xf32>
    %c0_17 = arith.constant 0 : index
    %c0_18 = arith.constant 0 : index
    %33 = vector.load %arg6[%c0_17, %c0_18] : memref<32x96xbf16, #tpu.memory_space<vmem>>, vector<32x96xbf16>
    %c0_19 = arith.constant 0 : index
    %c0_20 = arith.constant 0 : index
    %34 = vector.load %arg7[%c0_19, %c0_20] : memref<1x96xf32, #tpu.memory_space<vmem>>, vector<1x96xf32>
    %c0_21 = arith.constant 0 : index
    %c0_22 = arith.constant 0 : index
    %35 = vector.load %arg8[%c0_21, %c0_22] : memref<32x32xbf16, #tpu.memory_space<vmem>>, vector<32x32xbf16>
    %c0_23 = arith.constant 0 : index
    %c0_24 = arith.constant 0 : index
    %36 = vector.load %arg9[%c0_23, %c0_24] : memref<1x32xf32, #tpu.memory_space<vmem>>, vector<1x32xf32>
    %37 = arith.truncf %28 : vector<8x32xf32> to vector<8x32xbf16>
    %38 = vector.extract_strided_slice %33 {offsets = [0, 0], sizes = [32, 32], strides = [1, 1]} : vector<32x96xbf16> to vector<32x32xbf16>
    %cst_25 = arith.constant dense<0.000000e+00> : vector<8x32xf32>
    %39 = tpu.matmul %37, %38, %cst_25 {dimension_numbers = #tpu.dot_dimension_numbers<[1], [0], [0], [1], [0, 0, 1, 1], [], []>} : vector<8x32xbf16>, vector<32x32xbf16>, vector<8x32xf32> -> vector<8x32xf32>
    %40 = vector.extract_strided_slice %34 {offsets = [0, 0], sizes = [1, 32], strides = [1, 1]} : vector<1x96xf32> to vector<1x32xf32>
    %41 = vector.broadcast %40 : vector<1x32xf32> to vector<8x32xf32>
    %42 = arith.addf %39, %41 : vector<8x32xf32>
    %43 = arith.truncf %3 : vector<8x32xf32> to vector<8x32xbf16>
    %44 = vector.extract_strided_slice %33 {offsets = [0, 32], sizes = [32, 64], strides = [1, 1]} : vector<32x96xbf16> to vector<32x64xbf16>
    %cst_26 = arith.constant dense<0.000000e+00> : vector<8x64xf32>
    %45 = tpu.matmul %43, %44, %cst_26 {dimension_numbers = #tpu.dot_dimension_numbers<[1], [0], [0], [1], [0, 0, 1, 1], [], []>} : vector<8x32xbf16>, vector<32x64xbf16>, vector<8x64xf32> -> vector<8x64xf32>
    %46 = vector.extract_strided_slice %34 {offsets = [0, 32], sizes = [1, 64], strides = [1, 1]} : vector<1x96xf32> to vector<1x64xf32>
    %47 = vector.broadcast %46 : vector<1x64xf32> to vector<8x64xf32>
    %48 = arith.addf %45, %47 : vector<8x64xf32>
    %49 = vector.extract_strided_slice %48 {offsets = [0, 0], sizes = [8, 32], strides = [1, 1]} : vector<8x64xf32> to vector<8x32xf32>
    %50 = vector.extract_strided_slice %48 {offsets = [0, 32], sizes = [8, 32], strides = [1, 1]} : vector<8x64xf32> to vector<8x32xf32>
    %cst_27 = arith.constant 0.000000e+00 : f32
    %51 = vector.broadcast %cst_27 : f32 to vector<8x32xf32>
    %52 = vector.extract_strided_slice %42 {offsets = [0, 0], sizes = [8, 8], strides = [1, 1]} : vector<8x32xf32> to vector<8x8xf32>
    %53 = arith.truncf %52 : vector<8x8xf32> to vector<8x8xbf16>
    %54 = vector.extract_strided_slice %49 {offsets = [0, 0], sizes = [8, 8], strides = [1, 1]} : vector<8x32xf32> to vector<8x8xf32>
    %55 = arith.truncf %54 : vector<8x8xf32> to vector<8x8xbf16>
    %56 = vector.extract_strided_slice %50 {offsets = [0, 0], sizes = [8, 8], strides = [1, 1]} : vector<8x32xf32> to vector<8x8xf32>
    %57 = arith.truncf %56 : vector<8x8xf32> to vector<8x8xbf16>
    %cst_28 = arith.constant dense<0.000000e+00> : vector<8x8xf32>
    %58 = tpu.matmul %53, %55, %cst_28 {dimension_numbers = #tpu.dot_dimension_numbers<[1], [1], [0], [0], [0, 0, 1, 0], [], []>} : vector<8x8xbf16>, vector<8x8xbf16>, vector<8x8xf32> -> vector<8x8xf32>
    %cst_29 = arith.constant 0.353553385 : f32
    %59 = vector.broadcast %cst_29 : f32 to vector<8x8xf32>
    %60 = arith.mulf %58, %59 : vector<8x8xf32>
    %cst_30 = arith.constant -1.000000e+09 : f32
    %61 = vector.shape_cast %32 : vector<1x8xi1> to vector<1x8xi1>
    %62 = vector.broadcast %61 : vector<1x8xi1> to vector<8x8xi1>
    %63 = vector.broadcast %cst_30 : f32 to vector<8x8xf32>
    %64 = arith.select %62, %60, %63 : vector<8x8xi1>, vector<8x8xf32>
    %cst_31 = arith.constant dense<0xFF800000> : vector<8xf32>
    %65 = vector.multi_reduction <maximumf>, %64, %cst_31 [1] : vector<8x8xf32> to vector<8xf32>
    %66 = vector.shape_cast %65 : vector<8xf32> to vector<8x1xf32>
    %67 = vector.broadcast %66 : vector<8x1xf32> to vector<8x8xf32>
    %68 = arith.subf %64, %67 : vector<8x8xf32>
    %69 = math.exp %68 : vector<8x8xf32>
    %cst_32 = arith.constant dense<0.000000e+00> : vector<8xf32>
    %70 = vector.multi_reduction <add>, %69, %cst_32 [1] : vector<8x8xf32> to vector<8xf32>
    %71 = vector.shape_cast %70 : vector<8xf32> to vector<8x1xf32>
    %72 = tpu.reciprocal %71 {approx = true} : vector<8x1xf32> -> vector<8x1xf32>
    %73 = vector.broadcast %72 : vector<8x1xf32> to vector<8x8xf32>
    %74 = arith.mulf %69, %73 : vector<8x8xf32>
    %75 = arith.truncf %74 : vector<8x8xf32> to vector<8x8xbf16>
    %cst_33 = arith.constant dense<0.000000e+00> : vector<8x8xf32>
    %76 = tpu.matmul %75, %57, %cst_33 {dimension_numbers = #tpu.dot_dimension_numbers<[1], [0], [0], [1], [0, 0, 1, 1], [], []>} : vector<8x8xbf16>, vector<8x8xbf16>, vector<8x8xf32> -> vector<8x8xf32>
    %77 = arith.truncf %76 : vector<8x8xf32> to vector<8x8xbf16>
    %78 = vector.extract_strided_slice %35 {offsets = [0, 0], sizes = [8, 32], strides = [1, 1]} : vector<32x32xbf16> to vector<8x32xbf16>
    %cst_34 = arith.constant dense<0.000000e+00> : vector<8x32xf32>
    %79 = tpu.matmul %77, %78, %cst_34 {dimension_numbers = #tpu.dot_dimension_numbers<[1], [0], [0], [1], [0, 0, 1, 1], [], []>} : vector<8x8xbf16>, vector<8x32xbf16>, vector<8x32xf32> -> vector<8x32xf32>
    %80 = arith.addf %51, %79 : vector<8x32xf32>
    %81 = vector.extract_strided_slice %42 {offsets = [0, 8], sizes = [8, 8], strides = [1, 1]} : vector<8x32xf32> to vector<8x8xf32>
    %82 = arith.truncf %81 : vector<8x8xf32> to vector<8x8xbf16>
    %83 = vector.extract_strided_slice %49 {offsets = [0, 8], sizes = [8, 8], strides = [1, 1]} : vector<8x32xf32> to vector<8x8xf32>
    %84 = arith.truncf %83 : vector<8x8xf32> to vector<8x8xbf16>
    %85 = vector.extract_strided_slice %50 {offsets = [0, 8], sizes = [8, 8], strides = [1, 1]} : vector<8x32xf32> to vector<8x8xf32>
    %86 = arith.truncf %85 : vector<8x8xf32> to vector<8x8xbf16>
    %cst_35 = arith.constant dense<0.000000e+00> : vector<8x8xf32>
    %87 = tpu.matmul %82, %84, %cst_35 {dimension_numbers = #tpu.dot_dimension_numbers<[1], [1], [0], [0], [0, 0, 1, 0], [], []>} : vector<8x8xbf16>, vector<8x8xbf16>, vector<8x8xf32> -> vector<8x8xf32>
    %cst_36 = arith.constant 0.353553385 : f32
    %88 = vector.broadcast %cst_36 : f32 to vector<8x8xf32>
    %89 = arith.mulf %87, %88 : vector<8x8xf32>
    %cst_37 = arith.constant -1.000000e+09 : f32
    %90 = vector.shape_cast %32 : vector<1x8xi1> to vector<1x8xi1>
    %91 = vector.broadcast %90 : vector<1x8xi1> to vector<8x8xi1>
    %92 = vector.broadcast %cst_37 : f32 to vector<8x8xf32>
    %93 = arith.select %91, %89, %92 : vector<8x8xi1>, vector<8x8xf32>
    %cst_38 = arith.constant dense<0xFF800000> : vector<8xf32>
    %94 = vector.multi_reduction <maximumf>, %93, %cst_38 [1] : vector<8x8xf32> to vector<8xf32>
    %95 = vector.shape_cast %94 : vector<8xf32> to vector<8x1xf32>
    %96 = vector.broadcast %95 : vector<8x1xf32> to vector<8x8xf32>
    %97 = arith.subf %93, %96 : vector<8x8xf32>
    %98 = math.exp %97 : vector<8x8xf32>
    %cst_39 = arith.constant dense<0.000000e+00> : vector<8xf32>
    %99 = vector.multi_reduction <add>, %98, %cst_39 [1] : vector<8x8xf32> to vector<8xf32>
    %100 = vector.shape_cast %99 : vector<8xf32> to vector<8x1xf32>
    %101 = tpu.reciprocal %100 {approx = true} : vector<8x1xf32> -> vector<8x1xf32>
    %102 = vector.broadcast %101 : vector<8x1xf32> to vector<8x8xf32>
    %103 = arith.mulf %98, %102 : vector<8x8xf32>
    %104 = arith.truncf %103 : vector<8x8xf32> to vector<8x8xbf16>
    %cst_40 = arith.constant dense<0.000000e+00> : vector<8x8xf32>
    %105 = tpu.matmul %104, %86, %cst_40 {dimension_numbers = #tpu.dot_dimension_numbers<[1], [0], [0], [1], [0, 0, 1, 1], [], []>} : vector<8x8xbf16>, vector<8x8xbf16>, vector<8x8xf32> -> vector<8x8xf32>
    %106 = arith.truncf %105 : vector<8x8xf32> to vector<8x8xbf16>
    %107 = vector.extract_strided_slice %35 {offsets = [8, 0], sizes = [8, 32], strides = [1, 1]} : vector<32x32xbf16> to vector<8x32xbf16>
    %cst_41 = arith.constant dense<0.000000e+00> : vector<8x32xf32>
    %108 = tpu.matmul %106, %107, %cst_41 {dimension_numbers = #tpu.dot_dimension_numbers<[1], [0], [0], [1], [0, 0, 1, 1], [], []>} : vector<8x8xbf16>, vector<8x32xbf16>, vector<8x32xf32> -> vector<8x32xf32>
    %109 = arith.addf %80, %108 : vector<8x32xf32>
    %110 = vector.extract_strided_slice %42 {offsets = [0, 16], sizes = [8, 8], strides = [1, 1]} : vector<8x32xf32> to vector<8x8xf32>
    %111 = arith.truncf %110 : vector<8x8xf32> to vector<8x8xbf16>
    %112 = vector.extract_strided_slice %49 {offsets = [0, 16], sizes = [8, 8], strides = [1, 1]} : vector<8x32xf32> to vector<8x8xf32>
    %113 = arith.truncf %112 : vector<8x8xf32> to vector<8x8xbf16>
    %114 = vector.extract_strided_slice %50 {offsets = [0, 16], sizes = [8, 8], strides = [1, 1]} : vector<8x32xf32> to vector<8x8xf32>
    %115 = arith.truncf %114 : vector<8x8xf32> to vector<8x8xbf16>
    %cst_42 = arith.constant dense<0.000000e+00> : vector<8x8xf32>
    %116 = tpu.matmul %111, %113, %cst_42 {dimension_numbers = #tpu.dot_dimension_numbers<[1], [1], [0], [0], [0, 0, 1, 0], [], []>} : vector<8x8xbf16>, vector<8x8xbf16>, vector<8x8xf32> -> vector<8x8xf32>
    %cst_43 = arith.constant 0.353553385 : f32
    %117 = vector.broadcast %cst_43 : f32 to vector<8x8xf32>
    %118 = arith.mulf %116, %117 : vector<8x8xf32>
    %cst_44 = arith.constant -1.000000e+09 : f32
    %119 = vector.shape_cast %32 : vector<1x8xi1> to vector<1x8xi1>
    %120 = vector.broadcast %119 : vector<1x8xi1> to vector<8x8xi1>
    %121 = vector.broadcast %cst_44 : f32 to vector<8x8xf32>
    %122 = arith.select %120, %118, %121 : vector<8x8xi1>, vector<8x8xf32>
    %cst_45 = arith.constant dense<0xFF800000> : vector<8xf32>
    %123 = vector.multi_reduction <maximumf>, %122, %cst_45 [1] : vector<8x8xf32> to vector<8xf32>
    %124 = vector.shape_cast %123 : vector<8xf32> to vector<8x1xf32>
    %125 = vector.broadcast %124 : vector<8x1xf32> to vector<8x8xf32>
    %126 = arith.subf %122, %125 : vector<8x8xf32>
    %127 = math.exp %126 : vector<8x8xf32>
    %cst_46 = arith.constant dense<0.000000e+00> : vector<8xf32>
    %128 = vector.multi_reduction <add>, %127, %cst_46 [1] : vector<8x8xf32> to vector<8xf32>
    %129 = vector.shape_cast %128 : vector<8xf32> to vector<8x1xf32>
    %130 = tpu.reciprocal %129 {approx = true} : vector<8x1xf32> -> vector<8x1xf32>
    %131 = vector.broadcast %130 : vector<8x1xf32> to vector<8x8xf32>
    %132 = arith.mulf %127, %131 : vector<8x8xf32>
    %133 = arith.truncf %132 : vector<8x8xf32> to vector<8x8xbf16>
    %cst_47 = arith.constant dense<0.000000e+00> : vector<8x8xf32>
    %134 = tpu.matmul %133, %115, %cst_47 {dimension_numbers = #tpu.dot_dimension_numbers<[1], [0], [0], [1], [0, 0, 1, 1], [], []>} : vector<8x8xbf16>, vector<8x8xbf16>, vector<8x8xf32> -> vector<8x8xf32>
    %135 = arith.truncf %134 : vector<8x8xf32> to vector<8x8xbf16>
    %136 = vector.extract_strided_slice %35 {offsets = [16, 0], sizes = [8, 32], strides = [1, 1]} : vector<32x32xbf16> to vector<8x32xbf16>
    %cst_48 = arith.constant dense<0.000000e+00> : vector<8x32xf32>
    %137 = tpu.matmul %135, %136, %cst_48 {dimension_numbers = #tpu.dot_dimension_numbers<[1], [0], [0], [1], [0, 0, 1, 1], [], []>} : vector<8x8xbf16>, vector<8x32xbf16>, vector<8x32xf32> -> vector<8x32xf32>
    %138 = arith.addf %109, %137 : vector<8x32xf32>
    %139 = vector.extract_strided_slice %42 {offsets = [0, 24], sizes = [8, 8], strides = [1, 1]} : vector<8x32xf32> to vector<8x8xf32>
    %140 = arith.truncf %139 : vector<8x8xf32> to vector<8x8xbf16>
    %141 = vector.extract_strided_slice %49 {offsets = [0, 24], sizes = [8, 8], strides = [1, 1]} : vector<8x32xf32> to vector<8x8xf32>
    %142 = arith.truncf %141 : vector<8x8xf32> to vector<8x8xbf16>
    %143 = vector.extract_strided_slice %50 {offsets = [0, 24], sizes = [8, 8], strides = [1, 1]} : vector<8x32xf32> to vector<8x8xf32>
    %144 = arith.truncf %143 : vector<8x8xf32> to vector<8x8xbf16>
    %cst_49 = arith.constant dense<0.000000e+00> : vector<8x8xf32>
    %145 = tpu.matmul %140, %142, %cst_49 {dimension_numbers = #tpu.dot_dimension_numbers<[1], [1], [0], [0], [0, 0, 1, 0], [], []>} : vector<8x8xbf16>, vector<8x8xbf16>, vector<8x8xf32> -> vector<8x8xf32>
    %cst_50 = arith.constant 0.353553385 : f32
    %146 = vector.broadcast %cst_50 : f32 to vector<8x8xf32>
    %147 = arith.mulf %145, %146 : vector<8x8xf32>
    %cst_51 = arith.constant -1.000000e+09 : f32
    %148 = vector.shape_cast %32 : vector<1x8xi1> to vector<1x8xi1>
    %149 = vector.broadcast %148 : vector<1x8xi1> to vector<8x8xi1>
    %150 = vector.broadcast %cst_51 : f32 to vector<8x8xf32>
    %151 = arith.select %149, %147, %150 : vector<8x8xi1>, vector<8x8xf32>
    %cst_52 = arith.constant dense<0xFF800000> : vector<8xf32>
    %152 = vector.multi_reduction <maximumf>, %151, %cst_52 [1] : vector<8x8xf32> to vector<8xf32>
    %153 = vector.shape_cast %152 : vector<8xf32> to vector<8x1xf32>
    %154 = vector.broadcast %153 : vector<8x1xf32> to vector<8x8xf32>
    %155 = arith.subf %151, %154 : vector<8x8xf32>
    %156 = math.exp %155 : vector<8x8xf32>
    %cst_53 = arith.constant dense<0.000000e+00> : vector<8xf32>
    %157 = vector.multi_reduction <add>, %156, %cst_53 [1] : vector<8x8xf32> to vector<8xf32>
    %158 = vector.shape_cast %157 : vector<8xf32> to vector<8x1xf32>
    %159 = tpu.reciprocal %158 {approx = true} : vector<8x1xf32> -> vector<8x1xf32>
    %160 = vector.broadcast %159 : vector<8x1xf32> to vector<8x8xf32>
    %161 = arith.mulf %156, %160 : vector<8x8xf32>
    %162 = arith.truncf %161 : vector<8x8xf32> to vector<8x8xbf16>
    %cst_54 = arith.constant dense<0.000000e+00> : vector<8x8xf32>
    %163 = tpu.matmul %162, %144, %cst_54 {dimension_numbers = #tpu.dot_dimension_numbers<[1], [0], [0], [1], [0, 0, 1, 1], [], []>} : vector<8x8xbf16>, vector<8x8xbf16>, vector<8x8xf32> -> vector<8x8xf32>
    %164 = arith.truncf %163 : vector<8x8xf32> to vector<8x8xbf16>
    %165 = vector.extract_strided_slice %35 {offsets = [24, 0], sizes = [8, 32], strides = [1, 1]} : vector<32x32xbf16> to vector<8x32xbf16>
    %cst_55 = arith.constant dense<0.000000e+00> : vector<8x32xf32>
    %166 = tpu.matmul %164, %165, %cst_55 {dimension_numbers = #tpu.dot_dimension_numbers<[1], [0], [0], [1], [0, 0, 1, 1], [], []>} : vector<8x8xbf16>, vector<8x32xbf16>, vector<8x32xf32> -> vector<8x32xf32>
    %167 = arith.addf %138, %166 : vector<8x32xf32>
    %168 = vector.broadcast %36 : vector<1x32xf32> to vector<8x32xf32>
    %169 = arith.addf %167, %168 : vector<8x32xf32>
    %170 = arith.addf %1, %169 : vector<8x32xf32>
    %c0_56 = arith.constant 0 : index
    %c0_57 = arith.constant 0 : index
    %c0_58 = arith.constant 0 : index
    %171 = vector.load %arg10[%c0_56, %c0_57, %c0_58] : memref<1x8x32xf32, #tpu.memory_space<vmem>>, vector<1x8x32xf32>
    %172 = vector.shape_cast %171 : vector<1x8x32xf32> to vector<8x32xf32>
    %173 = vector.shape_cast %170 : vector<8x32xf32> to vector<1x8x32xf32>
    tpu.vector_store %arg10[%c0_56, %c0_57, %c0_58], %173 {strides = array<i32>} : memref<1x8x32xf32, #tpu.memory_space<vmem>>, vector<1x8x32xf32>,
    return
  }
  func.func @transform_0(%arg0: i32) -> (i32, i32, i32) {
    %c0_i32 = arith.constant 0 : i32
    %c0_i32_0 = arith.constant 0 : i32
    %c0_i32_1 = arith.constant 0 : i32
    return %arg0, %c0_i32, %c0_i32_0 : i32, i32, i32
  }
  func.func @transform_1(%arg0: i32) -> (i32, i32, i32) {
    %c0_i32 = arith.constant 0 : i32
    %c0_i32_0 = arith.constant 0 : i32
    %c0_i32_1 = arith.constant 0 : i32
    return %arg0, %c0_i32, %c0_i32_0 : i32, i32, i32
  }
  func.func @transform_2(%arg0: i32) -> (i32, i32, i32) {
    %c0_i32 = arith.constant 0 : i32
    %c0_i32_0 = arith.constant 0 : i32
    %c0_i32_1 = arith.constant 0 : i32
    return %arg0, %c0_i32, %c0_i32_0 : i32, i32, i32
  }
  func.func @transform_3(%arg0: i32) -> (i32, i32) {
    %c0_i32 = arith.constant 0 : i32
    %c0_i32_0 = arith.constant 0 : i32
    %c0_i32_1 = arith.constant 0 : i32
    return %c0_i32, %c0_i32_0 : i32, i32
  }
  func.func @transform_4(%arg0: i32) -> (i32, i32) {
    %c0_i32 = arith.constant 0 : i32
    %c0_i32_0 = arith.constant 0 : i32
    %c0_i32_1 = arith.constant 0 : i32
    return %c0_i32, %c0_i32_0 : i32, i32
  }
  func.func @transform_5(%arg0: i32) -> (i32, i32) {
    %c0_i32 = arith.constant 0 : i32
    %c0_i32_0 = arith.constant 0 : i32
    %c0_i32_1 = arith.constant 0 : i32
    return %c0_i32, %c0_i32_0 : i32, i32
  }
  func.func @transform_6(%arg0: i32) -> (i32, i32) {
    %c0_i32 = arith.constant 0 : i32
    %c0_i32_0 = arith.constant 0 : i32
    %c0_i32_1 = arith.constant 0 : i32
    return %c0_i32, %c0_i32_0 : i32, i32
  }
  func.func @transform_7(%arg0: i32) -> (i32, i32) {
    %c0_i32 = arith.constant 0 : i32
    %c0_i32_0 = arith.constant 0 : i32
    %c0_i32_1 = arith.constant 0 : i32
    return %c0_i32, %c0_i32_0 : i32, i32
  }
  func.func @transform_8(%arg0: i32) -> (i32, i32) {
    %c0_i32 = arith.constant 0 : i32
    %c0_i32_0 = arith.constant 0 : i32
    %c0_i32_1 = arith.constant 0 : i32
    return %c0_i32, %c0_i32_0 : i32, i32
  }
  func.func @transform_9(%arg0: i32) -> (i32, i32, i32) {
    %c0_i32 = arith.constant 0 : i32
    %c0_i32_0 = arith.constant 0 : i32
    %c0_i32_1 = arith.constant 0 : i32
    return %arg0, %c0_i32, %c0_i32_0 : i32, i32, i32
  }
}

module attributes {stable_mosaic.version = 11 : i64} {
  func.func @_out_kernel(%arg0: i32, %arg1: memref<1x8x32xf32, #tpu.memory_space<vmem>>, %arg2: memref<1x32xf32, #tpu.memory_space<vmem>>, %arg3: memref<1x32xf32, #tpu.memory_space<vmem>>, %arg4: memref<32x128xbf16, #tpu.memory_space<vmem>>, %arg5: memref<1x128xf32, #tpu.memory_space<vmem>>, %arg6: memref<1x8x128xf32, #tpu.memory_space<vmem>>) attributes {dimension_semantics = [#tpu.dimension_semantics<parallel>], iteration_bounds = array<i64: 2>, scalar_prefetch = 0 : i64, scratch_operands = 0 : i64, tpu.core_type = #tpu.core_type<tc>, window_params = [{transform_indices = @transform_0, window_bounds = array<i64: 1, 8, 32>}, {pipeline_mode = #tpu.pipeline_mode<synchronous>, transform_indices = @transform_1, window_bounds = array<i64: 1, 32>}, {pipeline_mode = #tpu.pipeline_mode<synchronous>, transform_indices = @transform_2, window_bounds = array<i64: 1, 32>}, {pipeline_mode = #tpu.pipeline_mode<synchronous>, transform_indices = @transform_3, window_bounds = array<i64: 32, 128>}, {pipeline_mode = #tpu.pipeline_mode<synchronous>, transform_indices = @transform_4, window_bounds = array<i64: 1, 128>}, {transform_indices = @transform_5, window_bounds = array<i64: 1, 8, 128>}]} {
    %c0 = arith.constant 0 : index
    %c0_0 = arith.constant 0 : index
    %c0_1 = arith.constant 0 : index
    %0 = vector.load %arg1[%c0, %c0_0, %c0_1] : memref<1x8x32xf32, #tpu.memory_space<vmem>>, vector<1x8x32xf32>
    %1 = vector.shape_cast %0 : vector<1x8x32xf32> to vector<8x32xf32>
    %c0_2 = arith.constant 0 : index
    %c0_3 = arith.constant 0 : index
    %2 = vector.load %arg2[%c0_2, %c0_3] : memref<1x32xf32, #tpu.memory_space<vmem>>, vector<1x32xf32>
    %c0_4 = arith.constant 0 : index
    %c0_5 = arith.constant 0 : index
    %3 = vector.load %arg3[%c0_4, %c0_5] : memref<1x32xf32, #tpu.memory_space<vmem>>, vector<1x32xf32>
    %cst = arith.constant dense<0.000000e+00> : vector<8xf32>
    %4 = vector.multi_reduction <add>, %1, %cst [1] : vector<8x32xf32> to vector<8xf32>
    %5 = vector.shape_cast %4 : vector<8xf32> to vector<8x1xf32>
    %cst_6 = arith.constant 3.200000e+01 : f32
    %6 = vector.broadcast %cst_6 : f32 to vector<8x1xf32>
    %7 = arith.divf %5, %6 : vector<8x1xf32>
    %8 = vector.broadcast %7 : vector<8x1xf32> to vector<8x32xf32>
    %9 = arith.subf %1, %8 : vector<8x32xf32>
    %10 = arith.mulf %9, %9 : vector<8x32xf32>
    %cst_7 = arith.constant dense<0.000000e+00> : vector<8xf32>
    %11 = vector.multi_reduction <add>, %10, %cst_7 [1] : vector<8x32xf32> to vector<8xf32>
    %12 = vector.shape_cast %11 : vector<8xf32> to vector<8x1xf32>
    %cst_8 = arith.constant 3.100000e+01 : f32
    %13 = vector.broadcast %cst_8 : f32 to vector<8x1xf32>
    %14 = arith.divf %12, %13 : vector<8x1xf32>
    %15 = math.sqrt %14 : vector<8x1xf32>
    %cst_9 = arith.constant 9.99999997E-7 : f32
    %16 = vector.broadcast %cst_9 : f32 to vector<8x1xf32>
    %17 = arith.addf %15, %16 : vector<8x1xf32>
    %18 = tpu.reciprocal %17 {approx = true} : vector<8x1xf32> -> vector<8x1xf32>
    %19 = vector.broadcast %7 : vector<8x1xf32> to vector<8x32xf32>
    %20 = arith.subf %1, %19 : vector<8x32xf32>
    %21 = vector.broadcast %2 : vector<1x32xf32> to vector<8x32xf32>
    %22 = arith.mulf %21, %20 : vector<8x32xf32>
    %23 = vector.broadcast %18 : vector<8x1xf32> to vector<8x32xf32>
    %24 = arith.mulf %22, %23 : vector<8x32xf32>
    %25 = vector.broadcast %3 : vector<1x32xf32> to vector<8x32xf32>
    %26 = arith.addf %24, %25 : vector<8x32xf32>
    %27 = arith.truncf %26 : vector<8x32xf32> to vector<8x32xbf16>
    %c0_10 = arith.constant 0 : index
    %c0_11 = arith.constant 0 : index
    %28 = vector.load %arg4[%c0_10, %c0_11] : memref<32x128xbf16, #tpu.memory_space<vmem>>, vector<32x128xbf16>
    %cst_12 = arith.constant dense<0.000000e+00> : vector<8x128xf32>
    %29 = tpu.matmul %27, %28, %cst_12 {dimension_numbers = #tpu.dot_dimension_numbers<[1], [0], [0], [1], [0, 0, 1, 1], [], []>} : vector<8x32xbf16>, vector<32x128xbf16>, vector<8x128xf32> -> vector<8x128xf32>
    %c0_13 = arith.constant 0 : index
    %c0_14 = arith.constant 0 : index
    %30 = vector.load %arg5[%c0_13, %c0_14] : memref<1x128xf32, #tpu.memory_space<vmem>>, vector<1x128xf32>
    %31 = vector.broadcast %30 : vector<1x128xf32> to vector<8x128xf32>
    %32 = arith.addf %29, %31 : vector<8x128xf32>
    %c0_15 = arith.constant 0 : index
    %c0_16 = arith.constant 0 : index
    %c0_17 = arith.constant 0 : index
    %33 = vector.load %arg6[%c0_15, %c0_16, %c0_17] : memref<1x8x128xf32, #tpu.memory_space<vmem>>, vector<1x8x128xf32>
    %34 = vector.shape_cast %33 : vector<1x8x128xf32> to vector<8x128xf32>
    %35 = vector.shape_cast %32 : vector<8x128xf32> to vector<1x8x128xf32>
    tpu.vector_store %arg6[%c0_15, %c0_16, %c0_17], %35 {strides = array<i32>} : memref<1x8x128xf32, #tpu.memory_space<vmem>>, vector<1x8x128xf32>,
    return
  }
  func.func @transform_0(%arg0: i32) -> (i32, i32, i32) {
    %c0_i32 = arith.constant 0 : i32
    %c0_i32_0 = arith.constant 0 : i32
    %c0_i32_1 = arith.constant 0 : i32
    return %arg0, %c0_i32, %c0_i32_0 : i32, i32, i32
  }
  func.func @transform_1(%arg0: i32) -> (i32, i32) {
    %c0_i32 = arith.constant 0 : i32
    %c0_i32_0 = arith.constant 0 : i32
    %c0_i32_1 = arith.constant 0 : i32
    return %c0_i32, %c0_i32_0 : i32, i32
  }
  func.func @transform_2(%arg0: i32) -> (i32, i32) {
    %c0_i32 = arith.constant 0 : i32
    %c0_i32_0 = arith.constant 0 : i32
    %c0_i32_1 = arith.constant 0 : i32
    return %c0_i32, %c0_i32_0 : i32, i32
  }
  func.func @transform_3(%arg0: i32) -> (i32, i32) {
    %c0_i32 = arith.constant 0 : i32
    %c0_i32_0 = arith.constant 0 : i32
    %c0_i32_1 = arith.constant 0 : i32
    return %c0_i32, %c0_i32_0 : i32, i32
  }
  func.func @transform_4(%arg0: i32) -> (i32, i32) {
    %c0_i32 = arith.constant 0 : i32
    %c0_i32_0 = arith.constant 0 : i32
    %c0_i32_1 = arith.constant 0 : i32
    return %c0_i32, %c0_i32_0 : i32, i32
  }
  func.func @transform_5(%arg0: i32) -> (i32, i32, i32) {
    %c0_i32 = arith.constant 0 : i32
    %c0_i32_0 = arith.constant 0 : i32
    %c0_i32_1 = arith.constant 0 : i32
    return %arg0, %c0_i32, %c0_i32_0 : i32, i32, i32
  }
}

</mosaic_0001>

<llo_original>
// kernel: transformer_forward.16
$region0: #{transformer_forward.16}
  #allocation0 [shape = 'u32[]', space=smem, size = 0x4, offset = 0x4, fixed_abs, tag = 'smem constant byte address 0x4 - core index']
  #allocation1 [shape = 'u32[144,128]{1,0:T(1,128)}', space=vmem, size = 0x12000, scoped, tag = 'internal scratch']
  %s0 = inlined_call_operand.vmem [shape: f32[2,8,32], index: 0, kind: input, shape index: {}]
  %s1 = inlined_call_operand.vmem [shape: f32[1,32], index: 1, kind: input, shape index: {}]
  %s2 = inlined_call_operand.vmem [shape: f32[1,32], index: 2, kind: input, shape index: {}]
  %s3 = inlined_call_operand.vmem [shape: f32[2,8,32], index: 3, kind: output, shape index: {}]
  %s4 = sld [smem:[#allocation0]]
  $region45: #{transformer_forward.16} parent=0
    _
  %s6 = ssub.s32 1, %s4
  %s7 = scalar_select 0, %s6, %s4
  loop: start=0, step=1, limit=4
  $region2: #{transformer_forward.16} parent=0 // loop_pre_header
    _
  $region3: #{transformer_forward.16} parent=0 // loop_header
    %s9 = sphi 0, %s13
    %p10 = scmp.ge.s32.totalorder %s9, 4
    %s19 = sphi 0, %s21
    %s22 = sphi 0, %s19
    %s23 = sphi 0, %s22
    %s39 = sphi 0, %s23
    %s43 = sphi 0, %s43
    %s45 = sphi 0, %s43
    %s46 = sphi 0, %s45
    %s60 = sphi 0, %s46
    %s64 = sphi 0, %s64
    %s66 = sphi 0, %s64
    %s67 = sphi 0, %s66
    %s81 = sphi 0, %s67
    %s87 = sphi 0, %s89
    %s90 = sphi 0, %s87
    %s91 = sphi 0, %s90
    %s107 = sphi 0, %s91
  $region4: #{transformer_forward.16} parent=0 // loop_header_branch
    %12 = sbr.rel (%p10) target = $region8
  $region5: #{transformer_forward.16} parent=0 // loop_body
    %s14 = ssub.s32 %s9, 1
    %s15 = ssub.s32 %s9, 2
    %s16 = sadd.s32 %s9, 1
    %s17 = ssub.s32 %s9, %s16
    %p18 = scmp.eq.s32.totalorder %s17, 0
    %s20 = sadd.s32 %s19, 1
    %s21 = scalar_select %p18, %s19, %s20
    %p24 = pneg %p18
    %p25 = scmp.eq.s32.totalorder %s9, 1
    %p26 = por %p24, %p25
    %p27 = scmp.ne.s32.totalorder %s19, %s22
    %p28 = scmp.eq.s32.totalorder %s9, 0
    %p29 = por %p27, %p28
    %p30 = scmp.ne.s32.totalorder %s19, %s22
    %p31 = scmp.eq.s32.totalorder %s14, 1
    %p32 = por %p30, %p31
    %p33 = scmp.ne.s32.totalorder %s22, %s23
    %p34 = scmp.eq.s32.totalorder %s14, 0
    %p35 = por %p33, %p34
    %p36 = scmp.ne.s32.totalorder %s22, %s23
    %p37 = scmp.eq.s32.totalorder %s15, 1
    %p38 = por %p36, %p37
    %p40 = scmp.ne.s32.totalorder %s23, %s39
    %p41 = scmp.eq.s32.totalorder %s15, 0
    %p42 = por %p40, %p41
    %s44 = sadd.s32 %s43, 1
    %p47 = scmp.eq.s32.totalorder %s9, 1
    %p48 = scmp.ne.s32.totalorder %s43, %s45
    %p49 = scmp.eq.s32.totalorder %s9, 0
    %p50 = por %p48, %p49
    %p51 = scmp.ne.s32.totalorder %s43, %s45
    %p52 = scmp.eq.s32.totalorder %s14, 1
    %p53 = por %p51, %p52
    %p54 = scmp.ne.s32.totalorder %s45, %s46
    %p55 = scmp.eq.s32.totalorder %s14, 0
    %p56 = por %p54, %p55
    %p57 = scmp.ne.s32.totalorder %s45, %s46
    %p58 = scmp.eq.s32.totalorder %s15, 1
    %p59 = por %p57, %p58
    %p61 = scmp.ne.s32.totalorder %s46, %s60
    %p62 = scmp.eq.s32.totalorder %s15, 0
    %p63 = por %p61, %p62
    %s65 = sadd.s32 %s64, 1
    %p68 = scmp.eq.s32.totalorder %s9, 1
    %p69 = scmp.ne.s32.totalorder %s64, %s66
    %p70 = scmp.eq.s32.totalorder %s9, 0
    %p71 = por %p69, %p70
    %p72 = scmp.ne.s32.totalorder %s64, %s66
    %p73 = scmp.eq.s32.totalorder %s14, 1
    %p74 = por %p72, %p73
    %p75 = scmp.ne.s32.totalorder %s66, %s67
    %p76 = scmp.eq.s32.totalorder %s14, 0
    %p77 = por %p75, %p76
    %p78 = scmp.ne.s32.totalorder %s66, %s67
    %p79 = scmp.eq.s32.totalorder %s15, 1
    %p80 = por %p78, %p79
    %p82 = scmp.ne.s32.totalorder %s67, %s81
    %p83 = scmp.eq.s32.totalorder %s15, 0
    %p84 = por %p82, %p83
    %s85 = ssub.s32 %s9, %s16
    %p86 = scmp.eq.s32.totalorder %s85, 0
    %s88 = sadd.s32 %s87, 1
    %s89 = scalar_select %p86, %s87, %s88
    %p92 = pneg %p86
    %p93 = scmp.eq.s32.totalorder %s9, 1
    %p94 = por %p92, %p93
    %p95 = scmp.ne.s32.totalorder %s87, %s90
    %p96 = scmp.eq.s32.totalorder %s9, 0
    %p97 = por %p95, %p96
    %p98 = scmp.ne.s32.totalorder %s87, %s90
    %p99 = scmp.eq.s32.totalorder %s14, 1
    %p100 = por %p98, %p99
    %p101 = scmp.ne.s32.totalorder %s90, %s91
    %p102 = scmp.eq.s32.totalorder %s14, 0
    %p103 = por %p101, %p102
    %p104 = scmp.ne.s32.totalorder %s90, %s91
    %p105 = scmp.eq.s32.totalorder %s15, 1
    %p106 = por %p104, %p105
    %p108 = scmp.ne.s32.totalorder %s91, %s107
    %p109 = scmp.eq.s32.totalorder %s15, 0
    %p110 = por %p108, %p109
    %p111 = scmp.le.s32.totalorder 1, %s9
    %p112 = scmp.lt.s32.totalorder %s9, 3
    %p113 = pnand %p111, %p112
    %p114 = pneg %p113
    // Predicated region
    $region9: #{transformer_forward.16} parent=5 // pred_check
      _
    $region10: #{transformer_forward.16} parent=5 // pred_check_branch
      %116 = sbr.rel (%p113) target = $region12
    $region11: #{transformer_forward.16} parent=5 // pred_region
      %s117 = ssub.s32 %s9, 1
      // Predicated region
      $region13: #{transformer_forward.16} parent=11 // pred_check
        %p118 = pneg %p56
      $region14: #{transformer_forward.16} parent=11 // pred_check_branch
        %120 = sbr.rel (%p118) target = $region16
      $region15: #{transformer_forward.16} parent=11 // pred_region
        _
      $region16: #{transformer_forward.16} parent=11 // pred_fallthru
        _
      // Predicated region
      $region17: #{transformer_forward.16} parent=11 // pred_check
        %p121 = pneg %p77
      $region18: #{transformer_forward.16} parent=11 // pred_check_branch
        %123 = sbr.rel (%p121) target = $region20
      $region19: #{transformer_forward.16} parent=11 // pred_region
        _
      $region20: #{transformer_forward.16} parent=11 // pred_fallthru
        _
    $region12: #{transformer_forward.16} parent=5 // pred_fallthru
      _
    %p124 = scmp.lt.s32.totalorder %s9, 2
    // Predicated region
    $region21: #{transformer_forward.16} parent=5 // pred_check
      %p125 = pneg %p124
    $region22: #{transformer_forward.16} parent=5 // pred_check_branch
      %127 = sbr.rel (%p125) target = $region24
    $region23: #{transformer_forward.16} parent=5 // pred_region
      // Predicated region
      $region25: #{transformer_forward.16} parent=23 // pred_check
        %p128 = pneg %p29
      $region26: #{transformer_forward.16} parent=23 // pred_check_branch
        %130 = sbr.rel (%p128) target = $region28
      $region27: #{transformer_forward.16} parent=23 // pred_region
        %p131 = scmp.lt.s32.totalorder %s9, 1
        %s132 = scalar_select %p131, %s9, 1
        %s133 = smul.addr %s132, 8
        %s134 = scalar_lea.vmem %s0, %s133
      $region28: #{transformer_forward.16} parent=23 // pred_fallthru
        _
    $region24: #{transformer_forward.16} parent=5 // pred_fallthru
      _
    %p135 = scmp.le.s32.totalorder 1, %s9
    %p136 = scmp.lt.s32.totalorder %s9, 3
    %p137 = pnand %p135, %p136
    %p138 = pneg %p137
    // Predicated region
    $region29: #{transformer_forward.16} parent=5 // pred_check
      _
    $region30: #{transformer_forward.16} parent=5 // pred_check_branch
      %140 = sbr.rel (%p137) target = $region32
    $region31: #{transformer_forward.16} parent=5 // pred_region
      %s141 = ssub.s32 %s9, 1
      %p142 = scmp.lt.s32.totalorder %s14, 1
      %s143 = scalar_select %p142, %s14, 1
      %s144 = smul.addr %s143, 8
      %s145 = scalar_lea.vmem %s0, %s144
      %p146 = pneg %p35
      %p147 = pneg %p32
      %p148 = pneg %p56
      %p149 = pneg %p53
      %p150 = pneg %p77
      %p151 = pneg %p74
      %p152 = pneg %p103
      %p153 = pneg %p100
      %p154 = scmp.lt.s32.totalorder %s14, 1
      %s155 = scalar_select %p154, %s14, 1
      %s156 = smul.addr %s155, 8
      %s157 = scalar_lea.vmem %s3, %s156
      %p158 = scmp.lt.s32.totalorder %s14, 1
      %s159 = scalar_select %p158, %s14, 1
      %s160 = smul.addr %s159, 8
      %s161 = scalar_lea.vmem %s0, %s160
      %p162 = scmp.lt.s32.totalorder %s14, 1
      %s163 = scalar_select %p162, %s14, 1
      %s164 = smul.addr %s163, 8
      %s165 = scalar_lea.vmem %s3, %s164
      %v166 = vld [vmem:[%s161] sm:$0xff]
      %v167 = vld [vmem:[%s1] sm:$0x1]
      %v168 = vld [vmem:[%s2] sm:$0x1]
      %vm169 = vcmask 261120
      %v170 = vsel %vm169, %v166, 0.0
      %171 = vadd.xlane.f32.xlu0 %v170
      %v172 = vpop.xlane.xlu0 %171
      %v173 = vrcp.pop 32.0
      %v174 = vmul.f32 %v172, %v173
      %v175 = vsub.f32 %v166, %v174
      %v176 = vmul.f32 %v175, %v175
      %v177 = vsel %vm169, %v176, 0.0
      %178 = vadd.xlane.f32.xlu0 %v177
      %v179 = vpop.xlane.xlu0 %178
      %v180 = vrcp.pop 31.0
      %v181 = vmul.f32 %v179, %v180
      %v182 = vrsqrt.pop %v181
      %v183 = vmul.f32 %v181, %v182
      %vm184 = vcmp.eq.f32.partialorder %v181, inf
      %v185 = vsel %vm184, %v181, %v183
      %vm186 = vcmp.eq.f32.partialorder %v181, 0.0
      %v187 = vand.u32 %v181, 2147483648
      %v188 = vsel %vm186, %v187, %v185
      %v189 = vadd.f32 %v188, 1e-06
      %v190 = vrcp.pop %v189
      %v192 = vlaneseq
      %v193 = vshrl.u32 %v192, 7
      %v194 = vsub.s32 0, %v193
      %v195 = vrot.slane %v167, %v194
      %v197 = vmul.f32 %v195, %v175
      %v198 = vmul.f32 %v197, %v190
      %v200 = vlaneseq
      %v201 = vshrl.u32 %v200, 7
      %v202 = vsub.s32 0, %v201
      %v203 = vrot.slane %v168, %v202
      %v205 = vadd.f32 %v198, %v203
      %206 = vst.msk [vmem:[%s165] sm:$0xff] %vm169, %v205
      %p207 = scmp.lt.s32.totalorder %s14, 1
      %s208 = scalar_select %p207, %s14, 1
      %s209 = smul.addr %s208, 8
      %s210 = scalar_lea.vmem %s3, %s209
      // Predicated region
      $region33: #{transformer_forward.16} parent=31 // pred_check
        %p211 = pneg %p100
      $region34: #{transformer_forward.16} parent=31 // pred_check_branch
        %213 = sbr.rel (%p211) target = $region36
      $region35: #{transformer_forward.16} parent=31 // pred_region
        _
      $region36: #{transformer_forward.16} parent=31 // pred_fallthru
        _
    $region32: #{transformer_forward.16} parent=5 // pred_fallthru
      _
    %p214 = scmp.le.s32.totalorder 2, %s9
    // Predicated region
    $region37: #{transformer_forward.16} parent=5 // pred_check
      %p215 = pneg %p214
    $region38: #{transformer_forward.16} parent=5 // pred_check_branch
      %217 = sbr.rel (%p215) target = $region40
    $region39: #{transformer_forward.16} parent=5 // pred_region
      %s218 = ssub.s32 %s9, 2
      // Predicated region
      $region41: #{transformer_forward.16} parent=39 // pred_check
        %p219 = pneg %p106
      $region42: #{transformer_forward.16} parent=39 // pred_check_branch
        %221 = sbr.rel (%p219) target = $region44
      $region43: #{transformer_forward.16} parent=39 // pred_region
        %p222 = scmp.lt.s32.totalorder %s15, 1
        %s223 = scalar_select %p222, %s15, 1
        %s224 = smul.addr %s223, 8
        %s225 = scalar_lea.vmem %s3, %s224
      $region44: #{transformer_forward.16} parent=39 // pred_fallthru
        _
    $region40: #{transformer_forward.16} parent=5 // pred_fallthru
      _
  $region6: #{transformer_forward.16} parent=0 // loop_footer
    %s13 = sadd.s32 1, %s9
  $region7: #{transformer_forward.16} parent=0 // loop_footer_branch
    %8 = sbr.rel target = $region3
  $region8: #{transformer_forward.16} parent=0 // loop_exit
    _

// kernel: transformer_forward.13
$region0: #{transformer_forward.13}
  #allocation0 [shape = 'u32[]', space=smem, size = 0x4, offset = 0x4, fixed_abs, tag = 'smem constant byte address 0x4 - core index']
  #allocation1 [shape = 'u32[144,128]{1,0:T(1,128)}', space=vmem, size = 0x12000, scoped, tag = 'internal scratch']
  %s0 = inlined_call_operand.vmem [shape: f32[2,8,32], index: 0, kind: input, shape index: {}]
  %s1 = inlined_call_operand.vmem [shape: f32[1,32], index: 1, kind: input, shape index: {}]
  %s2 = inlined_call_operand.vmem [shape: f32[1,32], index: 2, kind: input, shape index: {}]
  %s3 = inlined_call_operand.vmem [shape: bf16[32,64], index: 3, kind: input, shape index: {}]
  %s4 = inlined_call_operand.vmem [shape: f32[1,64], index: 4, kind: input, shape index: {}]
  %s5 = inlined_call_operand.vmem [shape: bf16[64,32], index: 5, kind: input, shape index: {}]
  %s6 = inlined_call_operand.vmem [shape: f32[1,32], index: 6, kind: input, shape index: {}]
  %s7 = inlined_call_operand.vmem [shape: f32[2,8,32], index: 7, kind: output, shape index: {}]
  %s8 = sld [smem:[#allocation0]]
  $region61: #{transformer_forward.13} parent=0
    _
  %s10 = ssub.s32 1, %s8
  %s11 = scalar_select 0, %s10, %s8
  loop: start=0, step=1, limit=4
  $region2: #{transformer_forward.13} parent=0 // loop_pre_header
    _
  $region3: #{transformer_forward.13} parent=0 // loop_header
    %s13 = sphi 0, %s17
    %p14 = scmp.ge.s32.totalorder %s13, 4
    %s23 = sphi 0, %s25
    %s26 = sphi 0, %s23
    %s27 = sphi 0, %s26
    %s43 = sphi 0, %s27
    %s47 = sphi 0, %s47
    %s49 = sphi 0, %s47
    %s50 = sphi 0, %s49
    %s64 = sphi 0, %s50
    %s68 = sphi 0, %s68
    %s70 = sphi 0, %s68
    %s71 = sphi 0, %s70
    %s85 = sphi 0, %s71
    %s89 = sphi 0, %s89
    %s91 = sphi 0, %s89
    %s92 = sphi 0, %s91
    %s106 = sphi 0, %s92
    %s110 = sphi 0, %s110
    %s112 = sphi 0, %s110
    %s113 = sphi 0, %s112
    %s127 = sphi 0, %s113
    %s131 = sphi 0, %s131
    %s133 = sphi 0, %s131
    %s134 = sphi 0, %s133
    %s148 = sphi 0, %s134
    %s152 = sphi 0, %s152
    %s154 = sphi 0, %s152
    %s155 = sphi 0, %s154
    %s169 = sphi 0, %s155
    %s175 = sphi 0, %s177
    %s178 = sphi 0, %s175
    %s179 = sphi 0, %s178
    %s195 = sphi 0, %s179
  $region4: #{transformer_forward.13} parent=0 // loop_header_branch
    %16 = sbr.rel (%p14) target = $region8
  $region5: #{transformer_forward.13} parent=0 // loop_body
    %s18 = ssub.s32 %s13, 1
    %s19 = ssub.s32 %s13, 2
    %s20 = sadd.s32 %s13, 1
    %s21 = ssub.s32 %s13, %s20
    %p22 = scmp.eq.s32.totalorder %s21, 0
    %s24 = sadd.s32 %s23, 1
    %s25 = scalar_select %p22, %s23, %s24
    %p28 = pneg %p22
    %p29 = scmp.eq.s32.totalorder %s13, 1
    %p30 = por %p28, %p29
    %p31 = scmp.ne.s32.totalorder %s23, %s26
    %p32 = scmp.eq.s32.totalorder %s13, 0
    %p33 = por %p31, %p32
    %p34 = scmp.ne.s32.totalorder %s23, %s26
    %p35 = scmp.eq.s32.totalorder %s18, 1
    %p36 = por %p34, %p35
    %p37 = scmp.ne.s32.totalorder %s26, %s27
    %p38 = scmp.eq.s32.totalorder %s18, 0
    %p39 = por %p37, %p38
    %p40 = scmp.ne.s32.totalorder %s26, %s27
    %p41 = scmp.eq.s32.totalorder %s19, 1
    %p42 = por %p40, %p41
    %p44 = scmp.ne.s32.totalorder %s27, %s43
    %p45 = scmp.eq.s32.totalorder %s19, 0
    %p46 = por %p44, %p45
    %s48 = sadd.s32 %s47, 1
    %p51 = scmp.eq.s32.totalorder %s13, 1
    %p52 = scmp.ne.s32.totalorder %s47, %s49
    %p53 = scmp.eq.s32.totalorder %s13, 0
    %p54 = por %p52, %p53
    %p55 = scmp.ne.s32.totalorder %s47, %s49
    %p56 = scmp.eq.s32.totalorder %s18, 1
    %p57 = por %p55, %p56
    %p58 = scmp.ne.s32.totalorder %s49, %s50
    %p59 = scmp.eq.s32.totalorder %s18, 0
    %p60 = por %p58, %p59
    %p61 = scmp.ne.s32.totalorder %s49, %s50
    %p62 = scmp.eq.s32.totalorder %s19, 1
    %p63 = por %p61, %p62
    %p65 = scmp.ne.s32.totalorder %s50, %s64
    %p66 = scmp.eq.s32.totalorder %s19, 0
    %p67 = por %p65, %p66
    %s69 = sadd.s32 %s68, 1
    %p72 = scmp.eq.s32.totalorder %s13, 1
    %p73 = scmp.ne.s32.totalorder %s68, %s70
    %p74 = scmp.eq.s32.totalorder %s13, 0
    %p75 = por %p73, %p74
    %p76 = scmp.ne.s32.totalorder %s68, %s70
    %p77 = scmp.eq.s32.totalorder %s18, 1
    %p78 = por %p76, %p77
    %p79 = scmp.ne.s32.totalorder %s70, %s71
    %p80 = scmp.eq.s32.totalorder %s18, 0
    %p81 = por %p79, %p80
    %p82 = scmp.ne.s32.totalorder %s70, %s71
    %p83 = scmp.eq.s32.totalorder %s19, 1
    %p84 = por %p82, %p83
    %p86 = scmp.ne.s32.totalorder %s71, %s85
    %p87 = scmp.eq.s32.totalorder %s19, 0
    %p88 = por %p86, %p87
    %s90 = sadd.s32 %s89, 1
    %p93 = scmp.eq.s32.totalorder %s13, 1
    %p94 = scmp.ne.s32.totalorder %s89, %s91
    %p95 = scmp.eq.s32.totalorder %s13, 0
    %p96 = por %p94, %p95
    %p97 = scmp.ne.s32.totalorder %s89, %s91
    %p98 = scmp.eq.s32.totalorder %s18, 1
    %p99 = por %p97, %p98
    %p100 = scmp.ne.s32.totalorder %s91, %s92
    %p101 = scmp.eq.s32.totalorder %s18, 0
    %p102 = por %p100, %p101
    %p103 = scmp.ne.s32.totalorder %s91, %s92
    %p104 = scmp.eq.s32.totalorder %s19, 1
    %p105 = por %p103, %p104
    %p107 = scmp.ne.s32.totalorder %s92, %s106
    %p108 = scmp.eq.s32.totalorder %s19, 0
    %p109 = por %p107, %p108
    %s111 = sadd.s32 %s110, 1
    %p114 = scmp.eq.s32.totalorder %s13, 1
    %p115 = scmp.ne.s32.totalorder %s110, %s112
    %p116 = scmp.eq.s32.totalorder %s13, 0
    %p117 = por %p115, %p116
    %p118 = scmp.ne.s32.totalorder %s110, %s112
    %p119 = scmp.eq.s32.totalorder %s18, 1
    %p120 = por %p118, %p119
    %p121 = scmp.ne.s32.totalorder %s112, %s113
    %p122 = scmp.eq.s32.totalorder %s18, 0
    %p123 = por %p121, %p122
    %p124 = scmp.ne.s32.totalorder %s112, %s113
    %p125 = scmp.eq.s32.totalorder %s19, 1
    %p126 = por %p124, %p125
    %p128 = scmp.ne.s32.totalorder %s113, %s127
    %p129 = scmp.eq.s32.totalorder %s19, 0
    %p130 = por %p128, %p129
    %s132 = sadd.s32 %s131, 1
    %p135 = scmp.eq.s32.totalorder %s13, 1
    %p136 = scmp.ne.s32.totalorder %s131, %s133
    %p137 = scmp.eq.s32.totalorder %s13, 0
    %p138 = por %p136, %p137
    %p139 = scmp.ne.s32.totalorder %s131, %s133
    %p140 = scmp.eq.s32.totalorder %s18, 1
    %p141 = por %p139, %p140
    %p142 = scmp.ne.s32.totalorder %s133, %s134
    %p143 = scmp.eq.s32.totalorder %s18, 0
    %p144 = por %p142, %p143
    %p145 = scmp.ne.s32.totalorder %s133, %s134
    %p146 = scmp.eq.s32.totalorder %s19, 1
    %p147 = por %p145, %p146
    %p149 = scmp.ne.s32.totalorder %s134, %s148
    %p150 = scmp.eq.s32.totalorder %s19, 0
    %p151 = por %p149, %p150
    %s153 = sadd.s32 %s152, 1
    %p156 = scmp.eq.s32.totalorder %s13, 1
    %p157 = scmp.ne.s32.totalorder %s152, %s154
    %p158 = scmp.eq.s32.totalorder %s13, 0
    %p159 = por %p157, %p158
    %p160 = scmp.ne.s32.totalorder %s152, %s154
    %p161 = scmp.eq.s32.totalorder %s18, 1
    %p162 = por %p160, %p161
    %p163 = scmp.ne.s32.totalorder %s154, %s155
    %p164 = scmp.eq.s32.totalorder %s18, 0
    %p165 = por %p163, %p164
    %p166 = scmp.ne.s32.totalorder %s154, %s155
    %p167 = scmp.eq.s32.totalorder %s19, 1
    %p168 = por %p166, %p167
    %p170 = scmp.ne.s32.totalorder %s155, %s169
    %p171 = scmp.eq.s32.totalorder %s19, 0
    %p172 = por %p170, %p171
    %s173 = ssub.s32 %s13, %s20
    %p174 = scmp.eq.s32.totalorder %s173, 0
    %s176 = sadd.s32 %s175, 1
    %s177 = scalar_select %p174, %s175, %s176
    %p180 = pneg %p174
    %p181 = scmp.eq.s32.totalorder %s13, 1
    %p182 = por %p180, %p181
    %p183 = scmp.ne.s32.totalorder %s175, %s178
    %p184 = scmp.eq.s32.totalorder %s13, 0
    %p185 = por %p183, %p184
    %p186 = scmp.ne.s32.totalorder %s175, %s178
    %p187 = scmp.eq.s32.totalorder %s18, 1
    %p188 = por %p186, %p187
    %p189 = scmp.ne.s32.totalorder %s178, %s179
    %p190 = scmp.eq.s32.totalorder %s18, 0
    %p191 = por %p189, %p190
    %p192 = scmp.ne.s32.totalorder %s178, %s179
    %p193 = scmp.eq.s32.totalorder %s19, 1
    %p194 = por %p192, %p193
    %p196 = scmp.ne.s32.totalorder %s179, %s195
    %p197 = scmp.eq.s32.totalorder %s19, 0
    %p198 = por %p196, %p197
    %p199 = scmp.le.s32.totalorder 1, %s13
    %p200 = scmp.lt.s32.totalorder %s13, 3
    %p201 = pnand %p199, %p200
    %p202 = pneg %p201
    // Predicated region
    $region9: #{transformer_forward.13} parent=5 // pred_check
      _
    $region10: #{transformer_forward.13} parent=5 // pred_check_branch
      %204 = sbr.rel (%p201) target = $region12
    $region11: #{transformer_forward.13} parent=5 // pred_region
      %s205 = ssub.s32 %s13, 1
      // Predicated region
      $region13: #{transformer_forward.13} parent=11 // pred_check
        %p206 = pneg %p60
      $region14: #{transformer_forward.13} parent=11 // pred_check_branch
        %208 = sbr.rel (%p206) target = $region16
      $region15: #{transformer_forward.13} parent=11 // pred_region
        _
      $region16: #{transformer_forward.13} parent=11 // pred_fallthru
        _
      // Predicated region
      $region17: #{transformer_forward.13} parent=11 // pred_check
        %p209 = pneg %p81
      $region18: #{transformer_forward.13} parent=11 // pred_check_branch
        %211 = sbr.rel (%p209) target = $region20
      $region19: #{transformer_forward.13} parent=11 // pred_region
        _
      $region20: #{transformer_forward.13} parent=11 // pred_fallthru
        _
      // Predicated region
      $region21: #{transformer_forward.13} parent=11 // pred_check
        %p212 = pneg %p102
      $region22: #{transformer_forward.13} parent=11 // pred_check_branch
        %214 = sbr.rel (%p212) target = $region24
      $region23: #{transformer_forward.13} parent=11 // pred_region
        _
      $region24: #{transformer_forward.13} parent=11 // pred_fallthru
        _
      // Predicated region
      $region25: #{transformer_forward.13} parent=11 // pred_check
        %p215 = pneg %p123
      $region26: #{transformer_forward.13} parent=11 // pred_check_branch
        %217 = sbr.rel (%p215) target = $region28
      $region27: #{transformer_forward.13} parent=11 // pred_region
        _
      $region28: #{transformer_forward.13} parent=11 // pred_fallthru
        _
      // Predicated region
      $region29: #{transformer_forward.13} parent=11 // pred_check
        %p218 = pneg %p144
      $region30: #{transformer_forward.13} parent=11 // pred_check_branch
        %220 = sbr.rel (%p218) target = $region32
      $region31: #{transformer_forward.13} parent=11 // pred_region
        _
      $region32: #{transformer_forward.13} parent=11 // pred_fallthru
        _
      // Predicated region
      $region33: #{transformer_forward.13} parent=11 // pred_check
        %p221 = pneg %p165
      $region34: #{transformer_forward.13} parent=11 // pred_check_branch
        %223 = sbr.rel (%p221) target = $region36
      $region35: #{transformer_forward.13} parent=11 // pred_region
        _
      $region36: #{transformer_forward.13} parent=11 // pred_fallthru
        _
    $region12: #{transformer_forward.13} parent=5 // pred_fallthru
      _
    %p224 = scmp.lt.s32.totalorder %s13, 2
    // Predicated region
    $region37: #{transformer_forward.13} parent=5 // pred_check
      %p225 = pneg %p224
    $region38: #{transformer_forward.13} parent=5 // pred_check_branch
      %227 = sbr.rel (%p225) target = $region40
    $region39: #{transformer_forward.13} parent=5 // pred_region
      // Predicated region
      $region41: #{transformer_forward.13} parent=39 // pred_check
        %p228 = pneg %p33
      $region42: #{transformer_forward.13} parent=39 // pred_check_branch
        %230 = sbr.rel (%p228) target = $region44
      $region43: #{transformer_forward.13} parent=39 // pred_region
        %p231 = scmp.lt.s32.totalorder %s13, 1
        %s232 = scalar_select %p231, %s13, 1
        %s233 = smul.addr %s232, 8
        %s234 = scalar_lea.vmem %s0, %s233
      $region44: #{transformer_forward.13} parent=39 // pred_fallthru
        _
    $region40: #{transformer_forward.13} parent=5 // pred_fallthru
      _
    %p235 = scmp.le.s32.totalorder 1, %s13
    %p236 = scmp.lt.s32.totalorder %s13, 3
    %p237 = pnand %p235, %p236
    %p238 = pneg %p237
    // Predicated region
    $region45: #{transformer_forward.13} parent=5 // pred_check
      _
    $region46: #{transformer_forward.13} parent=5 // pred_check_branch
      %240 = sbr.rel (%p237) target = $region48
    $region47: #{transformer_forward.13} parent=5 // pred_region
      %s241 = ssub.s32 %s13, 1
      %p242 = scmp.lt.s32.totalorder %s18, 1
      %s243 = scalar_select %p242, %s18, 1
      %s244 = smul.addr %s243, 8
      %s245 = scalar_lea.vmem %s0, %s244
      %p246 = pneg %p39
      %p247 = pneg %p36
      %p248 = pneg %p60
      %p249 = pneg %p57
      %p250 = pneg %p81
      %p251 = pneg %p78
      %p252 = pneg %p102
      %p253 = pneg %p99
      %p254 = pneg %p123
      %p255 = pneg %p120
      %p256 = pneg %p144
      %p257 = pneg %p141
      %p258 = pneg %p165
      %p259 = pneg %p162
      %p260 = pneg %p191
      %p261 = pneg %p188
      %p262 = scmp.lt.s32.totalorder %s18, 1
      %s263 = scalar_select %p262, %s18, 1
      %s264 = smul.addr %s263, 8
      %s265 = scalar_lea.vmem %s7, %s264
      %p266 = scmp.lt.s32.totalorder %s18, 1
      %s267 = scalar_select %p266, %s18, 1
      %s268 = smul.addr %s267, 8
      %s269 = scalar_lea.vmem %s0, %s268
      %p270 = scmp.lt.s32.totalorder %s18, 1
      %s271 = scalar_select %p270, %s18, 1
      %s272 = smul.addr %s271, 8
      %s273 = scalar_lea.vmem %s7, %s272
      %v275 = vld [vmem:[%s269] sm:$0xff]
      %v276 = vld [vmem:[%s1] sm:$0x1]
      %v277 = vld [vmem:[%s2] sm:$0x1]
      %vm278 = vcmask 261120
      %v279 = vsel %vm278, %v275, 0.0
      %280 = vadd.xlane.f32.xlu0 %v279
      %v281 = vpop.xlane.xlu0 %280
      %v282 = vrcp.pop 32.0
      %v283 = vmul.f32 %v281, %v282
      %v284 = vsub.f32 %v275, %v283
      %v285 = vmul.f32 %v284, %v284
      %v286 = vsel %vm278, %v285, 0.0
      %287 = vadd.xlane.f32.xlu0 %v286
      %v288 = vpop.xlane.xlu0 %287
      %v289 = vrcp.pop 31.0
      %v290 = vmul.f32 %v288, %v289
      %v291 = vrsqrt.pop %v290
      %v292 = vmul.f32 %v290, %v291
      %vm293 = vcmp.eq.f32.partialorder %v290, inf
      %v294 = vsel %vm293, %v290, %v292
      %vm295 = vcmp.eq.f32.partialorder %v290, 0.0
      %v296 = vand.u32 %v290, 2147483648
      %v297 = vsel %vm295, %v296, %v294
      %v298 = vadd.f32 %v297, 1e-06
      %v299 = vrcp.pop %v298
      %v301 = vlaneseq
      %v302 = vshrl.u32 %v301, 7
      %v303 = vsub.s32 0, %v302
      %v304 = vrot.slane %v276, %v303
      %v306 = vmul.f32 %v304, %v284
      %v307 = vmul.f32 %v306, %v299
      %v309 = vlaneseq
      %v310 = vshrl.u32 %v309, 7
      %v311 = vsub.s32 0, %v310
      %v312 = vrot.slane %v277, %v311
      %v314 = vadd.f32 %v307, %v312
      %v315 = vpack.c.bf16 %v314, %v314
      %v316 = vld [vmem:[%s3] sm:$0xf]
      %v317 = vld [vmem:[%s3 + $0x4] sm:$0xf]
      %v318 = vld [vmem:[%s3 + $0x8] sm:$0xf]
      %v319 = vld [vmem:[%s3 + $0xc] sm:$0xf]
      %v320 = vld [vmem:[%s4] sm:$0x1]
      %v322 = vlaneseq
      %v323 = vshrl.u32 %v322, 7
      %v324 = vsub.s32 0, %v323
      %v325 = vrot.slane %v320, %v324
      %v331 = vunpack.c.l.b16 %v316
      %v332 = vunpack.c.l.b16 %v317
      %v333 = vunpack.c.l.b16 %v318
      %v334 = vunpack.c.l.b16 %v319
      %v335 = vpack.c.b16 %v332, %v331
      %v336 = vpack.c.b16 %v334, %v333
      %v340 = vsel %vm278, %v315, 0
      %342 = vmatprep.subr.bf16.mxu0 0
      %343 = vmatpush1.bf16.msra.mxu0 %v335
      %344 = vmatprep.subr.bf16.mxu0 0
      %345 = vmatpush1.bf16.msra.mxu0 %v336
      %346 = vmatprep.subr.bf16.mxu0 0
      %347 = vmatpush1.bf16.msra.mxu0 0
      %348 = vmatprep.subr.bf16.mxu0 0
      %349 = vmatpush1.bf16.msra.mxu0 0
      %350 = vmatprep.subr.bf16.mxu0 0
      %351 = vmatpush1.bf16.msra.mxu0 0
      %352 = vmatprep.subr.bf16.mxu0 0
      %353 = vmatpush1.bf16.msra.mxu0 0
      %354 = vmatprep.subr.bf16.mxu0 0
      %355 = vmatpush1.bf16.msra.mxu0 0
      %356 = vmatprep.subr.bf16.mxu0 0
      %357 = vmatpush1.bf16.msra.mxu0 0
      %358 = vmatprep.subr.bf16.mxu0 0
      %359 = vmatpush1.bf16.msra.mxu0 0
      %360 = vmatprep.subr.bf16.mxu0 0
      %361 = vmatpush1.bf16.msra.mxu0 0
      %362 = vmatprep.subr.bf16.mxu0 0
      %363 = vmatpush1.bf16.msra.mxu0 0
      %364 = vmatprep.subr.bf16.mxu0 0
      %365 = vmatpush1.bf16.msra.mxu0 0
      %366 = vmatprep.subr.bf16.mxu0 0
      %367 = vmatpush1.bf16.msra.mxu0 0
      %368 = vmatprep.subr.bf16.mxu0 0
      %369 = vmatpush1.bf16.msra.mxu0 0
      %370 = vmatprep.subr.bf16.mxu0 0
      %371 = vmatpush1.bf16.msra.mxu0 0
      %372 = vmatprep.subr.bf16.mxu0 0
      %373 = vmatpush1.bf16.msra.mxu0 0
      %374 = vmatprep.mubr.bf16.mxu0 0
      %375 = vmatmul.mubr.bf16.gmra.mrb[0].mxu0 %v340
      %v376 = vpop.f32.mrb[0].mxu0
      %v377 = vadd.f32 %v325, %v376
      %v378 = vpop.f32.mrb[0].mxu0
      %v379 = vpop.f32.mrb[0].mxu0
      %v380 = vpop.f32.mrb[0].mxu0
      %381 = vdwg.mxu0
      %v382 = vmax.f32 %v377, 0.0
      %v383 = vpack.c.bf16 %v382, %v382
      %v384 = vld [vmem:[%s5] sm:$0xf]
      %v385 = vld [vmem:[%s5 + $0x4] sm:$0xf]
      %v386 = vld [vmem:[%s5 + $0x8] sm:$0xf]
      %v387 = vld [vmem:[%s5 + $0xc] sm:$0xf]
      %v388 = vld [vmem:[%s5 + $0x10] sm:$0xf]
      %v389 = vld [vmem:[%s5 + $0x14] sm:$0xf]
      %v390 = vld [vmem:[%s5 + $0x18] sm:$0xf]
      %v391 = vld [vmem:[%s5 + $0x1c] sm:$0xf]
      %v392 = vld [vmem:[%s6] sm:$0x1]
      %v394 = vlaneseq
      %v395 = vshrl.u32 %v394, 7
      %v396 = vsub.s32 0, %v395
      %v397 = vrot.slane %v392, %v396
      %v407 = vunpack.c.l.b16 %v384
      %v408 = vunpack.c.l.b16 %v385
      %v409 = vunpack.c.l.b16 %v386
      %v410 = vunpack.c.l.b16 %v387
      %v411 = vunpack.c.l.b16 %v388
      %v412 = vunpack.c.l.b16 %v389
      %v413 = vunpack.c.l.b16 %v390
      %v414 = vunpack.c.l.b16 %v391
      %v415 = vpack.c.b16 %v408, %v407
      %v416 = vpack.c.b16 %v410, %v409
      %v417 = vpack.c.b16 %v412, %v411
      %v418 = vpack.c.b16 %v414, %v413
      %vm423 = vcmask 523264
      %v425 = vsel %vm423, %v383, 0
      %427 = vmatprep.subr.bf16.mxu0 0
      %428 = vmatpush1.bf16.msra.mxu0 %v415
      %429 = vmatprep.subr.bf16.mxu0 0
      %430 = vmatpush1.bf16.msra.mxu0 %v416
      %431 = vmatprep.subr.bf16.mxu0 0
      %432 = vmatpush1.bf16.msra.mxu0 %v417
      %433 = vmatprep.subr.bf16.mxu0 0
      %434 = vmatpush1.bf16.msra.mxu0 %v418
      %435 = vmatprep.subr.bf16.mxu0 0
      %436 = vmatpush1.bf16.msra.mxu0 0
      %437 = vmatprep.subr.bf16.mxu0 0
      %438 = vmatpush1.bf16.msra.mxu0 0
      %439 = vmatprep.subr.bf16.mxu0 0
      %440 = vmatpush1.bf16.msra.mxu0 0
      %441 = vmatprep.subr.bf16.mxu0 0
      %442 = vmatpush1.bf16.msra.mxu0 0
      %443 = vmatprep.subr.bf16.mxu0 0
      %444 = vmatpush1.bf16.msra.mxu0 0
      %445 = vmatprep.subr.bf16.mxu0 0
      %446 = vmatpush1.bf16.msra.mxu0 0
      %447 = vmatprep.subr.bf16.mxu0 0
      %448 = vmatpush1.bf16.msra.mxu0 0
      %449 = vmatprep.subr.bf16.mxu0 0
      %450 = vmatpush1.bf16.msra.mxu0 0
      %451 = vmatprep.subr.bf16.mxu0 0
      %452 = vmatpush1.bf16.msra.mxu0 0
      %453 = vmatprep.subr.bf16.mxu0 0
      %454 = vmatpush1.bf16.msra.mxu0 0
      %455 = vmatprep.subr.bf16.mxu0 0
      %456 = vmatpush1.bf16.msra.mxu0 0
      %457 = vmatprep.subr.bf16.mxu0 0
      %458 = vmatpush1.bf16.msra.mxu0 0
      %459 = vmatprep.mubr.bf16.mxu0 0
      %460 = vmatmul.mubr.bf16.gmra.mrb[0].mxu0 %v425
      %v461 = vpop.f32.mrb[0].mxu0
      %v462 = vadd.f32 %v397, %v461
      %v463 = vpop.f32.mrb[0].mxu0
      %v464 = vpop.f32.mrb[0].mxu0
      %v465 = vpop.f32.mrb[0].mxu0
      %466 = vdwg.mxu0
      %v467 = vadd.f32 %v275, %v462
      %468 = vst.msk [vmem:[%s273] sm:$0xff] %vm278, %v467
      %p469 = scmp.lt.s32.totalorder %s18, 1
      %s470 = scalar_select %p469, %s18, 1
      %s471 = smul.addr %s470, 8
      %s472 = scalar_lea.vmem %s7, %s471
      // Predicated region
      $region49: #{transformer_forward.13} parent=47 // pred_check
        %p473 = pneg %p188
      $region50: #{transformer_forward.13} parent=47 // pred_check_branch
        %475 = sbr.rel (%p473) target = $region52
      $region51: #{transformer_forward.13} parent=47 // pred_region
        _
      $region52: #{transformer_forward.13} parent=47 // pred_fallthru
        _
    $region48: #{transformer_forward.13} parent=5 // pred_fallthru
      _
    %p476 = scmp.le.s32.totalorder 2, %s13
    // Predicated region
    $region53: #{transformer_forward.13} parent=5 // pred_check
      %p477 = pneg %p476
    $region54: #{transformer_forward.13} parent=5 // pred_check_branch
      %479 = sbr.rel (%p477) target = $region56
    $region55: #{transformer_forward.13} parent=5 // pred_region
      %s480 = ssub.s32 %s13, 2
      // Predicated region
      $region57: #{transformer_forward.13} parent=55 // pred_check
        %p481 = pneg %p194
      $region58: #{transformer_forward.13} parent=55 // pred_check_branch
        %483 = sbr.rel (%p481) target = $region60
      $region59: #{transformer_forward.13} parent=55 // pred_region
        %p484 = scmp.lt.s32.totalorder %s19, 1
        %s485 = scalar_select %p484, %s19, 1
        %s486 = smul.addr %s485, 8
        %s487 = scalar_lea.vmem %s7, %s486
      $region60: #{transformer_forward.13} parent=55 // pred_fallthru
        _
    $region56: #{transformer_forward.13} parent=5 // pred_fallthru
      _
  $region6: #{transformer_forward.13} parent=0 // loop_footer
    %s17 = sadd.s32 1, %s13
  $region7: #{transformer_forward.13} parent=0 // loop_footer_branch
    %12 = sbr.rel target = $region3
  $region8: #{transformer_forward.13} parent=0 // loop_exit
    _

// kernel: transformer_forward.12
$region0: #{transformer_forward.12}
  #allocation0 [shape = 'u32[]', space=smem, size = 0x4, offset = 0x4, fixed_abs, tag = 'smem constant byte address 0x4 - core index']
  #allocation1 [shape = 'u32[144,128]{1,0:T(1,128)}', space=vmem, size = 0x12000, scoped, tag = 'internal scratch']
  %s0 = inlined_call_operand.vmem [shape: f32[2,8,32], index: 0, kind: input, shape index: {}]
  %s1 = inlined_call_operand.vmem [shape: f32[2,1,8], index: 1, kind: input, shape index: {}]
  %s2 = inlined_call_operand.vmem [shape: f32[1,32], index: 2, kind: input, shape index: {}]
  %s3 = inlined_call_operand.vmem [shape: f32[1,32], index: 3, kind: input, shape index: {}]
  %s4 = inlined_call_operand.vmem [shape: bf16[32,96], index: 4, kind: input, shape index: {}]
  %s5 = inlined_call_operand.vmem [shape: f32[1,96], index: 5, kind: input, shape index: {}]
  %s6 = inlined_call_operand.vmem [shape: bf16[32,32], index: 6, kind: input, shape index: {}]
  %s7 = inlined_call_operand.vmem [shape: f32[1,32], index: 7, kind: input, shape index: {}]
  %s8 = inlined_call_operand.vmem [shape: f32[2,8,32], index: 8, kind: output, shape index: {}]
  %s9 = sld [smem:[#allocation0]]
  $region65: #{transformer_forward.12} parent=0
    _
  %s11 = ssub.s32 1, %s9
  %s12 = scalar_select 0, %s11, %s9
  loop: start=0, step=1, limit=4
  $region2: #{transformer_forward.12} parent=0 // loop_pre_header
    _
  $region3: #{transformer_forward.12} parent=0 // loop_header
    %s14 = sphi 0, %s18
    %p15 = scmp.ge.s32.totalorder %s14, 4
    %s24 = sphi 0, %s26
    %s27 = sphi 0, %s24
    %s28 = sphi 0, %s27
    %s44 = sphi 0, %s28
    %s50 = sphi 0, %s52
    %s53 = sphi 0, %s50
    %s54 = sphi 0, %s53
    %s70 = sphi 0, %s54
    %s74 = sphi 0, %s74
    %s76 = sphi 0, %s74
    %s77 = sphi 0, %s76
    %s91 = sphi 0, %s77
    %s95 = sphi 0, %s95
    %s97 = sphi 0, %s95
    %s98 = sphi 0, %s97
    %s112 = sphi 0, %s98
    %s116 = sphi 0, %s116
    %s118 = sphi 0, %s116
    %s119 = sphi 0, %s118
    %s133 = sphi 0, %s119
    %s137 = sphi 0, %s137
    %s139 = sphi 0, %s137
    %s140 = sphi 0, %s139
    %s154 = sphi 0, %s140
    %s158 = sphi 0, %s158
    %s160 = sphi 0, %s158
    %s161 = sphi 0, %s160
    %s175 = sphi 0, %s161
    %s179 = sphi 0, %s179
    %s181 = sphi 0, %s179
    %s182 = sphi 0, %s181
    %s196 = sphi 0, %s182
    %s202 = sphi 0, %s204
    %s205 = sphi 0, %s202
    %s206 = sphi 0, %s205
    %s222 = sphi 0, %s206
  $region4: #{transformer_forward.12} parent=0 // loop_header_branch
    %17 = sbr.rel (%p15) target = $region8
  $region5: #{transformer_forward.12} parent=0 // loop_body
    %s19 = ssub.s32 %s14, 1
    %s20 = ssub.s32 %s14, 2
    %s21 = sadd.s32 %s14, 1
    %s22 = ssub.s32 %s14, %s21
    %p23 = scmp.eq.s32.totalorder %s22, 0
    %s25 = sadd.s32 %s24, 1
    %s26 = scalar_select %p23, %s24, %s25
    %p29 = pneg %p23
    %p30 = scmp.eq.s32.totalorder %s14, 1
    %p31 = por %p29, %p30
    %p32 = scmp.ne.s32.totalorder %s24, %s27
    %p33 = scmp.eq.s32.totalorder %s14, 0
    %p34 = por %p32, %p33
    %p35 = scmp.ne.s32.totalorder %s24, %s27
    %p36 = scmp.eq.s32.totalorder %s19, 1
    %p37 = por %p35, %p36
    %p38 = scmp.ne.s32.totalorder %s27, %s28
    %p39 = scmp.eq.s32.totalorder %s19, 0
    %p40 = por %p38, %p39
    %p41 = scmp.ne.s32.totalorder %s27, %s28
    %p42 = scmp.eq.s32.totalorder %s20, 1
    %p43 = por %p41, %p42
    %p45 = scmp.ne.s32.totalorder %s28, %s44
    %p46 = scmp.eq.s32.totalorder %s20, 0
    %p47 = por %p45, %p46
    %s48 = ssub.s32 %s14, %s21
    %p49 = scmp.eq.s32.totalorder %s48, 0
    %s51 = sadd.s32 %s50, 1
    %s52 = scalar_select %p49, %s50, %s51
    %p55 = pneg %p49
    %p56 = scmp.eq.s32.totalorder %s14, 1
    %p57 = por %p55, %p56
    %p58 = scmp.ne.s32.totalorder %s50, %s53
    %p59 = scmp.eq.s32.totalorder %s14, 0
    %p60 = por %p58, %p59
    %p61 = scmp.ne.s32.totalorder %s50, %s53
    %p62 = scmp.eq.s32.totalorder %s19, 1
    %p63 = por %p61, %p62
    %p64 = scmp.ne.s32.totalorder %s53, %s54
    %p65 = scmp.eq.s32.totalorder %s19, 0
    %p66 = por %p64, %p65
    %p67 = scmp.ne.s32.totalorder %s53, %s54
    %p68 = scmp.eq.s32.totalorder %s20, 1
    %p69 = por %p67, %p68
    %p71 = scmp.ne.s32.totalorder %s54, %s70
    %p72 = scmp.eq.s32.totalorder %s20, 0
    %p73 = por %p71, %p72
    %s75 = sadd.s32 %s74, 1
    %p78 = scmp.eq.s32.totalorder %s14, 1
    %p79 = scmp.ne.s32.totalorder %s74, %s76
    %p80 = scmp.eq.s32.totalorder %s14, 0
    %p81 = por %p79, %p80
    %p82 = scmp.ne.s32.totalorder %s74, %s76
    %p83 = scmp.eq.s32.totalorder %s19, 1
    %p84 = por %p82, %p83
    %p85 = scmp.ne.s32.totalorder %s76, %s77
    %p86 = scmp.eq.s32.totalorder %s19, 0
    %p87 = por %p85, %p86
    %p88 = scmp.ne.s32.totalorder %s76, %s77
    %p89 = scmp.eq.s32.totalorder %s20, 1
    %p90 = por %p88, %p89
    %p92 = scmp.ne.s32.totalorder %s77, %s91
    %p93 = scmp.eq.s32.totalorder %s20, 0
    %p94 = por %p92, %p93
    %s96 = sadd.s32 %s95, 1
    %p99 = scmp.eq.s32.totalorder %s14, 1
    %p100 = scmp.ne.s32.totalorder %s95, %s97
    %p101 = scmp.eq.s32.totalorder %s14, 0
    %p102 = por %p100, %p101
    %p103 = scmp.ne.s32.totalorder %s95, %s97
    %p104 = scmp.eq.s32.totalorder %s19, 1
    %p105 = por %p103, %p104
    %p106 = scmp.ne.s32.totalorder %s97, %s98
    %p107 = scmp.eq.s32.totalorder %s19, 0
    %p108 = por %p106, %p107
    %p109 = scmp.ne.s32.totalorder %s97, %s98
    %p110 = scmp.eq.s32.totalorder %s20, 1
    %p111 = por %p109, %p110
    %p113 = scmp.ne.s32.totalorder %s98, %s112
    %p114 = scmp.eq.s32.totalorder %s20, 0
    %p115 = por %p113, %p114
    %s117 = sadd.s32 %s116, 1
    %p120 = scmp.eq.s32.totalorder %s14, 1
    %p121 = scmp.ne.s32.totalorder %s116, %s118
    %p122 = scmp.eq.s32.totalorder %s14, 0
    %p123 = por %p121, %p122
    %p124 = scmp.ne.s32.totalorder %s116, %s118
    %p125 = scmp.eq.s32.totalorder %s19, 1
    %p126 = por %p124, %p125
    %p127 = scmp.ne.s32.totalorder %s118, %s119
    %p128 = scmp.eq.s32.totalorder %s19, 0
    %p129 = por %p127, %p128
    %p130 = scmp.ne.s32.totalorder %s118, %s119
    %p131 = scmp.eq.s32.totalorder %s20, 1
    %p132 = por %p130, %p131
    %p134 = scmp.ne.s32.totalorder %s119, %s133
    %p135 = scmp.eq.s32.totalorder %s20, 0
    %p136 = por %p134, %p135
    %s138 = sadd.s32 %s137, 1
    %p141 = scmp.eq.s32.totalorder %s14, 1
    %p142 = scmp.ne.s32.totalorder %s137, %s139
    %p143 = scmp.eq.s32.totalorder %s14, 0
    %p144 = por %p142, %p143
    %p145 = scmp.ne.s32.totalorder %s137, %s139
    %p146 = scmp.eq.s32.totalorder %s19, 1
    %p147 = por %p145, %p146
    %p148 = scmp.ne.s32.totalorder %s139, %s140
    %p149 = scmp.eq.s32.totalorder %s19, 0
    %p150 = por %p148, %p149
    %p151 = scmp.ne.s32.totalorder %s139, %s140
    %p152 = scmp.eq.s32.totalorder %s20, 1
    %p153 = por %p151, %p152
    %p155 = scmp.ne.s32.totalorder %s140, %s154
    %p156 = scmp.eq.s32.totalorder %s20, 0
    %p157 = por %p155, %p156
    %s159 = sadd.s32 %s158, 1
    %p162 = scmp.eq.s32.totalorder %s14, 1
    %p163 = scmp.ne.s32.totalorder %s158, %s160
    %p164 = scmp.eq.s32.totalorder %s14, 0
    %p165 = por %p163, %p164
    %p166 = scmp.ne.s32.totalorder %s158, %s160
    %p167 = scmp.eq.s32.totalorder %s19, 1
    %p168 = por %p166, %p167
    %p169 = scmp.ne.s32.totalorder %s160, %s161
    %p170 = scmp.eq.s32.totalorder %s19, 0
    %p171 = por %p169, %p170
    %p172 = scmp.ne.s32.totalorder %s160, %s161
    %p173 = scmp.eq.s32.totalorder %s20, 1
    %p174 = por %p172, %p173
    %p176 = scmp.ne.s32.totalorder %s161, %s175
    %p177 = scmp.eq.s32.totalorder %s20, 0
    %p178 = por %p176, %p177
    %s180 = sadd.s32 %s179, 1
    %p183 = scmp.eq.s32.totalorder %s14, 1
    %p184 = scmp.ne.s32.totalorder %s179, %s181
    %p185 = scmp.eq.s32.totalorder %s14, 0
    %p186 = por %p184, %p185
    %p187 = scmp.ne.s32.totalorder %s179, %s181
    %p188 = scmp.eq.s32.totalorder %s19, 1
    %p189 = por %p187, %p188
    %p190 = scmp.ne.s32.totalorder %s181, %s182
    %p191 = scmp.eq.s32.totalorder %s19, 0
    %p192 = por %p190, %p191
    %p193 = scmp.ne.s32.totalorder %s181, %s182
    %p194 = scmp.eq.s32.totalorder %s20, 1
    %p195 = por %p193, %p194
    %p197 = scmp.ne.s32.totalorder %s182, %s196
    %p198 = scmp.eq.s32.totalorder %s20, 0
    %p199 = por %p197, %p198
    %s200 = ssub.s32 %s14, %s21
    %p201 = scmp.eq.s32.totalorder %s200, 0
    %s203 = sadd.s32 %s202, 1
    %s204 = scalar_select %p201, %s202, %s203
    %p207 = pneg %p201
    %p208 = scmp.eq.s32.totalorder %s14, 1
    %p209 = por %p207, %p208
    %p210 = scmp.ne.s32.totalorder %s202, %s205
    %p211 = scmp.eq.s32.totalorder %s14, 0
    %p212 = por %p210, %p211
    %p213 = scmp.ne.s32.totalorder %s202, %s205
    %p214 = scmp.eq.s32.totalorder %s19, 1
    %p215 = por %p213, %p214
    %p216 = scmp.ne.s32.totalorder %s205, %s206
    %p217 = scmp.eq.s32.totalorder %s19, 0
    %p218 = por %p216, %p217
    %p219 = scmp.ne.s32.totalorder %s205, %s206
    %p220 = scmp.eq.s32.totalorder %s20, 1
    %p221 = por %p219, %p220
    %p223 = scmp.ne.s32.totalorder %s206, %s222
    %p224 = scmp.eq.s32.totalorder %s20, 0
    %p225 = por %p223, %p224
    %p226 = scmp.le.s32.totalorder 1, %s14
    %p227 = scmp.lt.s32.totalorder %s14, 3
    %p228 = pnand %p226, %p227
    %p229 = pneg %p228
    // Predicated region
    $region9: #{transformer_forward.12} parent=5 // pred_check
      _
    $region10: #{transformer_forward.12} parent=5 // pred_check_branch
      %231 = sbr.rel (%p228) target = $region12
    $region11: #{transformer_forward.12} parent=5 // pred_region
      %s232 = ssub.s32 %s14, 1
      // Predicated region
      $region13: #{transformer_forward.12} parent=11 // pred_check
        %p233 = pneg %p87
      $region14: #{transformer_forward.12} parent=11 // pred_check_branch
        %235 = sbr.rel (%p233) target = $region16
      $region15: #{transformer_forward.12} parent=11 // pred_region
        _
      $region16: #{transformer_forward.12} parent=11 // pred_fallthru
        _
      // Predicated region
      $region17: #{transformer_forward.12} parent=11 // pred_check
        %p236 = pneg %p108
      $region18: #{transformer_forward.12} parent=11 // pred_check_branch
        %238 = sbr.rel (%p236) target = $region20
      $region19: #{transformer_forward.12} parent=11 // pred_region
        _
      $region20: #{transformer_forward.12} parent=11 // pred_fallthru
        _
      // Predicated region
      $region21: #{transformer_forward.12} parent=11 // pred_check
        %p239 = pneg %p129
      $region22: #{transformer_forward.12} parent=11 // pred_check_branch
        %241 = sbr.rel (%p239) target = $region24
      $region23: #{transformer_forward.12} parent=11 // pred_region
        _
      $region24: #{transformer_forward.12} parent=11 // pred_fallthru
        _
      // Predicated region
      $region25: #{transformer_forward.12} parent=11 // pred_check
        %p242 = pneg %p150
      $region26: #{transformer_forward.12} parent=11 // pred_check_branch
        %244 = sbr.rel (%p242) target = $region28
      $region27: #{transformer_forward.12} parent=11 // pred_region
        _
      $region28: #{transformer_forward.12} parent=11 // pred_fallthru
        _
      // Predicated region
      $region29: #{transformer_forward.12} parent=11 // pred_check
        %p245 = pneg %p171
      $region30: #{transformer_forward.12} parent=11 // pred_check_branch
        %247 = sbr.rel (%p245) target = $region32
      $region31: #{transformer_forward.12} parent=11 // pred_region
        _
      $region32: #{transformer_forward.12} parent=11 // pred_fallthru
        _
      // Predicated region
      $region33: #{transformer_forward.12} parent=11 // pred_check
        %p248 = pneg %p192
      $region34: #{transformer_forward.12} parent=11 // pred_check_branch
        %250 = sbr.rel (%p248) target = $region36
      $region35: #{transformer_forward.12} parent=11 // pred_region
        _
      $region36: #{transformer_forward.12} parent=11 // pred_fallthru
        _
    $region12: #{transformer_forward.12} parent=5 // pred_fallthru
      _
    %p251 = scmp.lt.s32.totalorder %s14, 2
    // Predicated region
    $region37: #{transformer_forward.12} parent=5 // pred_check
      %p252 = pneg %p251
    $region38: #{transformer_forward.12} parent=5 // pred_check_branch
      %254 = sbr.rel (%p252) target = $region40
    $region39: #{transformer_forward.12} parent=5 // pred_region
      // Predicated region
      $region41: #{transformer_forward.12} parent=39 // pred_check
        %p255 = pneg %p34
      $region42: #{transformer_forward.12} parent=39 // pred_check_branch
        %257 = sbr.rel (%p255) target = $region44
      $region43: #{transformer_forward.12} parent=39 // pred_region
        %p258 = scmp.lt.s32.totalorder %s14, 1
        %s259 = scalar_select %p258, %s14, 1
        %s260 = smul.addr %s259, 8
        %s261 = scalar_lea.vmem %s0, %s260
      $region44: #{transformer_forward.12} parent=39 // pred_fallthru
        _
      // Predicated region
      $region45: #{transformer_forward.12} parent=39 // pred_check
        %p262 = pneg %p60
      $region46: #{transformer_forward.12} parent=39 // pred_check_branch
        %264 = sbr.rel (%p262) target = $region48
      $region47: #{transformer_forward.12} parent=39 // pred_region
        %p265 = scmp.lt.s32.totalorder %s14, 1
        %s266 = scalar_select %p265, %s14, 1
        %s267 = scalar_lea.vmem %s1, %s266
      $region48: #{transformer_forward.12} parent=39 // pred_fallthru
        _
    $region40: #{transformer_forward.12} parent=5 // pred_fallthru
      _
    %p268 = scmp.le.s32.totalorder 1, %s14
    %p269 = scmp.lt.s32.totalorder %s14, 3
    %p270 = pnand %p268, %p269
    %p271 = pneg %p270
    // Predicated region
    $region49: #{transformer_forward.12} parent=5 // pred_check
      _
    $region50: #{transformer_forward.12} parent=5 // pred_check_branch
      %273 = sbr.rel (%p270) target = $region52
    $region51: #{transformer_forward.12} parent=5 // pred_region
      %s274 = ssub.s32 %s14, 1
      %p275 = scmp.lt.s32.totalorder %s19, 1
      %s276 = scalar_select %p275, %s19, 1
      %s277 = smul.addr %s276, 8
      %s278 = scalar_lea.vmem %s0, %s277
      %p279 = pneg %p40
      %p280 = pneg %p37
      %p281 = scmp.lt.s32.totalorder %s19, 1
      %s282 = scalar_select %p281, %s19, 1
      %s283 = scalar_lea.vmem %s1, %s282
      %p284 = pneg %p66
      %p285 = pneg %p63
      %p286 = pneg %p87
      %p287 = pneg %p84
      %p288 = pneg %p108
      %p289 = pneg %p105
      %p290 = pneg %p129
      %p291 = pneg %p126
      %p292 = pneg %p150
      %p293 = pneg %p147
      %p294 = pneg %p171
      %p295 = pneg %p168
      %p296 = pneg %p192
      %p297 = pneg %p189
      %p298 = pneg %p218
      %p299 = pneg %p215
      %p300 = scmp.lt.s32.totalorder %s19, 1
      %s301 = scalar_select %p300, %s19, 1
      %s302 = smul.addr %s301, 8
      %s303 = scalar_lea.vmem %s8, %s302
      %p304 = scmp.lt.s32.totalorder %s19, 1
      %s305 = scalar_select %p304, %s19, 1
      %s306 = smul.addr %s305, 8
      %s307 = scalar_lea.vmem %s0, %s306
      %p308 = scmp.lt.s32.totalorder %s19, 1
      %s309 = scalar_select %p308, %s19, 1
      %s310 = scalar_lea.vmem %s1, %s309
      %p311 = scmp.lt.s32.totalorder %s19, 1
      %s312 = scalar_select %p311, %s19, 1
      %s313 = smul.addr %s312, 8
      %s314 = scalar_lea.vmem %s8, %s313
      %v316 = vld [vmem:[%s307] sm:$0xff]
      %v317 = vld [vmem:[%s2] sm:$0x1]
      %v318 = vld [vmem:[%s3] sm:$0x1]
      %vm319 = vcmask 261120
      %v320 = vsel %vm319, %v316, 0.0
      %321 = vadd.xlane.f32.xlu0 %v320
      %v322 = vpop.xlane.xlu0 %321
      %v323 = vrcp.pop 32.0
      %v324 = vmul.f32 %v322, %v323
      %v325 = vsub.f32 %v316, %v324
      %v326 = vmul.f32 %v325, %v325
      %v327 = vsel %vm319, %v326, 0.0
      %328 = vadd.xlane.f32.xlu0 %v327
      %v329 = vpop.xlane.xlu0 %328
      %v330 = vrcp.pop 31.0
      %v331 = vmul.f32 %v329, %v330
      %v332 = vrsqrt.pop %v331
      %v333 = vmul.f32 %v331, %v332
      %vm334 = vcmp.eq.f32.partialorder %v331, inf
      %v335 = vsel %vm334, %v331, %v333
      %vm336 = vcmp.eq.f32.partialorder %v331, 0.0
      %v337 = vand.u32 %v331, 2147483648
      %v338 = vsel %vm336, %v337, %v335
      %v339 = vadd.f32 %v338, 1e-06
      %v340 = vrcp.pop %v339
      %v342 = vlaneseq
      %v343 = vshrl.u32 %v342, 7
      %v344 = vsub.s32 0, %v343
      %v345 = vrot.slane %v317, %v344
      %v347 = vmul.f32 %v345, %v325
      %v348 = vmul.f32 %v347, %v340
      %v350 = vlaneseq
      %v351 = vshrl.u32 %v350, 7
      %v352 = vsub.s32 0, %v351
      %v353 = vrot.slane %v318, %v352
      %v355 = vadd.f32 %v348, %v353
      %v356 = vld [vmem:[%s310] sm:$0x1]
      %vm357 = vcmp.gt.f32.partialorder %v356, 0.5
      %v358 = vld [vmem:[%s4] sm:$0xf]
      %v359 = vld [vmem:[%s4 + $0x4] sm:$0xf]
      %v360 = vld [vmem:[%s4 + $0x8] sm:$0xf]
      %v361 = vld [vmem:[%s4 + $0xc] sm:$0xf]
      %v362 = vld [vmem:[%s5] sm:$0x1]
      %v363 = vld [vmem:[%s6] sm:$0xf]
      %v364 = vld [vmem:[%s6 + $0x4] sm:$0xf]
      %v365 = vld [vmem:[%s6 + $0x8] sm:$0xf]
      %v366 = vld [vmem:[%s6 + $0xc] sm:$0xf]
      %v367 = vld [vmem:[%s7] sm:$0x1]
      %v368 = vpack.c.bf16 %v355, %v355
      %v370 = vlaneseq
      %v371 = vshrl.u32 %v370, 7
      %v372 = vsub.s32 0, %v371
      %v373 = vrot.slane %v362, %v372
      %v379 = vunpack.c.l.b16 %v358
      %v380 = vunpack.c.l.b16 %v359
      %v381 = vunpack.c.l.b16 %v360
      %v382 = vunpack.c.l.b16 %v361
      %v383 = vpack.c.b16 %v380, %v379
      %v384 = vpack.c.b16 %v382, %v381
      %v388 = vsel %vm319, %v368, 0
      %390 = vmatprep.subr.bf16.mxu0 0
      %391 = vmatpush1.bf16.msra.mxu0 %v383
      %392 = vmatprep.subr.bf16.mxu0 0
      %393 = vmatpush1.bf16.msra.mxu0 %v384
      %394 = vmatprep.subr.bf16.mxu0 0
      %395 = vmatpush1.bf16.msra.mxu0 0
      %396 = vmatprep.subr.bf16.mxu0 0
      %397 = vmatpush1.bf16.msra.mxu0 0
      %398 = vmatprep.subr.bf16.mxu0 0
      %399 = vmatpush1.bf16.msra.mxu0 0
      %400 = vmatprep.subr.bf16.mxu0 0
      %401 = vmatpush1.bf16.msra.mxu0 0
      %402 = vmatprep.subr.bf16.mxu0 0
      %403 = vmatpush1.bf16.msra.mxu0 0
      %404 = vmatprep.subr.bf16.mxu0 0
      %405 = vmatpush1.bf16.msra.mxu0 0
      %406 = vmatprep.subr.bf16.mxu0 0
      %407 = vmatpush1.bf16.msra.mxu0 0
      %408 = vmatprep.subr.bf16.mxu0 0
      %409 = vmatpush1.bf16.msra.mxu0 0
      %410 = vmatprep.subr.bf16.mxu0 0
      %411 = vmatpush1.bf16.msra.mxu0 0
      %412 = vmatprep.subr.bf16.mxu0 0
      %413 = vmatpush1.bf16.msra.mxu0 0
      %414 = vmatprep.subr.bf16.mxu0 0
      %415 = vmatpush1.bf16.msra.mxu0 0
      %416 = vmatprep.subr.bf16.mxu0 0
      %417 = vmatpush1.bf16.msra.mxu0 0
      %418 = vmatprep.subr.bf16.mxu0 0
      %419 = vmatpush1.bf16.msra.mxu0 0
      %420 = vmatprep.subr.bf16.mxu0 0
      %421 = vmatpush1.bf16.msra.mxu0 0
      %422 = vmatprep.mubr.bf16.mxu0 0
      %423 = vmatmul.mubr.bf16.gmra.mrb[0].mxu0 %v388
      %v424 = vpop.f32.mrb[0].mxu0
      %v425 = vadd.f32 %v373, %v424
      %v426 = vpop.f32.mrb[0].mxu0
      %v427 = vpop.f32.mrb[0].mxu0
      %v428 = vpop.f32.mrb[0].mxu0
      %429 = vdwg.mxu0
      %v430 = vpack.c.bf16 %v425, %v425
      %432 = vrot.lane.b32.xlu0 %v430, 96
      %v433 = vpop.permute.xlu0 %432
      %vm434 = vcmask 64512
      %v436 = vsel %vm434, %v430, 0
      %v439 = vsel %vm434, %v433, 0
      %441 = vmatprep.subr.bf16.mxu0 0
      %442 = vmatpush1.bf16.xpose.msra.mxu0 %v439
      %443 = vmatprep.subr.bf16.mxu0 0
      %444 = vmatpush1.bf16.xpose.msra.mxu0 0
      %445 = vmatprep.subr.bf16.mxu0 0
      %446 = vmatpush1.bf16.xpose.msra.mxu0 0
      %447 = vmatprep.subr.bf16.mxu0 0
      %448 = vmatpush1.bf16.xpose.msra.mxu0 0
      %449 = vmatprep.subr.bf16.mxu0 0
      %450 = vmatpush1.bf16.xpose.msra.mxu0 0
      %451 = vmatprep.subr.bf16.mxu0 0
      %452 = vmatpush1.bf16.xpose.msra.mxu0 0
      %453 = vmatprep.subr.bf16.mxu0 0
      %454 = vmatpush1.bf16.xpose.msra.mxu0 0
      %455 = vmatprep.subr.bf16.mxu0 0
      %456 = vmatpush1.bf16.xpose.msra.mxu0 0
      %457 = vmatprep.subr.bf16.mxu0 0
      %458 = vmatpush1.bf16.xpose.msra.mxu0 0
      %459 = vmatprep.subr.bf16.mxu0 0
      %460 = vmatpush1.bf16.xpose.msra.mxu0 0
      %461 = vmatprep.subr.bf16.mxu0 0
      %462 = vmatpush1.bf16.xpose.msra.mxu0 0
      %463 = vmatprep.subr.bf16.mxu0 0
      %464 = vmatpush1.bf16.xpose.msra.mxu0 0
      %465 = vmatprep.subr.bf16.mxu0 0
      %466 = vmatpush1.bf16.xpose.msra.mxu0 0
      %467 = vmatprep.subr.bf16.mxu0 0
      %468 = vmatpush1.bf16.xpose.msra.mxu0 0
      %469 = vmatprep.subr.bf16.mxu0 0
      %470 = vmatpush1.bf16.xpose.msra.mxu0 0
      %471 = vmatprep.subr.bf16.mxu0 0
      %472 = vmatpush1.bf16.xpose.msra.mxu0 0
      %473 = vmatprep.mubr.bf16.mxu0 0
      %474 = vmatmul.mubr.bf16.gmra.mrb[0].mxu0 %v436
      %v475 = vpop.f32.mrb[0].mxu0
      %v476 = vadd.f32 0.0, %v475
      %v477 = vpop.f32.mrb[0].mxu0
      %v478 = vpop.f32.mrb[0].mxu0
      %v479 = vpop.f32.mrb[0].mxu0
      %480 = vdwg.mxu0
      %v481 = vmul.f32 %v476, 0.35355338
      %v482 = vsel %vm357, 1, 0
      %v483 = vlaneseq
      %v484 = vshrl.u32 %v483, 7
      %v485 = vsub.s32 0, %v484
      %v486 = vrot.slane %v482, %v485
      %vm487 = vcmp.eq.s32.totalorder %v486, 1
      %v488 = vsel %vm487, %v481, -1e+09
      %v489 = vsel %vm434, %v488, -inf
      %490 = vmax.xlane.f32.xlu0 %v489
      %v491 = vpop.xlane.xlu0 %490
      %v492 = vsub.f32 %v488, %v491
      %v493 = vmul.f32 %v492, 1.442695
      %v494 = vpow.pop %v493
      %v495 = vsel %vm434, %v494, 0.0
      %496 = vadd.xlane.f32.xlu0 %v495
      %v497 = vpop.xlane.xlu0 %496
      %v498 = vrcp.pop %v497
      %v499 = vmul.f32 %v494, %v498
      %v500 = vpack.c.bf16 %v499, %v499
      %501 = vrot.lane.b32.xlu0 %v430, 64
      %v502 = vpop.permute.xlu0 %501
      %v504 = vsel %vm434, %v500, 0
      %vm506 = vcmask 1043456
      %v508 = vsel %vm506, %v502, 0
      %510 = vmatprep.subr.bf16.mxu0 0
      %511 = vmatpush1.bf16.msra.mxu0 %v508
      %512 = vmatprep.subr.bf16.mxu0 0
      %513 = vmatpush1.bf16.msra.mxu0 0
      %514 = vmatprep.subr.bf16.mxu0 0
      %515 = vmatpush1.bf16.msra.mxu0 0
      %516 = vmatprep.subr.bf16.mxu0 0
      %517 = vmatpush1.bf16.msra.mxu0 0
      %518 = vmatprep.subr.bf16.mxu0 0
      %519 = vmatpush1.bf16.msra.mxu0 0
      %520 = vmatprep.subr.bf16.mxu0 0
      %521 = vmatpush1.bf16.msra.mxu0 0
      %522 = vmatprep.subr.bf16.mxu0 0
      %523 = vmatpush1.bf16.msra.mxu0 0
      %524 = vmatprep.subr.bf16.mxu0 0
      %525 = vmatpush1.bf16.msra.mxu0 0
      %526 = vmatprep.subr.bf16.mxu0 0
      %527 = vmatpush1.bf16.msra.mxu0 0
      %528 = vmatprep.subr.bf16.mxu0 0
      %529 = vmatpush1.bf16.msra.mxu0 0
      %530 = vmatprep.subr.bf16.mxu0 0
      %531 = vmatpush1.bf16.msra.mxu0 0
      %532 = vmatprep.subr.bf16.mxu0 0
      %533 = vmatpush1.bf16.msra.mxu0 0
      %534 = vmatprep.subr.bf16.mxu0 0
      %535 = vmatpush1.bf16.msra.mxu0 0
      %536 = vmatprep.subr.bf16.mxu0 0
      %537 = vmatpush1.bf16.msra.mxu0 0
      %538 = vmatprep.subr.bf16.mxu0 0
      %539 = vmatpush1.bf16.msra.mxu0 0
      %540 = vmatprep.subr.bf16.mxu0 0
      %541 = vmatpush1.bf16.msra.mxu0 0
      %542 = vmatprep.mubr.bf16.mxu0 0
      %543 = vmatmul.mubr.bf16.gmra.mrb[0].mxu0 %v504
      %v544 = vpop.f32.mrb[0].mxu0
      %v545 = vadd.f32 0.0, %v544
      %v546 = vpop.f32.mrb[0].mxu0
      %v547 = vpop.f32.mrb[0].mxu0
      %v548 = vpop.f32.mrb[0].mxu0
      %549 = vdwg.mxu0
      %v550 = vpack.c.bf16 %v545, %v545
      %551 = vrot.lane.b32.xlu0 %v430, 120
      %v552 = vpop.permute.xlu0 %551
      %553 = vrot.lane.b32.xlu0 %v430, 88
      %v554 = vpop.permute.xlu0 %553
      %v556 = vsel %vm434, %v552, 0
      %v559 = vsel %vm434, %v554, 0
      %561 = vmatprep.subr.bf16.mxu0 0
      %562 = vmatpush1.bf16.xpose.msra.mxu0 %v559
      %563 = vmatprep.subr.bf16.mxu0 0
      %564 = vmatpush1.bf16.xpose.msra.mxu0 0
      %565 = vmatprep.subr.bf16.mxu0 0
      %566 = vmatpush1.bf16.xpose.msra.mxu0 0
      %567 = vmatprep.subr.bf16.mxu0 0
      %568 = vmatpush1.bf16.xpose.msra.mxu0 0
      %569 = vmatprep.subr.bf16.mxu0 0
      %570 = vmatpush1.bf16.xpose.msra.mxu0 0
      %571 = vmatprep.subr.bf16.mxu0 0
      %572 = vmatpush1.bf16.xpose.msra.mxu0 0
      %573 = vmatprep.subr.bf16.mxu0 0
      %574 = vmatpush1.bf16.xpose.msra.mxu0 0
      %575 = vmatprep.subr.bf16.mxu0 0
      %576 = vmatpush1.bf16.xpose.msra.mxu0 0
      %577 = vmatprep.subr.bf16.mxu0 0
      %578 = vmatpush1.bf16.xpose.msra.mxu0 0
      %579 = vmatprep.subr.bf16.mxu0 0
      %580 = vmatpush1.bf16.xpose.msra.mxu0 0
      %581 = vmatprep.subr.bf16.mxu0 0
      %582 = vmatpush1.bf16.xpose.msra.mxu0 0
      %583 = vmatprep.subr.bf16.mxu0 0
      %584 = vmatpush1.bf16.xpose.msra.mxu0 0
      %585 = vmatprep.subr.bf16.mxu0 0
      %586 = vmatpush1.bf16.xpose.msra.mxu0 0
      %587 = vmatprep.subr.bf16.mxu0 0
      %588 = vmatpush1.bf16.xpose.msra.mxu0 0
      %589 = vmatprep.subr.bf16.mxu0 0
      %590 = vmatpush1.bf16.xpose.msra.mxu0 0
      %591 = vmatprep.subr.bf16.mxu0 0
      %592 = vmatpush1.bf16.xpose.msra.mxu0 0
      %593 = vmatprep.mubr.bf16.mxu0 0
      %594 = vmatmul.mubr.bf16.gmra.mrb[0].mxu0 %v556
      %v595 = vpop.f32.mrb[0].mxu0
      %v596 = vadd.f32 0.0, %v595
      %v597 = vpop.f32.mrb[0].mxu0
      %v598 = vpop.f32.mrb[0].mxu0
      %v599 = vpop.f32.mrb[0].mxu0
      %600 = vdwg.mxu0
      %v601 = vmul.f32 %v596, 0.35355338
      %v602 = vsel %vm487, %v601, -1e+09
      %v603 = vsel %vm434, %v602, -inf
      %604 = vmax.xlane.f32.xlu0 %v603
      %v605 = vpop.xlane.xlu0 %604
      %v606 = vsub.f32 %v602, %v605
      %v607 = vmul.f32 %v606, 1.442695
      %v608 = vpow.pop %v607
      %v609 = vsel %vm434, %v608, 0.0
      %610 = vadd.xlane.f32.xlu0 %v609
      %v611 = vpop.xlane.xlu0 %610
      %v612 = vrcp.pop %v611
      %v613 = vmul.f32 %v608, %v612
      %v614 = vpack.c.bf16 %v613, %v613
      %615 = vrot.lane.b32.xlu0 %v430, 56
      %v616 = vpop.permute.xlu0 %615
      %v618 = vsel %vm434, %v614, 0
      %v621 = vsel %vm506, %v616, 0
      %623 = vmatprep.subr.bf16.mxu0 0
      %624 = vmatpush1.bf16.msra.mxu0 %v621
      %625 = vmatprep.subr.bf16.mxu0 0
      %626 = vmatpush1.bf16.msra.mxu0 0
      %627 = vmatprep.subr.bf16.mxu0 0
      %628 = vmatpush1.bf16.msra.mxu0 0
      %629 = vmatprep.subr.bf16.mxu0 0
      %630 = vmatpush1.bf16.msra.mxu0 0
      %631 = vmatprep.subr.bf16.mxu0 0
      %632 = vmatpush1.bf16.msra.mxu0 0
      %633 = vmatprep.subr.bf16.mxu0 0
      %634 = vmatpush1.bf16.msra.mxu0 0
      %635 = vmatprep.subr.bf16.mxu0 0
      %636 = vmatpush1.bf16.msra.mxu0 0
      %637 = vmatprep.subr.bf16.mxu0 0
      %638 = vmatpush1.bf16.msra.mxu0 0
      %639 = vmatprep.subr.bf16.mxu0 0
      %640 = vmatpush1.bf16.msra.mxu0 0
      %641 = vmatprep.subr.bf16.mxu0 0
      %642 = vmatpush1.bf16.msra.mxu0 0
      %643 = vmatprep.subr.bf16.mxu0 0
      %644 = vmatpush1.bf16.msra.mxu0 0
      %645 = vmatprep.subr.bf16.mxu0 0
      %646 = vmatpush1.bf16.msra.mxu0 0
      %647 = vmatprep.subr.bf16.mxu0 0
      %648 = vmatpush1.bf16.msra.mxu0 0
      %649 = vmatprep.subr.bf16.mxu0 0
      %650 = vmatpush1.bf16.msra.mxu0 0
      %651 = vmatprep.subr.bf16.mxu0 0
      %652 = vmatpush1.bf16.msra.mxu0 0
      %653 = vmatprep.subr.bf16.mxu0 0
      %654 = vmatpush1.bf16.msra.mxu0 0
      %655 = vmatprep.mubr.bf16.mxu0 0
      %656 = vmatmul.mubr.bf16.gmra.mrb[0].mxu0 %v618
      %v657 = vpop.f32.mrb[0].mxu0
      %v658 = vadd.f32 0.0, %v657
      %v659 = vpop.f32.mrb[0].mxu0
      %v660 = vpop.f32.mrb[0].mxu0
      %v661 = vpop.f32.mrb[0].mxu0
      %662 = vdwg.mxu0
      %v663 = vpack.c.bf16 %v658, %v658
      %v665 = vsel %vm434, %v663, 0
      %v668 = vsel %vm506, %v364, 0
      %670 = vmatprep.subr.bf16.mxu0 0
      %671 = vmatpush1.bf16.msra.mxu0 %v668
      %672 = vmatprep.subr.bf16.mxu0 0
      %673 = vmatpush1.bf16.msra.mxu0 0
      %674 = vmatprep.subr.bf16.mxu0 0
      %675 = vmatpush1.bf16.msra.mxu0 0
      %676 = vmatprep.subr.bf16.mxu0 0
      %677 = vmatpush1.bf16.msra.mxu0 0
      %678 = vmatprep.subr.bf16.mxu0 0
      %679 = vmatpush1.bf16.msra.mxu0 0
      %680 = vmatprep.subr.bf16.mxu0 0
      %681 = vmatpush1.bf16.msra.mxu0 0
      %682 = vmatprep.subr.bf16.mxu0 0
      %683 = vmatpush1.bf16.msra.mxu0 0
      %684 = vmatprep.subr.bf16.mxu0 0
      %685 = vmatpush1.bf16.msra.mxu0 0
      %686 = vmatprep.subr.bf16.mxu0 0
      %687 = vmatpush1.bf16.msra.mxu0 0
      %688 = vmatprep.subr.bf16.mxu0 0
      %689 = vmatpush1.bf16.msra.mxu0 0
      %690 = vmatprep.subr.bf16.mxu0 0
      %691 = vmatpush1.bf16.msra.mxu0 0
      %692 = vmatprep.subr.bf16.mxu0 0
      %693 = vmatpush1.bf16.msra.mxu0 0
      %694 = vmatprep.subr.bf16.mxu0 0
      %695 = vmatpush1.bf16.msra.mxu0 0
      %696 = vmatprep.subr.bf16.mxu0 0
      %697 = vmatpush1.bf16.msra.mxu0 0
      %698 = vmatprep.subr.bf16.mxu0 0
      %699 = vmatpush1.bf16.msra.mxu0 0
      %700 = vmatprep.subr.bf16.mxu0 0
      %701 = vmatpush1.bf16.msra.mxu0 0
      %702 = vmatprep.mubr.bf16.mxu0 0
      %703 = vmatmul.mubr.bf16.gmra.mrb[0].mxu0 %v665
      %v704 = vpop.f32.mrb[0].mxu0
      %v705 = vadd.f32 0.0, %v704
      %v706 = vpop.f32.mrb[0].mxu0
      %v707 = vpop.f32.mrb[0].mxu0
      %v708 = vpop.f32.mrb[0].mxu0
      %709 = vdwg.mxu0
      %v711 = vsel %vm434, %v550, 0
      %v714 = vsel %vm506, %v363, 0
      %716 = vmatprep.subr.bf16.mxu0 0
      %717 = vmatpush1.bf16.msra.mxu0 %v714
      %718 = vmatprep.subr.bf16.mxu0 0
      %719 = vmatpush1.bf16.msra.mxu0 0
      %720 = vmatprep.subr.bf16.mxu0 0
      %721 = vmatpush1.bf16.msra.mxu0 0
      %722 = vmatprep.subr.bf16.mxu0 0
      %723 = vmatpush1.bf16.msra.mxu0 0
      %724 = vmatprep.subr.bf16.mxu0 0
      %725 = vmatpush1.bf16.msra.mxu0 0
      %726 = vmatprep.subr.bf16.mxu0 0
      %727 = vmatpush1.bf16.msra.mxu0 0
      %728 = vmatprep.subr.bf16.mxu0 0
      %729 = vmatpush1.bf16.msra.mxu0 0
      %730 = vmatprep.subr.bf16.mxu0 0
      %731 = vmatpush1.bf16.msra.mxu0 0
      %732 = vmatprep.subr.bf16.mxu0 0
      %733 = vmatpush1.bf16.msra.mxu0 0
      %734 = vmatprep.subr.bf16.mxu0 0
      %735 = vmatpush1.bf16.msra.mxu0 0
      %736 = vmatprep.subr.bf16.mxu0 0
      %737 = vmatpush1.bf16.msra.mxu0 0
      %738 = vmatprep.subr.bf16.mxu0 0
      %739 = vmatpush1.bf16.msra.mxu0 0
      %740 = vmatprep.subr.bf16.mxu0 0
      %741 = vmatpush1.bf16.msra.mxu0 0
      %742 = vmatprep.subr.bf16.mxu0 0
      %743 = vmatpush1.bf16.msra.mxu0 0
      %744 = vmatprep.subr.bf16.mxu0 0
      %745 = vmatpush1.bf16.msra.mxu0 0
      %746 = vmatprep.subr.bf16.mxu0 0
      %747 = vmatpush1.bf16.msra.mxu0 0
      %748 = vmatprep.mubr.bf16.mxu0 0
      %749 = vmatmul.mubr.bf16.gmra.mrb[0].mxu0 %v711
      %v750 = vpop.f32.mrb[0].mxu0
      %v751 = vadd.f32 %v705, %v750
      %v752 = vpop.f32.mrb[0].mxu0
      %v753 = vpop.f32.mrb[0].mxu0
      %v754 = vpop.f32.mrb[0].mxu0
      %755 = vdwg.mxu0
      %756 = vrot.lane.b32.xlu0 %v430, 112
      %v757 = vpop.permute.xlu0 %756
      %758 = vrot.lane.b32.xlu0 %v430, 80
      %v759 = vpop.permute.xlu0 %758
      %v761 = vsel %vm434, %v757, 0
      %v764 = vsel %vm434, %v759, 0
      %766 = vmatprep.subr.bf16.mxu0 0
      %767 = vmatpush1.bf16.xpose.msra.mxu0 %v764
      %768 = vmatprep.subr.bf16.mxu0 0
      %769 = vmatpush1.bf16.xpose.msra.mxu0 0
      %770 = vmatprep.subr.bf16.mxu0 0
      %771 = vmatpush1.bf16.xpose.msra.mxu0 0
      %772 = vmatprep.subr.bf16.mxu0 0
      %773 = vmatpush1.bf16.xpose.msra.mxu0 0
      %774 = vmatprep.subr.bf16.mxu0 0
      %775 = vmatpush1.bf16.xpose.msra.mxu0 0
      %776 = vmatprep.subr.bf16.mxu0 0
      %777 = vmatpush1.bf16.xpose.msra.mxu0 0
      %778 = vmatprep.subr.bf16.mxu0 0
      %779 = vmatpush1.bf16.xpose.msra.mxu0 0
      %780 = vmatprep.subr.bf16.mxu0 0
      %781 = vmatpush1.bf16.xpose.msra.mxu0 0
      %782 = vmatprep.subr.bf16.mxu0 0
      %783 = vmatpush1.bf16.xpose.msra.mxu0 0
      %784 = vmatprep.subr.bf16.mxu0 0
      %785 = vmatpush1.bf16.xpose.msra.mxu0 0
      %786 = vmatprep.subr.bf16.mxu0 0
      %787 = vmatpush1.bf16.xpose.msra.mxu0 0
      %788 = vmatprep.subr.bf16.mxu0 0
      %789 = vmatpush1.bf16.xpose.msra.mxu0 0
      %790 = vmatprep.subr.bf16.mxu0 0
      %791 = vmatpush1.bf16.xpose.msra.mxu0 0
      %792 = vmatprep.subr.bf16.mxu0 0
      %793 = vmatpush1.bf16.xpose.msra.mxu0 0
      %794 = vmatprep.subr.bf16.mxu0 0
      %795 = vmatpush1.bf16.xpose.msra.mxu0 0
      %796 = vmatprep.subr.bf16.mxu0 0
      %797 = vmatpush1.bf16.xpose.msra.mxu0 0
      %798 = vmatprep.mubr.bf16.mxu0 0
      %799 = vmatmul.mubr.bf16.gmra.mrb[0].mxu0 %v761
      %v800 = vpop.f32.mrb[0].mxu0
      %v801 = vadd.f32 0.0, %v800
      %v802 = vpop.f32.mrb[0].mxu0
      %v803 = vpop.f32.mrb[0].mxu0
      %v804 = vpop.f32.mrb[0].mxu0
      %805 = vdwg.mxu0
      %v806 = vmul.f32 %v801, 0.35355338
      %v807 = vsel %vm487, %v806, -1e+09
      %v808 = vsel %vm434, %v807, -inf
      %809 = vmax.xlane.f32.xlu0 %v808
      %v810 = vpop.xlane.xlu0 %809
      %v811 = vsub.f32 %v807, %v810
      %v812 = vmul.f32 %v811, 1.442695
      %v813 = vpow.pop %v812
      %v814 = vsel %vm434, %v813, 0.0
      %815 = vadd.xlane.f32.xlu0 %v814
      %v816 = vpop.xlane.xlu0 %815
      %v817 = vrcp.pop %v816
      %v818 = vmul.f32 %v813, %v817
      %v819 = vpack.c.bf16 %v818, %v818
      %820 = vrot.lane.b32.xlu0 %v430, 48
      %v821 = vpop.permute.xlu0 %820
      %v823 = vsel %vm434, %v819, 0
      %v826 = vsel %vm506, %v821, 0
      %828 = vmatprep.subr.bf16.mxu0 0
      %829 = vmatpush1.bf16.msra.mxu0 %v826
      %830 = vmatprep.subr.bf16.mxu0 0
      %831 = vmatpush1.bf16.msra.mxu0 0
      %832 = vmatprep.subr.bf16.mxu0 0
      %833 = vmatpush1.bf16.msra.mxu0 0
      %834 = vmatprep.subr.bf16.mxu0 0
      %835 = vmatpush1.bf16.msra.mxu0 0
      %836 = vmatprep.subr.bf16.mxu0 0
      %837 = vmatpush1.bf16.msra.mxu0 0
      %838 = vmatprep.subr.bf16.mxu0 0
      %839 = vmatpush1.bf16.msra.mxu0 0
      %840 = vmatprep.subr.bf16.mxu0 0
      %841 = vmatpush1.bf16.msra.mxu0 0
      %842 = vmatprep.subr.bf16.mxu0 0
      %843 = vmatpush1.bf16.msra.mxu0 0
      %844 = vmatprep.subr.bf16.mxu0 0
      %845 = vmatpush1.bf16.msra.mxu0 0
      %846 = vmatprep.subr.bf16.mxu0 0
      %847 = vmatpush1.bf16.msra.mxu0 0
      %848 = vmatprep.subr.bf16.mxu0 0
      %849 = vmatpush1.bf16.msra.mxu0 0
      %850 = vmatprep.subr.bf16.mxu0 0
      %851 = vmatpush1.bf16.msra.mxu0 0
      %852 = vmatprep.subr.bf16.mxu0 0
      %853 = vmatpush1.bf16.msra.mxu0 0
      %854 = vmatprep.subr.bf16.mxu0 0
      %855 = vmatpush1.bf16.msra.mxu0 0
      %856 = vmatprep.subr.bf16.mxu0 0
      %857 = vmatpush1.bf16.msra.mxu0 0
      %858 = vmatprep.subr.bf16.mxu0 0
      %859 = vmatpush1.bf16.msra.mxu0 0
      %860 = vmatprep.mubr.bf16.mxu0 0
      %861 = vmatmul.mubr.bf16.gmra.mrb[0].mxu0 %v823
      %v862 = vpop.f32.mrb[0].mxu0
      %v863 = vadd.f32 0.0, %v862
      %v864 = vpop.f32.mrb[0].mxu0
      %v865 = vpop.f32.mrb[0].mxu0
      %v866 = vpop.f32.mrb[0].mxu0
      %867 = vdwg.mxu0
      %v868 = vpack.c.bf16 %v863, %v863
      %v870 = vsel %vm434, %v868, 0
      %v873 = vsel %vm506, %v365, 0
      %875 = vmatprep.subr.bf16.mxu0 0
      %876 = vmatpush1.bf16.msra.mxu0 %v873
      %877 = vmatprep.subr.bf16.mxu0 0
      %878 = vmatpush1.bf16.msra.mxu0 0
      %879 = vmatprep.subr.bf16.mxu0 0
      %880 = vmatpush1.bf16.msra.mxu0 0
      %881 = vmatprep.subr.bf16.mxu0 0
      %882 = vmatpush1.bf16.msra.mxu0 0
      %883 = vmatprep.subr.bf16.mxu0 0
      %884 = vmatpush1.bf16.msra.mxu0 0
      %885 = vmatprep.subr.bf16.mxu0 0
      %886 = vmatpush1.bf16.msra.mxu0 0
      %887 = vmatprep.subr.bf16.mxu0 0
      %888 = vmatpush1.bf16.msra.mxu0 0
      %889 = vmatprep.subr.bf16.mxu0 0
      %890 = vmatpush1.bf16.msra.mxu0 0
      %891 = vmatprep.subr.bf16.mxu0 0
      %892 = vmatpush1.bf16.msra.mxu0 0
      %893 = vmatprep.subr.bf16.mxu0 0
      %894 = vmatpush1.bf16.msra.mxu0 0
      %895 = vmatprep.subr.bf16.mxu0 0
      %896 = vmatpush1.bf16.msra.mxu0 0
      %897 = vmatprep.subr.bf16.mxu0 0
      %898 = vmatpush1.bf16.msra.mxu0 0
      %899 = vmatprep.subr.bf16.mxu0 0
      %900 = vmatpush1.bf16.msra.mxu0 0
      %901 = vmatprep.subr.bf16.mxu0 0
      %902 = vmatpush1.bf16.msra.mxu0 0
      %903 = vmatprep.subr.bf16.mxu0 0
      %904 = vmatpush1.bf16.msra.mxu0 0
      %905 = vmatprep.subr.bf16.mxu0 0
      %906 = vmatpush1.bf16.msra.mxu0 0
      %907 = vmatprep.mubr.bf16.mxu0 0
      %908 = vmatmul.mubr.bf16.gmra.mrb[0].mxu0 %v870
      %v909 = vpop.f32.mrb[0].mxu0
      %v910 = vadd.f32 0.0, %v909
      %v911 = vpop.f32.mrb[0].mxu0
      %v912 = vpop.f32.mrb[0].mxu0
      %v913 = vpop.f32.mrb[0].mxu0
      %914 = vdwg.mxu0
      %v915 = vadd.f32 %v751, %v910
      %916 = vrot.lane.b32.xlu0 %v430, 104
      %v917 = vpop.permute.xlu0 %916
      %918 = vrot.lane.b32.xlu0 %v430, 72
      %v919 = vpop.permute.xlu0 %918
      %v921 = vsel %vm434, %v917, 0
      %v924 = vsel %vm434, %v919, 0
      %926 = vmatprep.subr.bf16.mxu0 0
      %927 = vmatpush1.bf16.xpose.msra.mxu0 %v924
      %928 = vmatprep.subr.bf16.mxu0 0
      %929 = vmatpush1.bf16.xpose.msra.mxu0 0
      %930 = vmatprep.subr.bf16.mxu0 0
      %931 = vmatpush1.bf16.xpose.msra.mxu0 0
      %932 = vmatprep.subr.bf16.mxu0 0
      %933 = vmatpush1.bf16.xpose.msra.mxu0 0
      %934 = vmatprep.subr.bf16.mxu0 0
      %935 = vmatpush1.bf16.xpose.msra.mxu0 0
      %936 = vmatprep.subr.bf16.mxu0 0
      %937 = vmatpush1.bf16.xpose.msra.mxu0 0
      %938 = vmatprep.subr.bf16.mxu0 0
      %939 = vmatpush1.bf16.xpose.msra.mxu0 0
      %940 = vmatprep.subr.bf16.mxu0 0
      %941 = vmatpush1.bf16.xpose.msra.mxu0 0
      %942 = vmatprep.subr.bf16.mxu0 0
      %943 = vmatpush1.bf16.xpose.msra.mxu0 0
      %944 = vmatprep.subr.bf16.mxu0 0
      %945 = vmatpush1.bf16.xpose.msra.mxu0 0
      %946 = vmatprep.subr.bf16.mxu0 0
      %947 = vmatpush1.bf16.xpose.msra.mxu0 0
      %948 = vmatprep.subr.bf16.mxu0 0
      %949 = vmatpush1.bf16.xpose.msra.mxu0 0
      %950 = vmatprep.subr.bf16.mxu0 0
      %951 = vmatpush1.bf16.xpose.msra.mxu0 0
      %952 = vmatprep.subr.bf16.mxu0 0
      %953 = vmatpush1.bf16.xpose.msra.mxu0 0
      %954 = vmatprep.subr.bf16.mxu0 0
      %955 = vmatpush1.bf16.xpose.msra.mxu0 0
      %956 = vmatprep.subr.bf16.mxu0 0
      %957 = vmatpush1.bf16.xpose.msra.mxu0 0
      %958 = vmatprep.mubr.bf16.mxu0 0
      %959 = vmatmul.mubr.bf16.gmra.mrb[0].mxu0 %v921
      %v960 = vpop.f32.mrb[0].mxu0
      %v961 = vadd.f32 0.0, %v960
      %v962 = vpop.f32.mrb[0].mxu0
      %v963 = vpop.f32.mrb[0].mxu0
      %v964 = vpop.f32.mrb[0].mxu0
      %965 = vdwg.mxu0
      %v966 = vmul.f32 %v961, 0.35355338
      %v967 = vsel %vm487, %v966, -1e+09
      %v968 = vsel %vm434, %v967, -inf
      %969 = vmax.xlane.f32.xlu0 %v968
      %v970 = vpop.xlane.xlu0 %969
      %v971 = vsub.f32 %v967, %v970
      %v972 = vmul.f32 %v971, 1.442695
      %v973 = vpow.pop %v972
      %v974 = vsel %vm434, %v973, 0.0
      %975 = vadd.xlane.f32.xlu0 %v974
      %v976 = vpop.xlane.xlu0 %975
      %v977 = vrcp.pop %v976
      %v978 = vmul.f32 %v973, %v977
      %v979 = vpack.c.bf16 %v978, %v978
      %980 = vrot.lane.b32.xlu0 %v430, 40
      %v981 = vpop.permute.xlu0 %980
      %v983 = vsel %vm434, %v979, 0
      %v986 = vsel %vm506, %v981, 0
      %988 = vmatprep.subr.bf16.mxu0 0
      %989 = vmatpush1.bf16.msra.mxu0 %v986
      %990 = vmatprep.subr.bf16.mxu0 0
      %991 = vmatpush1.bf16.msra.mxu0 0
      %992 = vmatprep.subr.bf16.mxu0 0
      %993 = vmatpush1.bf16.msra.mxu0 0
      %994 = vmatprep.subr.bf16.mxu0 0
      %995 = vmatpush1.bf16.msra.mxu0 0
      %996 = vmatprep.subr.bf16.mxu0 0
      %997 = vmatpush1.bf16.msra.mxu0 0
      %998 = vmatprep.subr.bf16.mxu0 0
      %999 = vmatpush1.bf16.msra.mxu0 0
      %1000 = vmatprep.subr.bf16.mxu0 0
      %1001 = vmatpush1.bf16.msra.mxu0 0
      %1002 = vmatprep.subr.bf16.mxu0 0
      %1003 = vmatpush1.bf16.msra.mxu0 0
      %1004 = vmatprep.subr.bf16.mxu0 0
      %1005 = vmatpush1.bf16.msra.mxu0 0
      %1006 = vmatprep.subr.bf16.mxu0 0
      %1007 = vmatpush1.bf16.msra.mxu0 0
      %1008 = vmatprep.subr.bf16.mxu0 0
      %1009 = vmatpush1.bf16.msra.mxu0 0
      %1010 = vmatprep.subr.bf16.mxu0 0
      %1011 = vmatpush1.bf16.msra.mxu0 0
      %1012 = vmatprep.subr.bf16.mxu0 0
      %1013 = vmatpush1.bf16.msra.mxu0 0
      %1014 = vmatprep.subr.bf16.mxu0 0
      %1015 = vmatpush1.bf16.msra.mxu0 0
      %1016 = vmatprep.subr.bf16.mxu0 0
      %1017 = vmatpush1.bf16.msra.mxu0 0
      %1018 = vmatprep.subr.bf16.mxu0 0
      %1019 = vmatpush1.bf16.msra.mxu0 0
      %1020 = vmatprep.mubr.bf16.mxu0 0
      %1021 = vmatmul.mubr.bf16.gmra.mrb[0].mxu0 %v983
      %v1022 = vpop.f32.mrb[0].mxu0
      %v1023 = vadd.f32 0.0, %v1022
      %v1024 = vpop.f32.mrb[0].mxu0
      %v1025 = vpop.f32.mrb[0].mxu0
      %v1026 = vpop.f32.mrb[0].mxu0
      %1027 = vdwg.mxu0
      %v1028 = vpack.c.bf16 %v1023, %v1023
      %v1030 = vsel %vm434, %v1028, 0
      %v1033 = vsel %vm506, %v366, 0
      %1035 = vmatprep.subr.bf16.mxu0 0
      %1036 = vmatpush1.bf16.msra.mxu0 %v1033
      %1037 = vmatprep.subr.bf16.mxu0 0
      %1038 = vmatpush1.bf16.msra.mxu0 0
      %1039 = vmatprep.subr.bf16.mxu0 0
      %1040 = vmatpush1.bf16.msra.mxu0 0
      %1041 = vmatprep.subr.bf16.mxu0 0
      %1042 = vmatpush1.bf16.msra.mxu0 0
      %1043 = vmatprep.subr.bf16.mxu0 0
      %1044 = vmatpush1.bf16.msra.mxu0 0
      %1045 = vmatprep.subr.bf16.mxu0 0
      %1046 = vmatpush1.bf16.msra.mxu0 0
      %1047 = vmatprep.subr.bf16.mxu0 0
      %1048 = vmatpush1.bf16.msra.mxu0 0
      %1049 = vmatprep.subr.bf16.mxu0 0
      %1050 = vmatpush1.bf16.msra.mxu0 0
      %1051 = vmatprep.subr.bf16.mxu0 0
      %1052 = vmatpush1.bf16.msra.mxu0 0
      %1053 = vmatprep.subr.bf16.mxu0 0
      %1054 = vmatpush1.bf16.msra.mxu0 0
      %1055 = vmatprep.subr.bf16.mxu0 0
      %1056 = vmatpush1.bf16.msra.mxu0 0
      %1057 = vmatprep.subr.bf16.mxu0 0
      %1058 = vmatpush1.bf16.msra.mxu0 0
      %1059 = vmatprep.subr.bf16.mxu0 0
      %1060 = vmatpush1.bf16.msra.mxu0 0
      %1061 = vmatprep.subr.bf16.mxu0 0
      %1062 = vmatpush1.bf16.msra.mxu0 0
      %1063 = vmatprep.subr.bf16.mxu0 0
      %1064 = vmatpush1.bf16.msra.mxu0 0
      %1065 = vmatprep.subr.bf16.mxu0 0
      %1066 = vmatpush1.bf16.msra.mxu0 0
      %1067 = vmatprep.mubr.bf16.mxu0 0
      %1068 = vmatmul.mubr.bf16.gmra.mrb[0].mxu0 %v1030
      %v1069 = vpop.f32.mrb[0].mxu0
      %v1070 = vadd.f32 0.0, %v1069
      %v1071 = vpop.f32.mrb[0].mxu0
      %v1072 = vpop.f32.mrb[0].mxu0
      %v1073 = vpop.f32.mrb[0].mxu0
      %1074 = vdwg.mxu0
      %v1075 = vadd.f32 %v915, %v1070
      %v1077 = vlaneseq
      %v1078 = vshrl.u32 %v1077, 7
      %v1079 = vsub.s32 0, %v1078
      %v1080 = vrot.slane %v367, %v1079
      %v1082 = vadd.f32 %v1075, %v1080
      %v1083 = vadd.f32 %v316, %v1082
      %1084 = vst.msk [vmem:[%s314] sm:$0xff] %vm319, %v1083
      %p1085 = scmp.lt.s32.totalorder %s19, 1
      %s1086 = scalar_select %p1085, %s19, 1
      %s1087 = smul.addr %s1086, 8
      %s1088 = scalar_lea.vmem %s8, %s1087
      // Predicated region
      $region53: #{transformer_forward.12} parent=51 // pred_check
        %p1089 = pneg %p215
      $region54: #{transformer_forward.12} parent=51 // pred_check_branch
        %1091 = sbr.rel (%p1089) target = $region56
      $region55: #{transformer_forward.12} parent=51 // pred_region
        _
      $region56: #{transformer_forward.12} parent=51 // pred_fallthru
        _
    $region52: #{transformer_forward.12} parent=5 // pred_fallthru
      _
    %p1092 = scmp.le.s32.totalorder 2, %s14
    // Predicated region
    $region57: #{transformer_forward.12} parent=5 // pred_check
      %p1093 = pneg %p1092
    $region58: #{transformer_forward.12} parent=5 // pred_check_branch
      %1095 = sbr.rel (%p1093) target = $region60
    $region59: #{transformer_forward.12} parent=5 // pred_region
      %s1096 = ssub.s32 %s14, 2
      // Predicated region
      $region61: #{transformer_forward.12} parent=59 // pred_check
        %p1097 = pneg %p221
      $region62: #{transformer_forward.12} parent=59 // pred_check_branch
        %1099 = sbr.rel (%p1097) target = $region64
      $region63: #{transformer_forward.12} parent=59 // pred_region
        %p1100 = scmp.lt.s32.totalorder %s20, 1
        %s1101 = scalar_select %p1100, %s20, 1
        %s1102 = smul.addr %s1101, 8
        %s1103 = scalar_lea.vmem %s8, %s1102
      $region64: #{transformer_forward.12} parent=59 // pred_fallthru
        _
    $region60: #{transformer_forward.12} parent=5 // pred_fallthru
      _
  $region6: #{transformer_forward.12} parent=0 // loop_footer
    %s18 = sadd.s32 1, %s14
  $region7: #{transformer_forward.12} parent=0 // loop_footer_branch
    %13 = sbr.rel target = $region3
  $region8: #{transformer_forward.12} parent=0 // loop_exit
    _

// kernel: transformer_forward.17
$region0: #{transformer_forward.17}
  #allocation0 [shape = 'u32[]', space=smem, size = 0x4, offset = 0x4, fixed_abs, tag = 'smem constant byte address 0x4 - core index']
  #allocation1 [shape = 'u32[144,128]{1,0:T(1,128)}', space=vmem, size = 0x12000, scoped, tag = 'internal scratch']
  %s0 = inlined_call_operand.vmem [shape: f32[2,8,32], index: 0, kind: input, shape index: {}]
  %s1 = inlined_call_operand.vmem [shape: f32[2,1,8], index: 1, kind: input, shape index: {}]
  %s2 = inlined_call_operand.vmem [shape: f32[1,32], index: 2, kind: input, shape index: {}]
  %s3 = inlined_call_operand.vmem [shape: f32[1,32], index: 3, kind: input, shape index: {}]
  %s4 = inlined_call_operand.vmem [shape: bf16[32,96], index: 4, kind: input, shape index: {}]
  %s5 = inlined_call_operand.vmem [shape: f32[1,96], index: 5, kind: input, shape index: {}]
  %s6 = inlined_call_operand.vmem [shape: bf16[32,32], index: 6, kind: input, shape index: {}]
  %s7 = inlined_call_operand.vmem [shape: f32[1,32], index: 7, kind: input, shape index: {}]
  %s8 = inlined_call_operand.vmem [shape: f32[2,8,32], index: 8, kind: output, shape index: {}]
  %s9 = sld [smem:[#allocation0]]
  $region65: #{transformer_forward.17} parent=0
    _
  %s11 = ssub.s32 1, %s9
  %s12 = scalar_select 0, %s11, %s9
  loop: start=0, step=1, limit=4
  $region2: #{transformer_forward.17} parent=0 // loop_pre_header
    _
  $region3: #{transformer_forward.17} parent=0 // loop_header
    %s14 = sphi 0, %s18
    %p15 = scmp.ge.s32.totalorder %s14, 4
    %s24 = sphi 0, %s26
    %s27 = sphi 0, %s24
    %s28 = sphi 0, %s27
    %s44 = sphi 0, %s28
    %s50 = sphi 0, %s52
    %s53 = sphi 0, %s50
    %s54 = sphi 0, %s53
    %s70 = sphi 0, %s54
    %s74 = sphi 0, %s74
    %s76 = sphi 0, %s74
    %s77 = sphi 0, %s76
    %s91 = sphi 0, %s77
    %s95 = sphi 0, %s95
    %s97 = sphi 0, %s95
    %s98 = sphi 0, %s97
    %s112 = sphi 0, %s98
    %s116 = sphi 0, %s116
    %s118 = sphi 0, %s116
    %s119 = sphi 0, %s118
    %s133 = sphi 0, %s119
    %s137 = sphi 0, %s137
    %s139 = sphi 0, %s137
    %s140 = sphi 0, %s139
    %s154 = sphi 0, %s140
    %s158 = sphi 0, %s158
    %s160 = sphi 0, %s158
    %s161 = sphi 0, %s160
    %s175 = sphi 0, %s161
    %s179 = sphi 0, %s179
    %s181 = sphi 0, %s179
    %s182 = sphi 0, %s181
    %s196 = sphi 0, %s182
    %s202 = sphi 0, %s204
    %s205 = sphi 0, %s202
    %s206 = sphi 0, %s205
    %s222 = sphi 0, %s206
  $region4: #{transformer_forward.17} parent=0 // loop_header_branch
    %17 = sbr.rel (%p15) target = $region8
  $region5: #{transformer_forward.17} parent=0 // loop_body
    %s19 = ssub.s32 %s14, 1
    %s20 = ssub.s32 %s14, 2
    %s21 = sadd.s32 %s14, 1
    %s22 = ssub.s32 %s14, %s21
    %p23 = scmp.eq.s32.totalorder %s22, 0
    %s25 = sadd.s32 %s24, 1
    %s26 = scalar_select %p23, %s24, %s25
    %p29 = pneg %p23
    %p30 = scmp.eq.s32.totalorder %s14, 1
    %p31 = por %p29, %p30
    %p32 = scmp.ne.s32.totalorder %s24, %s27
    %p33 = scmp.eq.s32.totalorder %s14, 0
    %p34 = por %p32, %p33
    %p35 = scmp.ne.s32.totalorder %s24, %s27
    %p36 = scmp.eq.s32.totalorder %s19, 1
    %p37 = por %p35, %p36
    %p38 = scmp.ne.s32.totalorder %s27, %s28
    %p39 = scmp.eq.s32.totalorder %s19, 0
    %p40 = por %p38, %p39
    %p41 = scmp.ne.s32.totalorder %s27, %s28
    %p42 = scmp.eq.s32.totalorder %s20, 1
    %p43 = por %p41, %p42
    %p45 = scmp.ne.s32.totalorder %s28, %s44
    %p46 = scmp.eq.s32.totalorder %s20, 0
    %p47 = por %p45, %p46
    %s48 = ssub.s32 %s14, %s21
    %p49 = scmp.eq.s32.totalorder %s48, 0
    %s51 = sadd.s32 %s50, 1
    %s52 = scalar_select %p49, %s50, %s51
    %p55 = pneg %p49
    %p56 = scmp.eq.s32.totalorder %s14, 1
    %p57 = por %p55, %p56
    %p58 = scmp.ne.s32.totalorder %s50, %s53
    %p59 = scmp.eq.s32.totalorder %s14, 0
    %p60 = por %p58, %p59
    %p61 = scmp.ne.s32.totalorder %s50, %s53
    %p62 = scmp.eq.s32.totalorder %s19, 1
    %p63 = por %p61, %p62
    %p64 = scmp.ne.s32.totalorder %s53, %s54
    %p65 = scmp.eq.s32.totalorder %s19, 0
    %p66 = por %p64, %p65
    %p67 = scmp.ne.s32.totalorder %s53, %s54
    %p68 = scmp.eq.s32.totalorder %s20, 1
    %p69 = por %p67, %p68
    %p71 = scmp.ne.s32.totalorder %s54, %s70
    %p72 = scmp.eq.s32.totalorder %s20, 0
    %p73 = por %p71, %p72
    %s75 = sadd.s32 %s74, 1
    %p78 = scmp.eq.s32.totalorder %s14, 1
    %p79 = scmp.ne.s32.totalorder %s74, %s76
    %p80 = scmp.eq.s32.totalorder %s14, 0
    %p81 = por %p79, %p80
    %p82 = scmp.ne.s32.totalorder %s74, %s76
    %p83 = scmp.eq.s32.totalorder %s19, 1
    %p84 = por %p82, %p83
    %p85 = scmp.ne.s32.totalorder %s76, %s77
    %p86 = scmp.eq.s32.totalorder %s19, 0
    %p87 = por %p85, %p86
    %p88 = scmp.ne.s32.totalorder %s76, %s77
    %p89 = scmp.eq.s32.totalorder %s20, 1
    %p90 = por %p88, %p89
    %p92 = scmp.ne.s32.totalorder %s77, %s91
    %p93 = scmp.eq.s32.totalorder %s20, 0
    %p94 = por %p92, %p93
    %s96 = sadd.s32 %s95, 1
    %p99 = scmp.eq.s32.totalorder %s14, 1
    %p100 = scmp.ne.s32.totalorder %s95, %s97
    %p101 = scmp.eq.s32.totalorder %s14, 0
    %p102 = por %p100, %p101
    %p103 = scmp.ne.s32.totalorder %s95, %s97
    %p104 = scmp.eq.s32.totalorder %s19, 1
    %p105 = por %p103, %p104
    %p106 = scmp.ne.s32.totalorder %s97, %s98
    %p107 = scmp.eq.s32.totalorder %s19, 0
    %p108 = por %p106, %p107
    %p109 = scmp.ne.s32.totalorder %s97, %s98
    %p110 = scmp.eq.s32.totalorder %s20, 1
    %p111 = por %p109, %p110
    %p113 = scmp.ne.s32.totalorder %s98, %s112
    %p114 = scmp.eq.s32.totalorder %s20, 0
    %p115 = por %p113, %p114
    %s117 = sadd.s32 %s116, 1
    %p120 = scmp.eq.s32.totalorder %s14, 1
    %p121 = scmp.ne.s32.totalorder %s116, %s118
    %p122 = scmp.eq.s32.totalorder %s14, 0
    %p123 = por %p121, %p122
    %p124 = scmp.ne.s32.totalorder %s116, %s118
    %p125 = scmp.eq.s32.totalorder %s19, 1
    %p126 = por %p124, %p125
    %p127 = scmp.ne.s32.totalorder %s118, %s119
    %p128 = scmp.eq.s32.totalorder %s19, 0
    %p129 = por %p127, %p128
    %p130 = scmp.ne.s32.totalorder %s118, %s119
    %p131 = scmp.eq.s32.totalorder %s20, 1
    %p132 = por %p130, %p131
    %p134 = scmp.ne.s32.totalorder %s119, %s133
    %p135 = scmp.eq.s32.totalorder %s20, 0
    %p136 = por %p134, %p135
    %s138 = sadd.s32 %s137, 1
    %p141 = scmp.eq.s32.totalorder %s14, 1
    %p142 = scmp.ne.s32.totalorder %s137, %s139
    %p143 = scmp.eq.s32.totalorder %s14, 0
    %p144 = por %p142, %p143
    %p145 = scmp.ne.s32.totalorder %s137, %s139
    %p146 = scmp.eq.s32.totalorder %s19, 1
    %p147 = por %p145, %p146
    %p148 = scmp.ne.s32.totalorder %s139, %s140
    %p149 = scmp.eq.s32.totalorder %s19, 0
    %p150 = por %p148, %p149
    %p151 = scmp.ne.s32.totalorder %s139, %s140
    %p152 = scmp.eq.s32.totalorder %s20, 1
    %p153 = por %p151, %p152
    %p155 = scmp.ne.s32.totalorder %s140, %s154
    %p156 = scmp.eq.s32.totalorder %s20, 0
    %p157 = por %p155, %p156
    %s159 = sadd.s32 %s158, 1
    %p162 = scmp.eq.s32.totalorder %s14, 1
    %p163 = scmp.ne.s32.totalorder %s158, %s160
    %p164 = scmp.eq.s32.totalorder %s14, 0
    %p165 = por %p163, %p164
    %p166 = scmp.ne.s32.totalorder %s158, %s160
    %p167 = scmp.eq.s32.totalorder %s19, 1
    %p168 = por %p166, %p167
    %p169 = scmp.ne.s32.totalorder %s160, %s161
    %p170 = scmp.eq.s32.totalorder %s19, 0
    %p171 = por %p169, %p170
    %p172 = scmp.ne.s32.totalorder %s160, %s161
    %p173 = scmp.eq.s32.totalorder %s20, 1
    %p174 = por %p172, %p173
    %p176 = scmp.ne.s32.totalorder %s161, %s175
    %p177 = scmp.eq.s32.totalorder %s20, 0
    %p178 = por %p176, %p177
    %s180 = sadd.s32 %s179, 1
    %p183 = scmp.eq.s32.totalorder %s14, 1
    %p184 = scmp.ne.s32.totalorder %s179, %s181
    %p185 = scmp.eq.s32.totalorder %s14, 0
    %p186 = por %p184, %p185
    %p187 = scmp.ne.s32.totalorder %s179, %s181
    %p188 = scmp.eq.s32.totalorder %s19, 1
    %p189 = por %p187, %p188
    %p190 = scmp.ne.s32.totalorder %s181, %s182
    %p191 = scmp.eq.s32.totalorder %s19, 0
    %p192 = por %p190, %p191
    %p193 = scmp.ne.s32.totalorder %s181, %s182
    %p194 = scmp.eq.s32.totalorder %s20, 1
    %p195 = por %p193, %p194
    %p197 = scmp.ne.s32.totalorder %s182, %s196
    %p198 = scmp.eq.s32.totalorder %s20, 0
    %p199 = por %p197, %p198
    %s200 = ssub.s32 %s14, %s21
    %p201 = scmp.eq.s32.totalorder %s200, 0
    %s203 = sadd.s32 %s202, 1
    %s204 = scalar_select %p201, %s202, %s203
    %p207 = pneg %p201
    %p208 = scmp.eq.s32.totalorder %s14, 1
    %p209 = por %p207, %p208
    %p210 = scmp.ne.s32.totalorder %s202, %s205
    %p211 = scmp.eq.s32.totalorder %s14, 0
    %p212 = por %p210, %p211
    %p213 = scmp.ne.s32.totalorder %s202, %s205
    %p214 = scmp.eq.s32.totalorder %s19, 1
    %p215 = por %p213, %p214
    %p216 = scmp.ne.s32.totalorder %s205, %s206
    %p217 = scmp.eq.s32.totalorder %s19, 0
    %p218 = por %p216, %p217
    %p219 = scmp.ne.s32.totalorder %s205, %s206
    %p220 = scmp.eq.s32.totalorder %s20, 1
    %p221 = por %p219, %p220
    %p223 = scmp.ne.s32.totalorder %s206, %s222
    %p224 = scmp.eq.s32.totalorder %s20, 0
    %p225 = por %p223, %p224
    %p226 = scmp.le.s32.totalorder 1, %s14
    %p227 = scmp.lt.s32.totalorder %s14, 3
    %p228 = pnand %p226, %p227
    %p229 = pneg %p228
    // Predicated region
    $region9: #{transformer_forward.17} parent=5 // pred_check
      _
    $region10: #{transformer_forward.17} parent=5 // pred_check_branch
      %231 = sbr.rel (%p228) target = $region12
    $region11: #{transformer_forward.17} parent=5 // pred_region
      %s232 = ssub.s32 %s14, 1
      // Predicated region
      $region13: #{transformer_forward.17} parent=11 // pred_check
        %p233 = pneg %p87
      $region14: #{transformer_forward.17} parent=11 // pred_check_branch
        %235 = sbr.rel (%p233) target = $region16
      $region15: #{transformer_forward.17} parent=11 // pred_region
        _
      $region16: #{transformer_forward.17} parent=11 // pred_fallthru
        _
      // Predicated region
      $region17: #{transformer_forward.17} parent=11 // pred_check
        %p236 = pneg %p108
      $region18: #{transformer_forward.17} parent=11 // pred_check_branch
        %238 = sbr.rel (%p236) target = $region20
      $region19: #{transformer_forward.17} parent=11 // pred_region
        _
      $region20: #{transformer_forward.17} parent=11 // pred_fallthru
        _
      // Predicated region
      $region21: #{transformer_forward.17} parent=11 // pred_check
        %p239 = pneg %p129
      $region22: #{transformer_forward.17} parent=11 // pred_check_branch
        %241 = sbr.rel (%p239) target = $region24
      $region23: #{transformer_forward.17} parent=11 // pred_region
        _
      $region24: #{transformer_forward.17} parent=11 // pred_fallthru
        _
      // Predicated region
      $region25: #{transformer_forward.17} parent=11 // pred_check
        %p242 = pneg %p150
      $region26: #{transformer_forward.17} parent=11 // pred_check_branch
        %244 = sbr.rel (%p242) target = $region28
      $region27: #{transformer_forward.17} parent=11 // pred_region
        _
      $region28: #{transformer_forward.17} parent=11 // pred_fallthru
        _
      // Predicated region
      $region29: #{transformer_forward.17} parent=11 // pred_check
        %p245 = pneg %p171
      $region30: #{transformer_forward.17} parent=11 // pred_check_branch
        %247 = sbr.rel (%p245) target = $region32
      $region31: #{transformer_forward.17} parent=11 // pred_region
        _
      $region32: #{transformer_forward.17} parent=11 // pred_fallthru
        _
      // Predicated region
      $region33: #{transformer_forward.17} parent=11 // pred_check
        %p248 = pneg %p192
      $region34: #{transformer_forward.17} parent=11 // pred_check_branch
        %250 = sbr.rel (%p248) target = $region36
      $region35: #{transformer_forward.17} parent=11 // pred_region
        _
      $region36: #{transformer_forward.17} parent=11 // pred_fallthru
        _
    $region12: #{transformer_forward.17} parent=5 // pred_fallthru
      _
    %p251 = scmp.lt.s32.totalorder %s14, 2
    // Predicated region
    $region37: #{transformer_forward.17} parent=5 // pred_check
      %p252 = pneg %p251
    $region38: #{transformer_forward.17} parent=5 // pred_check_branch
      %254 = sbr.rel (%p252) target = $region40
    $region39: #{transformer_forward.17} parent=5 // pred_region
      // Predicated region
      $region41: #{transformer_forward.17} parent=39 // pred_check
        %p255 = pneg %p34
      $region42: #{transformer_forward.17} parent=39 // pred_check_branch
        %257 = sbr.rel (%p255) target = $region44
      $region43: #{transformer_forward.17} parent=39 // pred_region
        %p258 = scmp.lt.s32.totalorder %s14, 1
        %s259 = scalar_select %p258, %s14, 1
        %s260 = smul.addr %s259, 8
        %s261 = scalar_lea.vmem %s0, %s260
      $region44: #{transformer_forward.17} parent=39 // pred_fallthru
        _
      // Predicated region
      $region45: #{transformer_forward.17} parent=39 // pred_check
        %p262 = pneg %p60
      $region46: #{transformer_forward.17} parent=39 // pred_check_branch
        %264 = sbr.rel (%p262) target = $region48
      $region47: #{transformer_forward.17} parent=39 // pred_region
        %p265 = scmp.lt.s32.totalorder %s14, 1
        %s266 = scalar_select %p265, %s14, 1
        %s267 = scalar_lea.vmem %s1, %s266
      $region48: #{transformer_forward.17} parent=39 // pred_fallthru
        _
    $region40: #{transformer_forward.17} parent=5 // pred_fallthru
      _
    %p268 = scmp.le.s32.totalorder 1, %s14
    %p269 = scmp.lt.s32.totalorder %s14, 3
    %p270 = pnand %p268, %p269
    %p271 = pneg %p270
    // Predicated region
    $region49: #{transformer_forward.17} parent=5 // pred_check
      _
    $region50: #{transformer_forward.17} parent=5 // pred_check_branch
      %273 = sbr.rel (%p270) target = $region52
    $region51: #{transformer_forward.17} parent=5 // pred_region
      %s274 = ssub.s32 %s14, 1
      %p275 = scmp.lt.s32.totalorder %s19, 1
      %s276 = scalar_select %p275, %s19, 1
      %s277 = smul.addr %s276, 8
      %s278 = scalar_lea.vmem %s0, %s277
      %p279 = pneg %p40
      %p280 = pneg %p37
      %p281 = scmp.lt.s32.totalorder %s19, 1
      %s282 = scalar_select %p281, %s19, 1
      %s283 = scalar_lea.vmem %s1, %s282
      %p284 = pneg %p66
      %p285 = pneg %p63
      %p286 = pneg %p87
      %p287 = pneg %p84
      %p288 = pneg %p108
      %p289 = pneg %p105
      %p290 = pneg %p129
      %p291 = pneg %p126
      %p292 = pneg %p150
      %p293 = pneg %p147
      %p294 = pneg %p171
      %p295 = pneg %p168
      %p296 = pneg %p192
      %p297 = pneg %p189
      %p298 = pneg %p218
      %p299 = pneg %p215
      %p300 = scmp.lt.s32.totalorder %s19, 1
      %s301 = scalar_select %p300, %s19, 1
      %s302 = smul.addr %s301, 8
      %s303 = scalar_lea.vmem %s8, %s302
      %p304 = scmp.lt.s32.totalorder %s19, 1
      %s305 = scalar_select %p304, %s19, 1
      %s306 = smul.addr %s305, 8
      %s307 = scalar_lea.vmem %s0, %s306
      %p308 = scmp.lt.s32.totalorder %s19, 1
      %s309 = scalar_select %p308, %s19, 1
      %s310 = scalar_lea.vmem %s1, %s309
      %p311 = scmp.lt.s32.totalorder %s19, 1
      %s312 = scalar_select %p311, %s19, 1
      %s313 = smul.addr %s312, 8
      %s314 = scalar_lea.vmem %s8, %s313
      %v316 = vld [vmem:[%s307] sm:$0xff]
      %v317 = vld [vmem:[%s2] sm:$0x1]
      %v318 = vld [vmem:[%s3] sm:$0x1]
      %vm319 = vcmask 261120
      %v320 = vsel %vm319, %v316, 0.0
      %321 = vadd.xlane.f32.xlu0 %v320
      %v322 = vpop.xlane.xlu0 %321
      %v323 = vrcp.pop 32.0
      %v324 = vmul.f32 %v322, %v323
      %v325 = vsub.f32 %v316, %v324
      %v326 = vmul.f32 %v325, %v325
      %v327 = vsel %vm319, %v326, 0.0
      %328 = vadd.xlane.f32.xlu0 %v327
      %v329 = vpop.xlane.xlu0 %328
      %v330 = vrcp.pop 31.0
      %v331 = vmul.f32 %v329, %v330
      %v332 = vrsqrt.pop %v331
      %v333 = vmul.f32 %v331, %v332
      %vm334 = vcmp.eq.f32.partialorder %v331, inf
      %v335 = vsel %vm334, %v331, %v333
      %vm336 = vcmp.eq.f32.partialorder %v331, 0.0
      %v337 = vand.u32 %v331, 2147483648
      %v338 = vsel %vm336, %v337, %v335
      %v339 = vadd.f32 %v338, 1e-06
      %v340 = vrcp.pop %v339
      %v342 = vlaneseq
      %v343 = vshrl.u32 %v342, 7
      %v344 = vsub.s32 0, %v343
      %v345 = vrot.slane %v317, %v344
      %v347 = vmul.f32 %v345, %v325
      %v348 = vmul.f32 %v347, %v340
      %v350 = vlaneseq
      %v351 = vshrl.u32 %v350, 7
      %v352 = vsub.s32 0, %v351
      %v353 = vrot.slane %v318, %v352
      %v355 = vadd.f32 %v348, %v353
      %v356 = vld [vmem:[%s310] sm:$0x1]
      %vm357 = vcmp.gt.f32.partialorder %v356, 0.5
      %v358 = vlaneseq
      %v359 = vshrl.u32 %v358, 7
      %v360 = vlaneseq
      %v361 = vand.u32 %v360, 127
      %vm362 = vcmp.le.s32.totalorder %v361, %v359
      %v363 = vsel %vm357, 1, 0
      %v364 = vlaneseq
      %v365 = vshrl.u32 %v364, 7
      %v366 = vsub.s32 0, %v365
      %v367 = vrot.slane %v363, %v366
      %vm368 = vcmp.eq.s32.totalorder %v367, 1
      %vm369 = vmand %vm368, %vm362
      %v370 = vld [vmem:[%s4] sm:$0xf]
      %v371 = vld [vmem:[%s4 + $0x4] sm:$0xf]
      %v372 = vld [vmem:[%s4 + $0x8] sm:$0xf]
      %v373 = vld [vmem:[%s4 + $0xc] sm:$0xf]
      %v374 = vld [vmem:[%s5] sm:$0x1]
      %v375 = vld [vmem:[%s6] sm:$0xf]
      %v376 = vld [vmem:[%s6 + $0x4] sm:$0xf]
      %v377 = vld [vmem:[%s6 + $0x8] sm:$0xf]
      %v378 = vld [vmem:[%s6 + $0xc] sm:$0xf]
      %v379 = vld [vmem:[%s7] sm:$0x1]
      %v380 = vpack.c.bf16 %v355, %v355
      %v382 = vlaneseq
      %v383 = vshrl.u32 %v382, 7
      %v384 = vsub.s32 0, %v383
      %v385 = vrot.slane %v374, %v384
      %v391 = vunpack.c.l.b16 %v370
      %v392 = vunpack.c.l.b16 %v371
      %v393 = vunpack.c.l.b16 %v372
      %v394 = vunpack.c.l.b16 %v373
      %v395 = vpack.c.b16 %v392, %v391
      %v396 = vpack.c.b16 %v394, %v393
      %v400 = vsel %vm319, %v380, 0
      %402 = vmatprep.subr.bf16.mxu0 0
      %403 = vmatpush1.bf16.msra.mxu0 %v395
      %404 = vmatprep.subr.bf16.mxu0 0
      %405 = vmatpush1.bf16.msra.mxu0 %v396
      %406 = vmatprep.subr.bf16.mxu0 0
      %407 = vmatpush1.bf16.msra.mxu0 0
      %408 = vmatprep.subr.bf16.mxu0 0
      %409 = vmatpush1.bf16.msra.mxu0 0
      %410 = vmatprep.subr.bf16.mxu0 0
      %411 = vmatpush1.bf16.msra.mxu0 0
      %412 = vmatprep.subr.bf16.mxu0 0
      %413 = vmatpush1.bf16.msra.mxu0 0
      %414 = vmatprep.subr.bf16.mxu0 0
      %415 = vmatpush1.bf16.msra.mxu0 0
      %416 = vmatprep.subr.bf16.mxu0 0
      %417 = vmatpush1.bf16.msra.mxu0 0
      %418 = vmatprep.subr.bf16.mxu0 0
      %419 = vmatpush1.bf16.msra.mxu0 0
      %420 = vmatprep.subr.bf16.mxu0 0
      %421 = vmatpush1.bf16.msra.mxu0 0
      %422 = vmatprep.subr.bf16.mxu0 0
      %423 = vmatpush1.bf16.msra.mxu0 0
      %424 = vmatprep.subr.bf16.mxu0 0
      %425 = vmatpush1.bf16.msra.mxu0 0
      %426 = vmatprep.subr.bf16.mxu0 0
      %427 = vmatpush1.bf16.msra.mxu0 0
      %428 = vmatprep.subr.bf16.mxu0 0
      %429 = vmatpush1.bf16.msra.mxu0 0
      %430 = vmatprep.subr.bf16.mxu0 0
      %431 = vmatpush1.bf16.msra.mxu0 0
      %432 = vmatprep.subr.bf16.mxu0 0
      %433 = vmatpush1.bf16.msra.mxu0 0
      %434 = vmatprep.mubr.bf16.mxu0 0
      %435 = vmatmul.mubr.bf16.gmra.mrb[0].mxu0 %v400
      %v436 = vpop.f32.mrb[0].mxu0
      %v437 = vadd.f32 %v385, %v436
      %v438 = vpop.f32.mrb[0].mxu0
      %v439 = vpop.f32.mrb[0].mxu0
      %v440 = vpop.f32.mrb[0].mxu0
      %441 = vdwg.mxu0
      %v442 = vpack.c.bf16 %v437, %v437
      %444 = vrot.lane.b32.xlu0 %v442, 96
      %v445 = vpop.permute.xlu0 %444
      %vm446 = vcmask 64512
      %v448 = vsel %vm446, %v442, 0
      %v451 = vsel %vm446, %v445, 0
      %453 = vmatprep.subr.bf16.mxu0 0
      %454 = vmatpush1.bf16.xpose.msra.mxu0 %v451
      %455 = vmatprep.subr.bf16.mxu0 0
      %456 = vmatpush1.bf16.xpose.msra.mxu0 0
      %457 = vmatprep.subr.bf16.mxu0 0
      %458 = vmatpush1.bf16.xpose.msra.mxu0 0
      %459 = vmatprep.subr.bf16.mxu0 0
      %460 = vmatpush1.bf16.xpose.msra.mxu0 0
      %461 = vmatprep.subr.bf16.mxu0 0
      %462 = vmatpush1.bf16.xpose.msra.mxu0 0
      %463 = vmatprep.subr.bf16.mxu0 0
      %464 = vmatpush1.bf16.xpose.msra.mxu0 0
      %465 = vmatprep.subr.bf16.mxu0 0
      %466 = vmatpush1.bf16.xpose.msra.mxu0 0
      %467 = vmatprep.subr.bf16.mxu0 0
      %468 = vmatpush1.bf16.xpose.msra.mxu0 0
      %469 = vmatprep.subr.bf16.mxu0 0
      %470 = vmatpush1.bf16.xpose.msra.mxu0 0
      %471 = vmatprep.subr.bf16.mxu0 0
      %472 = vmatpush1.bf16.xpose.msra.mxu0 0
      %473 = vmatprep.subr.bf16.mxu0 0
      %474 = vmatpush1.bf16.xpose.msra.mxu0 0
      %475 = vmatprep.subr.bf16.mxu0 0
      %476 = vmatpush1.bf16.xpose.msra.mxu0 0
      %477 = vmatprep.subr.bf16.mxu0 0
      %478 = vmatpush1.bf16.xpose.msra.mxu0 0
      %479 = vmatprep.subr.bf16.mxu0 0
      %480 = vmatpush1.bf16.xpose.msra.mxu0 0
      %481 = vmatprep.subr.bf16.mxu0 0
      %482 = vmatpush1.bf16.xpose.msra.mxu0 0
      %483 = vmatprep.subr.bf16.mxu0 0
      %484 = vmatpush1.bf16.xpose.msra.mxu0 0
      %485 = vmatprep.mubr.bf16.mxu0 0
      %486 = vmatmul.mubr.bf16.gmra.mrb[0].mxu0 %v448
      %v487 = vpop.f32.mrb[0].mxu0
      %v488 = vadd.f32 0.0, %v487
      %v489 = vpop.f32.mrb[0].mxu0
      %v490 = vpop.f32.mrb[0].mxu0
      %v491 = vpop.f32.mrb[0].mxu0
      %492 = vdwg.mxu0
      %v493 = vmul.f32 %v488, 0.35355338
      %v494 = vsel %vm369, %v493, -1e+09
      %v495 = vsel %vm446, %v494, -inf
      %496 = vmax.xlane.f32.xlu0 %v495
      %v497 = vpop.xlane.xlu0 %496
      %v498 = vsub.f32 %v494, %v497
      %v499 = vmul.f32 %v498, 1.442695
      %v500 = vpow.pop %v499
      %v501 = vsel %vm446, %v500, 0.0
      %502 = vadd.xlane.f32.xlu0 %v501
      %v503 = vpop.xlane.xlu0 %502
      %v504 = vrcp.pop %v503
      %v505 = vmul.f32 %v500, %v504
      %v506 = vpack.c.bf16 %v505, %v505
      %507 = vrot.lane.b32.xlu0 %v442, 64
      %v508 = vpop.permute.xlu0 %507
      %v510 = vsel %vm446, %v506, 0
      %vm512 = vcmask 1043456
      %v514 = vsel %vm512, %v508, 0
      %516 = vmatprep.subr.bf16.mxu0 0
      %517 = vmatpush1.bf16.msra.mxu0 %v514
      %518 = vmatprep.subr.bf16.mxu0 0
      %519 = vmatpush1.bf16.msra.mxu0 0
      %520 = vmatprep.subr.bf16.mxu0 0
      %521 = vmatpush1.bf16.msra.mxu0 0
      %522 = vmatprep.subr.bf16.mxu0 0
      %523 = vmatpush1.bf16.msra.mxu0 0
      %524 = vmatprep.subr.bf16.mxu0 0
      %525 = vmatpush1.bf16.msra.mxu0 0
      %526 = vmatprep.subr.bf16.mxu0 0
      %527 = vmatpush1.bf16.msra.mxu0 0
      %528 = vmatprep.subr.bf16.mxu0 0
      %529 = vmatpush1.bf16.msra.mxu0 0
      %530 = vmatprep.subr.bf16.mxu0 0
      %531 = vmatpush1.bf16.msra.mxu0 0
      %532 = vmatprep.subr.bf16.mxu0 0
      %533 = vmatpush1.bf16.msra.mxu0 0
      %534 = vmatprep.subr.bf16.mxu0 0
      %535 = vmatpush1.bf16.msra.mxu0 0
      %536 = vmatprep.subr.bf16.mxu0 0
      %537 = vmatpush1.bf16.msra.mxu0 0
      %538 = vmatprep.subr.bf16.mxu0 0
      %539 = vmatpush1.bf16.msra.mxu0 0
      %540 = vmatprep.subr.bf16.mxu0 0
      %541 = vmatpush1.bf16.msra.mxu0 0
      %542 = vmatprep.subr.bf16.mxu0 0
      %543 = vmatpush1.bf16.msra.mxu0 0
      %544 = vmatprep.subr.bf16.mxu0 0
      %545 = vmatpush1.bf16.msra.mxu0 0
      %546 = vmatprep.subr.bf16.mxu0 0
      %547 = vmatpush1.bf16.msra.mxu0 0
      %548 = vmatprep.mubr.bf16.mxu0 0
      %549 = vmatmul.mubr.bf16.gmra.mrb[0].mxu0 %v510
      %v550 = vpop.f32.mrb[0].mxu0
      %v551 = vadd.f32 0.0, %v550
      %v552 = vpop.f32.mrb[0].mxu0
      %v553 = vpop.f32.mrb[0].mxu0
      %v554 = vpop.f32.mrb[0].mxu0
      %555 = vdwg.mxu0
      %v556 = vpack.c.bf16 %v551, %v551
      %557 = vrot.lane.b32.xlu0 %v442, 120
      %v558 = vpop.permute.xlu0 %557
      %559 = vrot.lane.b32.xlu0 %v442, 88
      %v560 = vpop.permute.xlu0 %559
      %v562 = vsel %vm446, %v558, 0
      %v565 = vsel %vm446, %v560, 0
      %567 = vmatprep.subr.bf16.mxu0 0
      %568 = vmatpush1.bf16.xpose.msra.mxu0 %v565
      %569 = vmatprep.subr.bf16.mxu0 0
      %570 = vmatpush1.bf16.xpose.msra.mxu0 0
      %571 = vmatprep.subr.bf16.mxu0 0
      %572 = vmatpush1.bf16.xpose.msra.mxu0 0
      %573 = vmatprep.subr.bf16.mxu0 0
      %574 = vmatpush1.bf16.xpose.msra.mxu0 0
      %575 = vmatprep.subr.bf16.mxu0 0
      %576 = vmatpush1.bf16.xpose.msra.mxu0 0
      %577 = vmatprep.subr.bf16.mxu0 0
      %578 = vmatpush1.bf16.xpose.msra.mxu0 0
      %579 = vmatprep.subr.bf16.mxu0 0
      %580 = vmatpush1.bf16.xpose.msra.mxu0 0
      %581 = vmatprep.subr.bf16.mxu0 0
      %582 = vmatpush1.bf16.xpose.msra.mxu0 0
      %583 = vmatprep.subr.bf16.mxu0 0
      %584 = vmatpush1.bf16.xpose.msra.mxu0 0
      %585 = vmatprep.subr.bf16.mxu0 0
      %586 = vmatpush1.bf16.xpose.msra.mxu0 0
      %587 = vmatprep.subr.bf16.mxu0 0
      %588 = vmatpush1.bf16.xpose.msra.mxu0 0
      %589 = vmatprep.subr.bf16.mxu0 0
      %590 = vmatpush1.bf16.xpose.msra.mxu0 0
      %591 = vmatprep.subr.bf16.mxu0 0
      %592 = vmatpush1.bf16.xpose.msra.mxu0 0
      %593 = vmatprep.subr.bf16.mxu0 0
      %594 = vmatpush1.bf16.xpose.msra.mxu0 0
      %595 = vmatprep.subr.bf16.mxu0 0
      %596 = vmatpush1.bf16.xpose.msra.mxu0 0
      %597 = vmatprep.subr.bf16.mxu0 0
      %598 = vmatpush1.bf16.xpose.msra.mxu0 0
      %599 = vmatprep.mubr.bf16.mxu0 0
      %600 = vmatmul.mubr.bf16.gmra.mrb[0].mxu0 %v562
      %v601 = vpop.f32.mrb[0].mxu0
      %v602 = vadd.f32 0.0, %v601
      %v603 = vpop.f32.mrb[0].mxu0
      %v604 = vpop.f32.mrb[0].mxu0
      %v605 = vpop.f32.mrb[0].mxu0
      %606 = vdwg.mxu0
      %v607 = vmul.f32 %v602, 0.35355338
      %v608 = vsel %vm369, %v607, -1e+09
      %v609 = vsel %vm446, %v608, -inf
      %610 = vmax.xlane.f32.xlu0 %v609
      %v611 = vpop.xlane.xlu0 %610
      %v612 = vsub.f32 %v608, %v611
      %v613 = vmul.f32 %v612, 1.442695
      %v614 = vpow.pop %v613
      %v615 = vsel %vm446, %v614, 0.0
      %616 = vadd.xlane.f32.xlu0 %v615
      %v617 = vpop.xlane.xlu0 %616
      %v618 = vrcp.pop %v617
      %v619 = vmul.f32 %v614, %v618
      %v620 = vpack.c.bf16 %v619, %v619
      %621 = vrot.lane.b32.xlu0 %v442, 56
      %v622 = vpop.permute.xlu0 %621
      %v624 = vsel %vm446, %v620, 0
      %v627 = vsel %vm512, %v622, 0
      %629 = vmatprep.subr.bf16.mxu0 0
      %630 = vmatpush1.bf16.msra.mxu0 %v627
      %631 = vmatprep.subr.bf16.mxu0 0
      %632 = vmatpush1.bf16.msra.mxu0 0
      %633 = vmatprep.subr.bf16.mxu0 0
      %634 = vmatpush1.bf16.msra.mxu0 0
      %635 = vmatprep.subr.bf16.mxu0 0
      %636 = vmatpush1.bf16.msra.mxu0 0
      %637 = vmatprep.subr.bf16.mxu0 0
      %638 = vmatpush1.bf16.msra.mxu0 0
      %639 = vmatprep.subr.bf16.mxu0 0
      %640 = vmatpush1.bf16.msra.mxu0 0
      %641 = vmatprep.subr.bf16.mxu0 0
      %642 = vmatpush1.bf16.msra.mxu0 0
      %643 = vmatprep.subr.bf16.mxu0 0
      %644 = vmatpush1.bf16.msra.mxu0 0
      %645 = vmatprep.subr.bf16.mxu0 0
      %646 = vmatpush1.bf16.msra.mxu0 0
      %647 = vmatprep.subr.bf16.mxu0 0
      %648 = vmatpush1.bf16.msra.mxu0 0
      %649 = vmatprep.subr.bf16.mxu0 0
      %650 = vmatpush1.bf16.msra.mxu0 0
      %651 = vmatprep.subr.bf16.mxu0 0
      %652 = vmatpush1.bf16.msra.mxu0 0
      %653 = vmatprep.subr.bf16.mxu0 0
      %654 = vmatpush1.bf16.msra.mxu0 0
      %655 = vmatprep.subr.bf16.mxu0 0
      %656 = vmatpush1.bf16.msra.mxu0 0
      %657 = vmatprep.subr.bf16.mxu0 0
      %658 = vmatpush1.bf16.msra.mxu0 0
      %659 = vmatprep.subr.bf16.mxu0 0
      %660 = vmatpush1.bf16.msra.mxu0 0
      %661 = vmatprep.mubr.bf16.mxu0 0
      %662 = vmatmul.mubr.bf16.gmra.mrb[0].mxu0 %v624
      %v663 = vpop.f32.mrb[0].mxu0
      %v664 = vadd.f32 0.0, %v663
      %v665 = vpop.f32.mrb[0].mxu0
      %v666 = vpop.f32.mrb[0].mxu0
      %v667 = vpop.f32.mrb[0].mxu0
      %668 = vdwg.mxu0
      %v669 = vpack.c.bf16 %v664, %v664
      %v671 = vsel %vm446, %v669, 0
      %v674 = vsel %vm512, %v376, 0
      %676 = vmatprep.subr.bf16.mxu0 0
      %677 = vmatpush1.bf16.msra.mxu0 %v674
      %678 = vmatprep.subr.bf16.mxu0 0
      %679 = vmatpush1.bf16.msra.mxu0 0
      %680 = vmatprep.subr.bf16.mxu0 0
      %681 = vmatpush1.bf16.msra.mxu0 0
      %682 = vmatprep.subr.bf16.mxu0 0
      %683 = vmatpush1.bf16.msra.mxu0 0
      %684 = vmatprep.subr.bf16.mxu0 0
      %685 = vmatpush1.bf16.msra.mxu0 0
      %686 = vmatprep.subr.bf16.mxu0 0
      %687 = vmatpush1.bf16.msra.mxu0 0
      %688 = vmatprep.subr.bf16.mxu0 0
      %689 = vmatpush1.bf16.msra.mxu0 0
      %690 = vmatprep.subr.bf16.mxu0 0
      %691 = vmatpush1.bf16.msra.mxu0 0
      %692 = vmatprep.subr.bf16.mxu0 0
      %693 = vmatpush1.bf16.msra.mxu0 0
      %694 = vmatprep.subr.bf16.mxu0 0
      %695 = vmatpush1.bf16.msra.mxu0 0
      %696 = vmatprep.subr.bf16.mxu0 0
      %697 = vmatpush1.bf16.msra.mxu0 0
      %698 = vmatprep.subr.bf16.mxu0 0
      %699 = vmatpush1.bf16.msra.mxu0 0
      %700 = vmatprep.subr.bf16.mxu0 0
      %701 = vmatpush1.bf16.msra.mxu0 0
      %702 = vmatprep.subr.bf16.mxu0 0
      %703 = vmatpush1.bf16.msra.mxu0 0
      %704 = vmatprep.subr.bf16.mxu0 0
      %705 = vmatpush1.bf16.msra.mxu0 0
      %706 = vmatprep.subr.bf16.mxu0 0
      %707 = vmatpush1.bf16.msra.mxu0 0
      %708 = vmatprep.mubr.bf16.mxu0 0
      %709 = vmatmul.mubr.bf16.gmra.mrb[0].mxu0 %v671
      %v710 = vpop.f32.mrb[0].mxu0
      %v711 = vadd.f32 0.0, %v710
      %v712 = vpop.f32.mrb[0].mxu0
      %v713 = vpop.f32.mrb[0].mxu0
      %v714 = vpop.f32.mrb[0].mxu0
      %715 = vdwg.mxu0
      %v717 = vsel %vm446, %v556, 0
      %v720 = vsel %vm512, %v375, 0
      %722 = vmatprep.subr.bf16.mxu0 0
      %723 = vmatpush1.bf16.msra.mxu0 %v720
      %724 = vmatprep.subr.bf16.mxu0 0
      %725 = vmatpush1.bf16.msra.mxu0 0
      %726 = vmatprep.subr.bf16.mxu0 0
      %727 = vmatpush1.bf16.msra.mxu0 0
      %728 = vmatprep.subr.bf16.mxu0 0
      %729 = vmatpush1.bf16.msra.mxu0 0
      %730 = vmatprep.subr.bf16.mxu0 0
      %731 = vmatpush1.bf16.msra.mxu0 0
      %732 = vmatprep.subr.bf16.mxu0 0
      %733 = vmatpush1.bf16.msra.mxu0 0
      %734 = vmatprep.subr.bf16.mxu0 0
      %735 = vmatpush1.bf16.msra.mxu0 0
      %736 = vmatprep.subr.bf16.mxu0 0
      %737 = vmatpush1.bf16.msra.mxu0 0
      %738 = vmatprep.subr.bf16.mxu0 0
      %739 = vmatpush1.bf16.msra.mxu0 0
      %740 = vmatprep.subr.bf16.mxu0 0
      %741 = vmatpush1.bf16.msra.mxu0 0
      %742 = vmatprep.subr.bf16.mxu0 0
      %743 = vmatpush1.bf16.msra.mxu0 0
      %744 = vmatprep.subr.bf16.mxu0 0
      %745 = vmatpush1.bf16.msra.mxu0 0
      %746 = vmatprep.subr.bf16.mxu0 0
      %747 = vmatpush1.bf16.msra.mxu0 0
      %748 = vmatprep.subr.bf16.mxu0 0
      %749 = vmatpush1.bf16.msra.mxu0 0
      %750 = vmatprep.subr.bf16.mxu0 0
      %751 = vmatpush1.bf16.msra.mxu0 0
      %752 = vmatprep.subr.bf16.mxu0 0
      %753 = vmatpush1.bf16.msra.mxu0 0
      %754 = vmatprep.mubr.bf16.mxu0 0
      %755 = vmatmul.mubr.bf16.gmra.mrb[0].mxu0 %v717
      %v756 = vpop.f32.mrb[0].mxu0
      %v757 = vadd.f32 %v711, %v756
      %v758 = vpop.f32.mrb[0].mxu0
      %v759 = vpop.f32.mrb[0].mxu0
      %v760 = vpop.f32.mrb[0].mxu0
      %761 = vdwg.mxu0
      %762 = vrot.lane.b32.xlu0 %v442, 112
      %v763 = vpop.permute.xlu0 %762
      %764 = vrot.lane.b32.xlu0 %v442, 80
      %v765 = vpop.permute.xlu0 %764
      %v767 = vsel %vm446, %v763, 0
      %v770 = vsel %vm446, %v765, 0
      %772 = vmatprep.subr.bf16.mxu0 0
      %773 = vmatpush1.bf16.xpose.msra.mxu0 %v770
      %774 = vmatprep.subr.bf16.mxu0 0
      %775 = vmatpush1.bf16.xpose.msra.mxu0 0
      %776 = vmatprep.subr.bf16.mxu0 0
      %777 = vmatpush1.bf16.xpose.msra.mxu0 0
      %778 = vmatprep.subr.bf16.mxu0 0
      %779 = vmatpush1.bf16.xpose.msra.mxu0 0
      %780 = vmatprep.subr.bf16.mxu0 0
      %781 = vmatpush1.bf16.xpose.msra.mxu0 0
      %782 = vmatprep.subr.bf16.mxu0 0
      %783 = vmatpush1.bf16.xpose.msra.mxu0 0
      %784 = vmatprep.subr.bf16.mxu0 0
      %785 = vmatpush1.bf16.xpose.msra.mxu0 0
      %786 = vmatprep.subr.bf16.mxu0 0
      %787 = vmatpush1.bf16.xpose.msra.mxu0 0
      %788 = vmatprep.subr.bf16.mxu0 0
      %789 = vmatpush1.bf16.xpose.msra.mxu0 0
      %790 = vmatprep.subr.bf16.mxu0 0
      %791 = vmatpush1.bf16.xpose.msra.mxu0 0
      %792 = vmatprep.subr.bf16.mxu0 0
      %793 = vmatpush1.bf16.xpose.msra.mxu0 0
      %794 = vmatprep.subr.bf16.mxu0 0
      %795 = vmatpush1.bf16.xpose.msra.mxu0 0
      %796 = vmatprep.subr.bf16.mxu0 0
      %797 = vmatpush1.bf16.xpose.msra.mxu0 0
      %798 = vmatprep.subr.bf16.mxu0 0
      %799 = vmatpush1.bf16.xpose.msra.mxu0 0
      %800 = vmatprep.subr.bf16.mxu0 0
      %801 = vmatpush1.bf16.xpose.msra.mxu0 0
      %802 = vmatprep.subr.bf16.mxu0 0
      %803 = vmatpush1.bf16.xpose.msra.mxu0 0
      %804 = vmatprep.mubr.bf16.mxu0 0
      %805 = vmatmul.mubr.bf16.gmra.mrb[0].mxu0 %v767
      %v806 = vpop.f32.mrb[0].mxu0
      %v807 = vadd.f32 0.0, %v806
      %v808 = vpop.f32.mrb[0].mxu0
      %v809 = vpop.f32.mrb[0].mxu0
      %v810 = vpop.f32.mrb[0].mxu0
      %811 = vdwg.mxu0
      %v812 = vmul.f32 %v807, 0.35355338
      %v813 = vsel %vm369, %v812, -1e+09
      %v814 = vsel %vm446, %v813, -inf
      %815 = vmax.xlane.f32.xlu0 %v814
      %v816 = vpop.xlane.xlu0 %815
      %v817 = vsub.f32 %v813, %v816
      %v818 = vmul.f32 %v817, 1.442695
      %v819 = vpow.pop %v818
      %v820 = vsel %vm446, %v819, 0.0
      %821 = vadd.xlane.f32.xlu0 %v820
      %v822 = vpop.xlane.xlu0 %821
      %v823 = vrcp.pop %v822
      %v824 = vmul.f32 %v819, %v823
      %v825 = vpack.c.bf16 %v824, %v824
      %826 = vrot.lane.b32.xlu0 %v442, 48
      %v827 = vpop.permute.xlu0 %826
      %v829 = vsel %vm446, %v825, 0
      %v832 = vsel %vm512, %v827, 0
      %834 = vmatprep.subr.bf16.mxu0 0
      %835 = vmatpush1.bf16.msra.mxu0 %v832
      %836 = vmatprep.subr.bf16.mxu0 0
      %837 = vmatpush1.bf16.msra.mxu0 0
      %838 = vmatprep.subr.bf16.mxu0 0
      %839 = vmatpush1.bf16.msra.mxu0 0
      %840 = vmatprep.subr.bf16.mxu0 0
      %841 = vmatpush1.bf16.msra.mxu0 0
      %842 = vmatprep.subr.bf16.mxu0 0
      %843 = vmatpush1.bf16.msra.mxu0 0
      %844 = vmatprep.subr.bf16.mxu0 0
      %845 = vmatpush1.bf16.msra.mxu0 0
      %846 = vmatprep.subr.bf16.mxu0 0
      %847 = vmatpush1.bf16.msra.mxu0 0
      %848 = vmatprep.subr.bf16.mxu0 0
      %849 = vmatpush1.bf16.msra.mxu0 0
      %850 = vmatprep.subr.bf16.mxu0 0
      %851 = vmatpush1.bf16.msra.mxu0 0
      %852 = vmatprep.subr.bf16.mxu0 0
      %853 = vmatpush1.bf16.msra.mxu0 0
      %854 = vmatprep.subr.bf16.mxu0 0
      %855 = vmatpush1.bf16.msra.mxu0 0
      %856 = vmatprep.subr.bf16.mxu0 0
      %857 = vmatpush1.bf16.msra.mxu0 0
      %858 = vmatprep.subr.bf16.mxu0 0
      %859 = vmatpush1.bf16.msra.mxu0 0
      %860 = vmatprep.subr.bf16.mxu0 0
      %861 = vmatpush1.bf16.msra.mxu0 0
      %862 = vmatprep.subr.bf16.mxu0 0
      %863 = vmatpush1.bf16.msra.mxu0 0
      %864 = vmatprep.subr.bf16.mxu0 0
      %865 = vmatpush1.bf16.msra.mxu0 0
      %866 = vmatprep.mubr.bf16.mxu0 0
      %867 = vmatmul.mubr.bf16.gmra.mrb[0].mxu0 %v829
      %v868 = vpop.f32.mrb[0].mxu0
      %v869 = vadd.f32 0.0, %v868
      %v870 = vpop.f32.mrb[0].mxu0
      %v871 = vpop.f32.mrb[0].mxu0
      %v872 = vpop.f32.mrb[0].mxu0
      %873 = vdwg.mxu0
      %v874 = vpack.c.bf16 %v869, %v869
      %v876 = vsel %vm446, %v874, 0
      %v879 = vsel %vm512, %v377, 0
      %881 = vmatprep.subr.bf16.mxu0 0
      %882 = vmatpush1.bf16.msra.mxu0 %v879
      %883 = vmatprep.subr.bf16.mxu0 0
      %884 = vmatpush1.bf16.msra.mxu0 0
      %885 = vmatprep.subr.bf16.mxu0 0
      %886 = vmatpush1.bf16.msra.mxu0 0
      %887 = vmatprep.subr.bf16.mxu0 0
      %888 = vmatpush1.bf16.msra.mxu0 0
      %889 = vmatprep.subr.bf16.mxu0 0
      %890 = vmatpush1.bf16.msra.mxu0 0
      %891 = vmatprep.subr.bf16.mxu0 0
      %892 = vmatpush1.bf16.msra.mxu0 0
      %893 = vmatprep.subr.bf16.mxu0 0
      %894 = vmatpush1.bf16.msra.mxu0 0
      %895 = vmatprep.subr.bf16.mxu0 0
      %896 = vmatpush1.bf16.msra.mxu0 0
      %897 = vmatprep.subr.bf16.mxu0 0
      %898 = vmatpush1.bf16.msra.mxu0 0
      %899 = vmatprep.subr.bf16.mxu0 0
      %900 = vmatpush1.bf16.msra.mxu0 0
      %901 = vmatprep.subr.bf16.mxu0 0
      %902 = vmatpush1.bf16.msra.mxu0 0
      %903 = vmatprep.subr.bf16.mxu0 0
      %904 = vmatpush1.bf16.msra.mxu0 0
      %905 = vmatprep.subr.bf16.mxu0 0
      %906 = vmatpush1.bf16.msra.mxu0 0
      %907 = vmatprep.subr.bf16.mxu0 0
      %908 = vmatpush1.bf16.msra.mxu0 0
      %909 = vmatprep.subr.bf16.mxu0 0
      %910 = vmatpush1.bf16.msra.mxu0 0
      %911 = vmatprep.subr.bf16.mxu0 0
      %912 = vmatpush1.bf16.msra.mxu0 0
      %913 = vmatprep.mubr.bf16.mxu0 0
      %914 = vmatmul.mubr.bf16.gmra.mrb[0].mxu0 %v876
      %v915 = vpop.f32.mrb[0].mxu0
      %v916 = vadd.f32 0.0, %v915
      %v917 = vpop.f32.mrb[0].mxu0
      %v918 = vpop.f32.mrb[0].mxu0
      %v919 = vpop.f32.mrb[0].mxu0
      %920 = vdwg.mxu0
      %v921 = vadd.f32 %v757, %v916
      %922 = vrot.lane.b32.xlu0 %v442, 104
      %v923 = vpop.permute.xlu0 %922
      %924 = vrot.lane.b32.xlu0 %v442, 72
      %v925 = vpop.permute.xlu0 %924
      %v927 = vsel %vm446, %v923, 0
      %v930 = vsel %vm446, %v925, 0
      %932 = vmatprep.subr.bf16.mxu0 0
      %933 = vmatpush1.bf16.xpose.msra.mxu0 %v930
      %934 = vmatprep.subr.bf16.mxu0 0
      %935 = vmatpush1.bf16.xpose.msra.mxu0 0
      %936 = vmatprep.subr.bf16.mxu0 0
      %937 = vmatpush1.bf16.xpose.msra.mxu0 0
      %938 = vmatprep.subr.bf16.mxu0 0
      %939 = vmatpush1.bf16.xpose.msra.mxu0 0
      %940 = vmatprep.subr.bf16.mxu0 0
      %941 = vmatpush1.bf16.xpose.msra.mxu0 0
      %942 = vmatprep.subr.bf16.mxu0 0
      %943 = vmatpush1.bf16.xpose.msra.mxu0 0
      %944 = vmatprep.subr.bf16.mxu0 0
      %945 = vmatpush1.bf16.xpose.msra.mxu0 0
      %946 = vmatprep.subr.bf16.mxu0 0
      %947 = vmatpush1.bf16.xpose.msra.mxu0 0
      %948 = vmatprep.subr.bf16.mxu0 0
      %949 = vmatpush1.bf16.xpose.msra.mxu0 0
      %950 = vmatprep.subr.bf16.mxu0 0
      %951 = vmatpush1.bf16.xpose.msra.mxu0 0
      %952 = vmatprep.subr.bf16.mxu0 0
      %953 = vmatpush1.bf16.xpose.msra.mxu0 0
      %954 = vmatprep.subr.bf16.mxu0 0
      %955 = vmatpush1.bf16.xpose.msra.mxu0 0
      %956 = vmatprep.subr.bf16.mxu0 0
      %957 = vmatpush1.bf16.xpose.msra.mxu0 0
      %958 = vmatprep.subr.bf16.mxu0 0
      %959 = vmatpush1.bf16.xpose.msra.mxu0 0
      %960 = vmatprep.subr.bf16.mxu0 0
      %961 = vmatpush1.bf16.xpose.msra.mxu0 0
      %962 = vmatprep.subr.bf16.mxu0 0
      %963 = vmatpush1.bf16.xpose.msra.mxu0 0
      %964 = vmatprep.mubr.bf16.mxu0 0
      %965 = vmatmul.mubr.bf16.gmra.mrb[0].mxu0 %v927
      %v966 = vpop.f32.mrb[0].mxu0
      %v967 = vadd.f32 0.0, %v966
      %v968 = vpop.f32.mrb[0].mxu0
      %v969 = vpop.f32.mrb[0].mxu0
      %v970 = vpop.f32.mrb[0].mxu0
      %971 = vdwg.mxu0
      %v972 = vmul.f32 %v967, 0.35355338
      %v973 = vsel %vm369, %v972, -1e+09
      %v974 = vsel %vm446, %v973, -inf
      %975 = vmax.xlane.f32.xlu0 %v974
      %v976 = vpop.xlane.xlu0 %975
      %v977 = vsub.f32 %v973, %v976
      %v978 = vmul.f32 %v977, 1.442695
      %v979 = vpow.pop %v978
      %v980 = vsel %vm446, %v979, 0.0
      %981 = vadd.xlane.f32.xlu0 %v980
      %v982 = vpop.xlane.xlu0 %981
      %v983 = vrcp.pop %v982
      %v984 = vmul.f32 %v979, %v983
      %v985 = vpack.c.bf16 %v984, %v984
      %986 = vrot.lane.b32.xlu0 %v442, 40
      %v987 = vpop.permute.xlu0 %986
      %v989 = vsel %vm446, %v985, 0
      %v992 = vsel %vm512, %v987, 0
      %994 = vmatprep.subr.bf16.mxu0 0
      %995 = vmatpush1.bf16.msra.mxu0 %v992
      %996 = vmatprep.subr.bf16.mxu0 0
      %997 = vmatpush1.bf16.msra.mxu0 0
      %998 = vmatprep.subr.bf16.mxu0 0
      %999 = vmatpush1.bf16.msra.mxu0 0
      %1000 = vmatprep.subr.bf16.mxu0 0
      %1001 = vmatpush1.bf16.msra.mxu0 0
      %1002 = vmatprep.subr.bf16.mxu0 0
      %1003 = vmatpush1.bf16.msra.mxu0 0
      %1004 = vmatprep.subr.bf16.mxu0 0
      %1005 = vmatpush1.bf16.msra.mxu0 0
      %1006 = vmatprep.subr.bf16.mxu0 0
      %1007 = vmatpush1.bf16.msra.mxu0 0
      %1008 = vmatprep.subr.bf16.mxu0 0
      %1009 = vmatpush1.bf16.msra.mxu0 0
      %1010 = vmatprep.subr.bf16.mxu0 0
      %1011 = vmatpush1.bf16.msra.mxu0 0
      %1012 = vmatprep.subr.bf16.mxu0 0
      %1013 = vmatpush1.bf16.msra.mxu0 0
      %1014 = vmatprep.subr.bf16.mxu0 0
      %1015 = vmatpush1.bf16.msra.mxu0 0
      %1016 = vmatprep.subr.bf16.mxu0 0
      %1017 = vmatpush1.bf16.msra.mxu0 0
      %1018 = vmatprep.subr.bf16.mxu0 0
      %1019 = vmatpush1.bf16.msra.mxu0 0
      %1020 = vmatprep.subr.bf16.mxu0 0
      %1021 = vmatpush1.bf16.msra.mxu0 0
      %1022 = vmatprep.subr.bf16.mxu0 0
      %1023 = vmatpush1.bf16.msra.mxu0 0
      %1024 = vmatprep.subr.bf16.mxu0 0
      %1025 = vmatpush1.bf16.msra.mxu0 0
      %1026 = vmatprep.mubr.bf16.mxu0 0
      %1027 = vmatmul.mubr.bf16.gmra.mrb[0].mxu0 %v989
      %v1028 = vpop.f32.mrb[0].mxu0
      %v1029 = vadd.f32 0.0, %v1028
      %v1030 = vpop.f32.mrb[0].mxu0
      %v1031 = vpop.f32.mrb[0].mxu0
      %v1032 = vpop.f32.mrb[0].mxu0
      %1033 = vdwg.mxu0
      %v1034 = vpack.c.bf16 %v1029, %v1029
      %v1036 = vsel %vm446, %v1034, 0
      %v1039 = vsel %vm512, %v378, 0
      %1041 = vmatprep.subr.bf16.mxu0 0
      %1042 = vmatpush1.bf16.msra.mxu0 %v1039
      %1043 = vmatprep.subr.bf16.mxu0 0
      %1044 = vmatpush1.bf16.msra.mxu0 0
      %1045 = vmatprep.subr.bf16.mxu0 0
      %1046 = vmatpush1.bf16.msra.mxu0 0
      %1047 = vmatprep.subr.bf16.mxu0 0
      %1048 = vmatpush1.bf16.msra.mxu0 0
      %1049 = vmatprep.subr.bf16.mxu0 0
      %1050 = vmatpush1.bf16.msra.mxu0 0
      %1051 = vmatprep.subr.bf16.mxu0 0
      %1052 = vmatpush1.bf16.msra.mxu0 0
      %1053 = vmatprep.subr.bf16.mxu0 0
      %1054 = vmatpush1.bf16.msra.mxu0 0
      %1055 = vmatprep.subr.bf16.mxu0 0
      %1056 = vmatpush1.bf16.msra.mxu0 0
      %1057 = vmatprep.subr.bf16.mxu0 0
      %1058 = vmatpush1.bf16.msra.mxu0 0
      %1059 = vmatprep.subr.bf16.mxu0 0
      %1060 = vmatpush1.bf16.msra.mxu0 0
      %1061 = vmatprep.subr.bf16.mxu0 0
      %1062 = vmatpush1.bf16.msra.mxu0 0
      %1063 = vmatprep.subr.bf16.mxu0 0
      %1064 = vmatpush1.bf16.msra.mxu0 0
      %1065 = vmatprep.subr.bf16.mxu0 0
      %1066 = vmatpush1.bf16.msra.mxu0 0
      %1067 = vmatprep.subr.bf16.mxu0 0
      %1068 = vmatpush1.bf16.msra.mxu0 0
      %1069 = vmatprep.subr.bf16.mxu0 0
      %1070 = vmatpush1.bf16.msra.mxu0 0
      %1071 = vmatprep.subr.bf16.mxu0 0
      %1072 = vmatpush1.bf16.msra.mxu0 0
      %1073 = vmatprep.mubr.bf16.mxu0 0
      %1074 = vmatmul.mubr.bf16.gmra.mrb[0].mxu0 %v1036
      %v1075 = vpop.f32.mrb[0].mxu0
      %v1076 = vadd.f32 0.0, %v1075
      %v1077 = vpop.f32.mrb[0].mxu0
      %v1078 = vpop.f32.mrb[0].mxu0
      %v1079 = vpop.f32.mrb[0].mxu0
      %1080 = vdwg.mxu0
      %v1081 = vadd.f32 %v921, %v1076
      %v1083 = vlaneseq
      %v1084 = vshrl.u32 %v1083, 7
      %v1085 = vsub.s32 0, %v1084
      %v1086 = vrot.slane %v379, %v1085
      %v1088 = vadd.f32 %v1081, %v1086
      %v1089 = vadd.f32 %v316, %v1088
      %1090 = vst.msk [vmem:[%s314] sm:$0xff] %vm319, %v1089
      %p1091 = scmp.lt.s32.totalorder %s19, 1
      %s1092 = scalar_select %p1091, %s19, 1
      %s1093 = smul.addr %s1092, 8
      %s1094 = scalar_lea.vmem %s8, %s1093
      // Predicated region
      $region53: #{transformer_forward.17} parent=51 // pred_check
        %p1095 = pneg %p215
      $region54: #{transformer_forward.17} parent=51 // pred_check_branch
        %1097 = sbr.rel (%p1095) target = $region56
      $region55: #{transformer_forward.17} parent=51 // pred_region
        _
      $region56: #{transformer_forward.17} parent=51 // pred_fallthru
        _
    $region52: #{transformer_forward.17} parent=5 // pred_fallthru
      _
    %p1098 = scmp.le.s32.totalorder 2, %s14
    // Predicated region
    $region57: #{transformer_forward.17} parent=5 // pred_check
      %p1099 = pneg %p1098
    $region58: #{transformer_forward.17} parent=5 // pred_check_branch
      %1101 = sbr.rel (%p1099) target = $region60
    $region59: #{transformer_forward.17} parent=5 // pred_region
      %s1102 = ssub.s32 %s14, 2
      // Predicated region
      $region61: #{transformer_forward.17} parent=59 // pred_check
        %p1103 = pneg %p221
      $region62: #{transformer_forward.17} parent=59 // pred_check_branch
        %1105 = sbr.rel (%p1103) target = $region64
      $region63: #{transformer_forward.17} parent=59 // pred_region
        %p1106 = scmp.lt.s32.totalorder %s20, 1
        %s1107 = scalar_select %p1106, %s20, 1
        %s1108 = smul.addr %s1107, 8
        %s1109 = scalar_lea.vmem %s8, %s1108
      $region64: #{transformer_forward.17} parent=59 // pred_fallthru
        _
    $region60: #{transformer_forward.17} parent=5 // pred_fallthru
      _
  $region6: #{transformer_forward.17} parent=0 // loop_footer
    %s18 = sadd.s32 1, %s14
  $region7: #{transformer_forward.17} parent=0 // loop_footer_branch
    %13 = sbr.rel target = $region3
  $region8: #{transformer_forward.17} parent=0 // loop_exit
    _

// kernel: transformer_forward.23
$region0: #{transformer_forward.23}
  #allocation0 [shape = 'u32[]', space=smem, size = 0x4, offset = 0x4, fixed_abs, tag = 'smem constant byte address 0x4 - core index']
  #allocation1 [shape = 'u32[144,128]{1,0:T(1,128)}', space=vmem, size = 0x12000, scoped, tag = 'internal scratch']
  %s0 = inlined_call_operand.vmem [shape: f32[2,8,32], index: 0, kind: input, shape index: {}]
  %s1 = inlined_call_operand.vmem [shape: f32[1,32], index: 1, kind: input, shape index: {}]
  %s2 = inlined_call_operand.vmem [shape: f32[1,32], index: 2, kind: input, shape index: {}]
  %s3 = inlined_call_operand.vmem [shape: bf16[32,128], index: 3, kind: input, shape index: {}]
  %s4 = inlined_call_operand.vmem [shape: f32[1,128], index: 4, kind: input, shape index: {}]
  %s5 = inlined_call_operand.hbm [shape: f32[2,8,128], index: 5, kind: output, shape index: {}]
  %s6 = sld [smem:[#allocation0]]
  $region53: #{transformer_forward.23} parent=0
    _
  %s8 = ssub.s32 1, %s6
  %s9 = scalar_select 0, %s8, %s6
  $region1: #{transformer_forward.23} parent=0
    #allocation2 [shape = 'u8[8192]{0}', space=vmem, size = 0x2000, scoped, tag = 'output window, operand 0']
    #allocation3 [shape = 's32[2]{0}', space=sflag, size = 0x8, scoped, tag = 'scoped memory for transformer_forward.23']
    %10 = vsyncpa [#allocation3], 0
    %s11 = scalar_lea.sflag [#allocation3], 1
    %12 = vsyncpa %s11, 0
    loop: start=0, step=1, limit=4
    $region2: #{transformer_forward.23} parent=1 // loop_pre_header
      _
    $region3: #{transformer_forward.23} parent=1 // loop_header
      %s14 = sphi 0, %s18
      %p15 = scmp.ge.s32.totalorder %s14, 4
      %s24 = sphi 0, %s26
      %s27 = sphi 0, %s24
      %s28 = sphi 0, %s27
      %s44 = sphi 0, %s28
      %s48 = sphi 0, %s48
      %s50 = sphi 0, %s48
      %s51 = sphi 0, %s50
      %s65 = sphi 0, %s51
      %s69 = sphi 0, %s69
      %s71 = sphi 0, %s69
      %s72 = sphi 0, %s71
      %s86 = sphi 0, %s72
      %s90 = sphi 0, %s90
      %s92 = sphi 0, %s90
      %s93 = sphi 0, %s92
      %s107 = sphi 0, %s93
      %s111 = sphi 0, %s111
      %s113 = sphi 0, %s111
      %s114 = sphi 0, %s113
      %s128 = sphi 0, %s114
      %s134 = sphi 0, %s136
      %s137 = sphi 0, %s134
      %s138 = sphi 0, %s137
      %s154 = sphi 0, %s138
    $region4: #{transformer_forward.23} parent=1 // loop_header_branch
      %17 = sbr.rel (%p15) target = $region8
    $region5: #{transformer_forward.23} parent=1 // loop_body
      %s19 = ssub.s32 %s14, 1
      %s20 = ssub.s32 %s14, 2
      %s21 = sadd.s32 %s14, 1
      %s22 = ssub.s32 %s14, %s21
      %p23 = scmp.eq.s32.totalorder %s22, 0
      %s25 = sadd.s32 %s24, 1
      %s26 = scalar_select %p23, %s24, %s25
      %p29 = pneg %p23
      %p30 = scmp.eq.s32.totalorder %s14, 1
      %p31 = por %p29, %p30
      %p32 = scmp.ne.s32.totalorder %s24, %s27
      %p33 = scmp.eq.s32.totalorder %s14, 0
      %p34 = por %p32, %p33
      %p35 = scmp.ne.s32.totalorder %s24, %s27
      %p36 = scmp.eq.s32.totalorder %s19, 1
      %p37 = por %p35, %p36
      %p38 = scmp.ne.s32.totalorder %s27, %s28
      %p39 = scmp.eq.s32.totalorder %s19, 0
      %p40 = por %p38, %p39
      %p41 = scmp.ne.s32.totalorder %s27, %s28
      %p42 = scmp.eq.s32.totalorder %s20, 1
      %p43 = por %p41, %p42
      %p45 = scmp.ne.s32.totalorder %s28, %s44
      %p46 = scmp.eq.s32.totalorder %s20, 0
      %p47 = por %p45, %p46
      %s49 = sadd.s32 %s48, 1
      %p52 = scmp.eq.s32.totalorder %s14, 1
      %p53 = scmp.ne.s32.totalorder %s48, %s50
      %p54 = scmp.eq.s32.totalorder %s14, 0
      %p55 = por %p53, %p54
      %p56 = scmp.ne.s32.totalorder %s48, %s50
      %p57 = scmp.eq.s32.totalorder %s19, 1
      %p58 = por %p56, %p57
      %p59 = scmp.ne.s32.totalorder %s50, %s51
      %p60 = scmp.eq.s32.totalorder %s19, 0
      %p61 = por %p59, %p60
      %p62 = scmp.ne.s32.totalorder %s50, %s51
      %p63 = scmp.eq.s32.totalorder %s20, 1
      %p64 = por %p62, %p63
      %p66 = scmp.ne.s32.totalorder %s51, %s65
      %p67 = scmp.eq.s32.totalorder %s20, 0
      %p68 = por %p66, %p67
      %s70 = sadd.s32 %s69, 1
      %p73 = scmp.eq.s32.totalorder %s14, 1
      %p74 = scmp.ne.s32.totalorder %s69, %s71
      %p75 = scmp.eq.s32.totalorder %s14, 0
      %p76 = por %p74, %p75
      %p77 = scmp.ne.s32.totalorder %s69, %s71
      %p78 = scmp.eq.s32.totalorder %s19, 1
      %p79 = por %p77, %p78
      %p80 = scmp.ne.s32.totalorder %s71, %s72
      %p81 = scmp.eq.s32.totalorder %s19, 0
      %p82 = por %p80, %p81
      %p83 = scmp.ne.s32.totalorder %s71, %s72
      %p84 = scmp.eq.s32.totalorder %s20, 1
      %p85 = por %p83, %p84
      %p87 = scmp.ne.s32.totalorder %s72, %s86
      %p88 = scmp.eq.s32.totalorder %s20, 0
      %p89 = por %p87, %p88
      %s91 = sadd.s32 %s90, 1
      %p94 = scmp.eq.s32.totalorder %s14, 1
      %p95 = scmp.ne.s32.totalorder %s90, %s92
      %p96 = scmp.eq.s32.totalorder %s14, 0
      %p97 = por %p95, %p96
      %p98 = scmp.ne.s32.totalorder %s90, %s92
      %p99 = scmp.eq.s32.totalorder %s19, 1
      %p100 = por %p98, %p99
      %p101 = scmp.ne.s32.totalorder %s92, %s93
      %p102 = scmp.eq.s32.totalorder %s19, 0
      %p103 = por %p101, %p102
      %p104 = scmp.ne.s32.totalorder %s92, %s93
      %p105 = scmp.eq.s32.totalorder %s20, 1
      %p106 = por %p104, %p105
      %p108 = scmp.ne.s32.totalorder %s93, %s107
      %p109 = scmp.eq.s32.totalorder %s20, 0
      %p110 = por %p108, %p109
      %s112 = sadd.s32 %s111, 1
      %p115 = scmp.eq.s32.totalorder %s14, 1
      %p116 = scmp.ne.s32.totalorder %s111, %s113
      %p117 = scmp.eq.s32.totalorder %s14, 0
      %p118 = por %p116, %p117
      %p119 = scmp.ne.s32.totalorder %s111, %s113
      %p120 = scmp.eq.s32.totalorder %s19, 1
      %p121 = por %p119, %p120
      %p122 = scmp.ne.s32.totalorder %s113, %s114
      %p123 = scmp.eq.s32.totalorder %s19, 0
      %p124 = por %p122, %p123
      %p125 = scmp.ne.s32.totalorder %s113, %s114
      %p126 = scmp.eq.s32.totalorder %s20, 1
      %p127 = por %p125, %p126
      %p129 = scmp.ne.s32.totalorder %s114, %s128
      %p130 = scmp.eq.s32.totalorder %s20, 0
      %p131 = por %p129, %p130
      %s132 = ssub.s32 %s14, %s21
      %p133 = scmp.eq.s32.totalorder %s132, 0
      %s135 = sadd.s32 %s134, 1
      %s136 = scalar_select %p133, %s134, %s135
      %p139 = pneg %p133
      %p140 = scmp.eq.s32.totalorder %s14, 1
      %p141 = por %p139, %p140
      %p142 = scmp.ne.s32.totalorder %s134, %s137
      %p143 = scmp.eq.s32.totalorder %s14, 0
      %p144 = por %p142, %p143
      %p145 = scmp.ne.s32.totalorder %s134, %s137
      %p146 = scmp.eq.s32.totalorder %s19, 1
      %p147 = por %p145, %p146
      %p148 = scmp.ne.s32.totalorder %s137, %s138
      %p149 = scmp.eq.s32.totalorder %s19, 0
      %p150 = por %p148, %p149
      %p151 = scmp.ne.s32.totalorder %s137, %s138
      %p152 = scmp.eq.s32.totalorder %s20, 1
      %p153 = por %p151, %p152
      %p155 = scmp.ne.s32.totalorder %s138, %s154
      %p156 = scmp.eq.s32.totalorder %s20, 0
      %p157 = por %p155, %p156
      %p158 = scmp.le.s32.totalorder 1, %s14
      %p159 = scmp.lt.s32.totalorder %s14, 3
      %p160 = pnand %p158, %p159
      %p161 = pneg %p160
      // Predicated region
      $region9: #{transformer_forward.23} parent=5 // pred_check
        _
      $region10: #{transformer_forward.23} parent=5 // pred_check_branch
        %163 = sbr.rel (%p160) target = $region12
      $region11: #{transformer_forward.23} parent=5 // pred_region
        %s164 = ssub.s32 %s14, 1
        // Predicated region
        $region13: #{transformer_forward.23} parent=11 // pred_check
          %p165 = pneg %p61
        $region14: #{transformer_forward.23} parent=11 // pred_check_branch
          %167 = sbr.rel (%p165) target = $region16
        $region15: #{transformer_forward.23} parent=11 // pred_region
          _
        $region16: #{transformer_forward.23} parent=11 // pred_fallthru
          _
        // Predicated region
        $region17: #{transformer_forward.23} parent=11 // pred_check
          %p168 = pneg %p82
        $region18: #{transformer_forward.23} parent=11 // pred_check_branch
          %170 = sbr.rel (%p168) target = $region20
        $region19: #{transformer_forward.23} parent=11 // pred_region
          _
        $region20: #{transformer_forward.23} parent=11 // pred_fallthru
          _
        // Predicated region
        $region21: #{transformer_forward.23} parent=11 // pred_check
          %p171 = pneg %p103
        $region22: #{transformer_forward.23} parent=11 // pred_check_branch
          %173 = sbr.rel (%p171) target = $region24
        $region23: #{transformer_forward.23} parent=11 // pred_region
          _
        $region24: #{transformer_forward.23} parent=11 // pred_fallthru
          _
        // Predicated region
        $region25: #{transformer_forward.23} parent=11 // pred_check
          %p174 = pneg %p124
        $region26: #{transformer_forward.23} parent=11 // pred_check_branch
          %176 = sbr.rel (%p174) target = $region28
        $region27: #{transformer_forward.23} parent=11 // pred_region
          _
        $region28: #{transformer_forward.23} parent=11 // pred_fallthru
          _
      $region12: #{transformer_forward.23} parent=5 // pred_fallthru
        _
      %p177 = scmp.lt.s32.totalorder %s14, 2
      // Predicated region
      $region29: #{transformer_forward.23} parent=5 // pred_check
        %p178 = pneg %p177
      $region30: #{transformer_forward.23} parent=5 // pred_check_branch
        %180 = sbr.rel (%p178) target = $region32
      $region31: #{transformer_forward.23} parent=5 // pred_region
        // Predicated region
        $region33: #{transformer_forward.23} parent=31 // pred_check
          %p181 = pneg %p34
        $region34: #{transformer_forward.23} parent=31 // pred_check_branch
          %183 = sbr.rel (%p181) target = $region36
        $region35: #{transformer_forward.23} parent=31 // pred_region
          %p184 = scmp.lt.s32.totalorder %s14, 1
          %s185 = scalar_select %p184, %s14, 1
          %s186 = smul.addr %s185, 8
          %s187 = scalar_lea.vmem %s0, %s186
        $region36: #{transformer_forward.23} parent=31 // pred_fallthru
          _
      $region32: #{transformer_forward.23} parent=5 // pred_fallthru
        _
      %p188 = scmp.le.s32.totalorder 1, %s14
      %p189 = scmp.lt.s32.totalorder %s14, 3
      %p190 = pnand %p188, %p189
      %p191 = pneg %p190
      // Predicated region
      $region37: #{transformer_forward.23} parent=5 // pred_check
        _
      $region38: #{transformer_forward.23} parent=5 // pred_check_branch
        %193 = sbr.rel (%p190) target = $region40
      $region39: #{transformer_forward.23} parent=5 // pred_region
        %s194 = ssub.s32 %s14, 1
        %p195 = scmp.lt.s32.totalorder %s19, 1
        %s196 = scalar_select %p195, %s19, 1
        %s197 = smul.addr %s196, 8
        %s198 = scalar_lea.vmem %s0, %s197
        %p199 = pneg %p40
        %p200 = pneg %p37
        %p201 = pneg %p61
        %p202 = pneg %p58
        %p203 = pneg %p82
        %p204 = pneg %p79
        %p205 = pneg %p103
        %p206 = pneg %p100
        %p207 = pneg %p124
        %p208 = pneg %p121
        %p209 = pneg %p150
        %p210 = pneg %p147
        %s211 = sand.u32 %s137, 1
        %s212 = scalar_lea.sflag [#allocation3], %s211
        %s213 = sand.u32 %s137, 1
        %s214 = smul.addr %s213, 8
        %s215 = scalar_lea.vmem [#allocation2], %s214
        %p216 = scmp.lt.s32.totalorder %s19, 1
        %s217 = scalar_select %p216, %s19, 1
        %s218 = smul.addr %s217, 8
        %s219 = scalar_lea.vmem %s0, %s218
        %v221 = vld [vmem:[%s219] sm:$0xff]
        %v222 = vld [vmem:[%s1] sm:$0x1]
        %v223 = vld [vmem:[%s2] sm:$0x1]
        %vm224 = vcmask 261120
        %v225 = vsel %vm224, %v221, 0.0
        %226 = vadd.xlane.f32.xlu0 %v225
        %v227 = vpop.xlane.xlu0 %226
        %v228 = vrcp.pop 32.0
        %v229 = vmul.f32 %v227, %v228
        %v230 = vsub.f32 %v221, %v229
        %v231 = vmul.f32 %v230, %v230
        %v232 = vsel %vm224, %v231, 0.0
        %233 = vadd.xlane.f32.xlu0 %v232
        %v234 = vpop.xlane.xlu0 %233
        %v235 = vrcp.pop 31.0
        %v236 = vmul.f32 %v234, %v235
        %v237 = vrsqrt.pop %v236
        %v238 = vmul.f32 %v236, %v237
        %vm239 = vcmp.eq.f32.partialorder %v236, inf
        %v240 = vsel %vm239, %v236, %v238
        %vm241 = vcmp.eq.f32.partialorder %v236, 0.0
        %v242 = vand.u32 %v236, 2147483648
        %v243 = vsel %vm241, %v242, %v240
        %v244 = vadd.f32 %v243, 1e-06
        %v245 = vrcp.pop %v244
        %v247 = vlaneseq
        %v248 = vshrl.u32 %v247, 7
        %v249 = vsub.s32 0, %v248
        %v250 = vrot.slane %v222, %v249
        %v252 = vmul.f32 %v250, %v230
        %v253 = vmul.f32 %v252, %v245
        %v255 = vlaneseq
        %v256 = vshrl.u32 %v255, 7
        %v257 = vsub.s32 0, %v256
        %v258 = vrot.slane %v223, %v257
        %v260 = vadd.f32 %v253, %v258
        %v261 = vpack.c.bf16 %v260, %v260
        %v262 = vld [vmem:[%s3] sm:$0xf]
        %v263 = vld [vmem:[%s3 + $0x4] sm:$0xf]
        %v264 = vld [vmem:[%s3 + $0x8] sm:$0xf]
        %v265 = vld [vmem:[%s3 + $0xc] sm:$0xf]
        %v266 = vld [vmem:[%s4] sm:$0x1]
        %v268 = vlaneseq
        %v269 = vshrl.u32 %v268, 7
        %v270 = vsub.s32 0, %v269
        %v271 = vrot.slane %v266, %v270
        %v277 = vunpack.c.l.b16 %v262
        %v278 = vunpack.c.l.b16 %v263
        %v279 = vunpack.c.l.b16 %v264
        %v280 = vunpack.c.l.b16 %v265
        %v281 = vpack.c.b16 %v278, %v277
        %v282 = vpack.c.b16 %v280, %v279
        %v286 = vsel %vm224, %v261, 0
        %288 = vmatprep.subr.bf16.mxu0 0
        %289 = vmatpush1.bf16.msra.mxu0 %v281
        %290 = vmatprep.subr.bf16.mxu0 0
        %291 = vmatpush1.bf16.msra.mxu0 %v282
        %292 = vmatprep.subr.bf16.mxu0 0
        %293 = vmatpush1.bf16.msra.mxu0 0
        %294 = vmatprep.subr.bf16.mxu0 0
        %295 = vmatpush1.bf16.msra.mxu0 0
        %296 = vmatprep.subr.bf16.mxu0 0
        %297 = vmatpush1.bf16.msra.mxu0 0
        %298 = vmatprep.subr.bf16.mxu0 0
        %299 = vmatpush1.bf16.msra.mxu0 0
        %300 = vmatprep.subr.bf16.mxu0 0
        %301 = vmatpush1.bf16.msra.mxu0 0
        %302 = vmatprep.subr.bf16.mxu0 0
        %303 = vmatpush1.bf16.msra.mxu0 0
        %304 = vmatprep.subr.bf16.mxu0 0
        %305 = vmatpush1.bf16.msra.mxu0 0
        %306 = vmatprep.subr.bf16.mxu0 0
        %307 = vmatpush1.bf16.msra.mxu0 0
        %308 = vmatprep.subr.bf16.mxu0 0
        %309 = vmatpush1.bf16.msra.mxu0 0
        %310 = vmatprep.subr.bf16.mxu0 0
        %311 = vmatpush1.bf16.msra.mxu0 0
        %312 = vmatprep.subr.bf16.mxu0 0
        %313 = vmatpush1.bf16.msra.mxu0 0
        %314 = vmatprep.subr.bf16.mxu0 0
        %315 = vmatpush1.bf16.msra.mxu0 0
        %316 = vmatprep.subr.bf16.mxu0 0
        %317 = vmatpush1.bf16.msra.mxu0 0
        %318 = vmatprep.subr.bf16.mxu0 0
        %319 = vmatpush1.bf16.msra.mxu0 0
        %320 = vmatprep.mubr.bf16.mxu0 0
        %321 = vmatmul.mubr.bf16.gmra.mrb[0].mxu0 %v286
        %v322 = vpop.f32.mrb[0].mxu0
        %v323 = vadd.f32 %v271, %v322
        %v324 = vpop.f32.mrb[0].mxu0
        %v325 = vpop.f32.mrb[0].mxu0
        %v326 = vpop.f32.mrb[0].mxu0
        %327 = vdwg.mxu0
        %328 = vst [vmem:[%s215] sm:$0xff] %v323
        %s329 = sand.u32 %s137, 1
        %s330 = scalar_lea.sflag [#allocation3], %s329
        %s331 = sand.u32 %s137, 1
        %s332 = smul.addr %s331, 8
        %s333 = scalar_lea.vmem [#allocation2], %s332
        // Predicated region
        $region41: #{transformer_forward.23} parent=39 // pred_check
          %p334 = pneg %p147
        $region42: #{transformer_forward.23} parent=39 // pred_check_branch
          %336 = sbr.rel (%p334) target = $region44
        $region43: #{transformer_forward.23} parent=39 // pred_region
          %s338 = ssub.s32 128, 128
          %339 = vsyncadd %s330, %s338
          %s340 = smul.addr %s19, 128
          %s341 = scalar_lea.hbm %s5, %s340
          %s343 = sshll.u32 %s333, 4
          %s344 = int_to_ptr.vmem [resolvable:$true] %s343
          %346 = dma.vmem_to_hbm [thread:$0]  %s344, 128, %s341, %s330
        $region44: #{transformer_forward.23} parent=39 // pred_fallthru
          _
      $region40: #{transformer_forward.23} parent=5 // pred_fallthru
        _
      %p347 = scmp.le.s32.totalorder 2, %s14
      // Predicated region
      $region45: #{transformer_forward.23} parent=5 // pred_check
        %p348 = pneg %p347
      $region46: #{transformer_forward.23} parent=5 // pred_check_branch
        %350 = sbr.rel (%p348) target = $region48
      $region47: #{transformer_forward.23} parent=5 // pred_region
        %s351 = ssub.s32 %s14, 2
        // Predicated region
        $region49: #{transformer_forward.23} parent=47 // pred_check
          %p352 = pneg %p153
        $region50: #{transformer_forward.23} parent=47 // pred_check_branch
          %354 = sbr.rel (%p352) target = $region52
        $region51: #{transformer_forward.23} parent=47 // pred_region
          %s355 = sand.u32 %s138, 1
          %s356 = scalar_lea.sflag [#allocation3], %s355
          %s357 = sand.u32 %s138, 1
          %s358 = smul.addr %s357, 8
          %s359 = scalar_lea.vmem [#allocation2], %s358
          %360 = dma.done %s356, 128
        $region52: #{transformer_forward.23} parent=47 // pred_fallthru
          _
      $region48: #{transformer_forward.23} parent=5 // pred_fallthru
        _
    $region6: #{transformer_forward.23} parent=1 // loop_footer
      %s18 = sadd.s32 1, %s14
    $region7: #{transformer_forward.23} parent=1 // loop_footer_branch
      %13 = sbr.rel target = $region3
    $region8: #{transformer_forward.23} parent=1 // loop_exit
      _
    %361 = vsyncpa [#allocation3], 1
    %s362 = scalar_lea.sflag [#allocation3], 1
    %363 = vsyncpa %s362, 1

// kernel: transformer_forward.18
$region0: #{transformer_forward.18}
  #allocation0 [shape = 'u32[]', space=smem, size = 0x4, offset = 0x4, fixed_abs, tag = 'smem constant byte address 0x4 - core index']
  #allocation1 [shape = 'u32[144,128]{1,0:T(1,128)}', space=vmem, size = 0x12000, scoped, tag = 'internal scratch']
  %s0 = inlined_call_operand.vmem [shape: f32[2,8,32], index: 0, kind: input, shape index: {}]
  %s1 = inlined_call_operand.vmem [shape: f32[2,8,32], index: 1, kind: input, shape index: {}]
  %s2 = inlined_call_operand.vmem [shape: f32[2,1,8], index: 2, kind: input, shape index: {}]
  %s3 = inlined_call_operand.vmem [shape: f32[1,32], index: 3, kind: input, shape index: {}]
  %s4 = inlined_call_operand.vmem [shape: f32[1,32], index: 4, kind: input, shape index: {}]
  %s5 = inlined_call_operand.vmem [shape: bf16[32,96], index: 5, kind: input, shape index: {}]
  %s6 = inlined_call_operand.vmem [shape: f32[1,96], index: 6, kind: input, shape index: {}]
  %s7 = inlined_call_operand.vmem [shape: bf16[32,32], index: 7, kind: input, shape index: {}]
  %s8 = inlined_call_operand.vmem [shape: f32[1,32], index: 8, kind: input, shape index: {}]
  %s9 = inlined_call_operand.vmem [shape: f32[2,8,32], index: 9, kind: output, shape index: {}]
  %s10 = sld [smem:[#allocation0]]
  $region69: #{transformer_forward.18} parent=0
    _
  %s12 = ssub.s32 1, %s10
  %s13 = scalar_select 0, %s12, %s10
  loop: start=0, step=1, limit=4
  $region2: #{transformer_forward.18} parent=0 // loop_pre_header
    _
  $region3: #{transformer_forward.18} parent=0 // loop_header
    %s15 = sphi 0, %s19
    %p16 = scmp.ge.s32.totalorder %s15, 4
    %s25 = sphi 0, %s27
    %s28 = sphi 0, %s25
    %s29 = sphi 0, %s28
    %s45 = sphi 0, %s29
    %s51 = sphi 0, %s53
    %s54 = sphi 0, %s51
    %s55 = sphi 0, %s54
    %s71 = sphi 0, %s55
    %s77 = sphi 0, %s79
    %s80 = sphi 0, %s77
    %s81 = sphi 0, %s80
    %s97 = sphi 0, %s81
    %s101 = sphi 0, %s101
    %s103 = sphi 0, %s101
    %s104 = sphi 0, %s103
    %s118 = sphi 0, %s104
    %s122 = sphi 0, %s122
    %s124 = sphi 0, %s122
    %s125 = sphi 0, %s124
    %s139 = sphi 0, %s125
    %s143 = sphi 0, %s143
    %s145 = sphi 0, %s143
    %s146 = sphi 0, %s145
    %s160 = sphi 0, %s146
    %s164 = sphi 0, %s164
    %s166 = sphi 0, %s164
    %s167 = sphi 0, %s166
    %s181 = sphi 0, %s167
    %s185 = sphi 0, %s185
    %s187 = sphi 0, %s185
    %s188 = sphi 0, %s187
    %s202 = sphi 0, %s188
    %s206 = sphi 0, %s206
    %s208 = sphi 0, %s206
    %s209 = sphi 0, %s208
    %s223 = sphi 0, %s209
    %s229 = sphi 0, %s231
    %s232 = sphi 0, %s229
    %s233 = sphi 0, %s232
    %s249 = sphi 0, %s233
  $region4: #{transformer_forward.18} parent=0 // loop_header_branch
    %18 = sbr.rel (%p16) target = $region8
  $region5: #{transformer_forward.18} parent=0 // loop_body
    %s20 = ssub.s32 %s15, 1
    %s21 = ssub.s32 %s15, 2
    %s22 = sadd.s32 %s15, 1
    %s23 = ssub.s32 %s15, %s22
    %p24 = scmp.eq.s32.totalorder %s23, 0
    %s26 = sadd.s32 %s25, 1
    %s27 = scalar_select %p24, %s25, %s26
    %p30 = pneg %p24
    %p31 = scmp.eq.s32.totalorder %s15, 1
    %p32 = por %p30, %p31
    %p33 = scmp.ne.s32.totalorder %s25, %s28
    %p34 = scmp.eq.s32.totalorder %s15, 0
    %p35 = por %p33, %p34
    %p36 = scmp.ne.s32.totalorder %s25, %s28
    %p37 = scmp.eq.s32.totalorder %s20, 1
    %p38 = por %p36, %p37
    %p39 = scmp.ne.s32.totalorder %s28, %s29
    %p40 = scmp.eq.s32.totalorder %s20, 0
    %p41 = por %p39, %p40
    %p42 = scmp.ne.s32.totalorder %s28, %s29
    %p43 = scmp.eq.s32.totalorder %s21, 1
    %p44 = por %p42, %p43
    %p46 = scmp.ne.s32.totalorder %s29, %s45
    %p47 = scmp.eq.s32.totalorder %s21, 0
    %p48 = por %p46, %p47
    %s49 = ssub.s32 %s15, %s22
    %p50 = scmp.eq.s32.totalorder %s49, 0
    %s52 = sadd.s32 %s51, 1
    %s53 = scalar_select %p50, %s51, %s52
    %p56 = pneg %p50
    %p57 = scmp.eq.s32.totalorder %s15, 1
    %p58 = por %p56, %p57
    %p59 = scmp.ne.s32.totalorder %s51, %s54
    %p60 = scmp.eq.s32.totalorder %s15, 0
    %p61 = por %p59, %p60
    %p62 = scmp.ne.s32.totalorder %s51, %s54
    %p63 = scmp.eq.s32.totalorder %s20, 1
    %p64 = por %p62, %p63
    %p65 = scmp.ne.s32.totalorder %s54, %s55
    %p66 = scmp.eq.s32.totalorder %s20, 0
    %p67 = por %p65, %p66
    %p68 = scmp.ne.s32.totalorder %s54, %s55
    %p69 = scmp.eq.s32.totalorder %s21, 1
    %p70 = por %p68, %p69
    %p72 = scmp.ne.s32.totalorder %s55, %s71
    %p73 = scmp.eq.s32.totalorder %s21, 0
    %p74 = por %p72, %p73
    %s75 = ssub.s32 %s15, %s22
    %p76 = scmp.eq.s32.totalorder %s75, 0
    %s78 = sadd.s32 %s77, 1
    %s79 = scalar_select %p76, %s77, %s78
    %p82 = pneg %p76
    %p83 = scmp.eq.s32.totalorder %s15, 1
    %p84 = por %p82, %p83
    %p85 = scmp.ne.s32.totalorder %s77, %s80
    %p86 = scmp.eq.s32.totalorder %s15, 0
    %p87 = por %p85, %p86
    %p88 = scmp.ne.s32.totalorder %s77, %s80
    %p89 = scmp.eq.s32.totalorder %s20, 1
    %p90 = por %p88, %p89
    %p91 = scmp.ne.s32.totalorder %s80, %s81
    %p92 = scmp.eq.s32.totalorder %s20, 0
    %p93 = por %p91, %p92
    %p94 = scmp.ne.s32.totalorder %s80, %s81
    %p95 = scmp.eq.s32.totalorder %s21, 1
    %p96 = por %p94, %p95
    %p98 = scmp.ne.s32.totalorder %s81, %s97
    %p99 = scmp.eq.s32.totalorder %s21, 0
    %p100 = por %p98, %p99
    %s102 = sadd.s32 %s101, 1
    %p105 = scmp.eq.s32.totalorder %s15, 1
    %p106 = scmp.ne.s32.totalorder %s101, %s103
    %p107 = scmp.eq.s32.totalorder %s15, 0
    %p108 = por %p106, %p107
    %p109 = scmp.ne.s32.totalorder %s101, %s103
    %p110 = scmp.eq.s32.totalorder %s20, 1
    %p111 = por %p109, %p110
    %p112 = scmp.ne.s32.totalorder %s103, %s104
    %p113 = scmp.eq.s32.totalorder %s20, 0
    %p114 = por %p112, %p113
    %p115 = scmp.ne.s32.totalorder %s103, %s104
    %p116 = scmp.eq.s32.totalorder %s21, 1
    %p117 = por %p115, %p116
    %p119 = scmp.ne.s32.totalorder %s104, %s118
    %p120 = scmp.eq.s32.totalorder %s21, 0
    %p121 = por %p119, %p120
    %s123 = sadd.s32 %s122, 1
    %p126 = scmp.eq.s32.totalorder %s15, 1
    %p127 = scmp.ne.s32.totalorder %s122, %s124
    %p128 = scmp.eq.s32.totalorder %s15, 0
    %p129 = por %p127, %p128
    %p130 = scmp.ne.s32.totalorder %s122, %s124
    %p131 = scmp.eq.s32.totalorder %s20, 1
    %p132 = por %p130, %p131
    %p133 = scmp.ne.s32.totalorder %s124, %s125
    %p134 = scmp.eq.s32.totalorder %s20, 0
    %p135 = por %p133, %p134
    %p136 = scmp.ne.s32.totalorder %s124, %s125
    %p137 = scmp.eq.s32.totalorder %s21, 1
    %p138 = por %p136, %p137
    %p140 = scmp.ne.s32.totalorder %s125, %s139
    %p141 = scmp.eq.s32.totalorder %s21, 0
    %p142 = por %p140, %p141
    %s144 = sadd.s32 %s143, 1
    %p147 = scmp.eq.s32.totalorder %s15, 1
    %p148 = scmp.ne.s32.totalorder %s143, %s145
    %p149 = scmp.eq.s32.totalorder %s15, 0
    %p150 = por %p148, %p149
    %p151 = scmp.ne.s32.totalorder %s143, %s145
    %p152 = scmp.eq.s32.totalorder %s20, 1
    %p153 = por %p151, %p152
    %p154 = scmp.ne.s32.totalorder %s145, %s146
    %p155 = scmp.eq.s32.totalorder %s20, 0
    %p156 = por %p154, %p155
    %p157 = scmp.ne.s32.totalorder %s145, %s146
    %p158 = scmp.eq.s32.totalorder %s21, 1
    %p159 = por %p157, %p158
    %p161 = scmp.ne.s32.totalorder %s146, %s160
    %p162 = scmp.eq.s32.totalorder %s21, 0
    %p163 = por %p161, %p162
    %s165 = sadd.s32 %s164, 1
    %p168 = scmp.eq.s32.totalorder %s15, 1
    %p169 = scmp.ne.s32.totalorder %s164, %s166
    %p170 = scmp.eq.s32.totalorder %s15, 0
    %p171 = por %p169, %p170
    %p172 = scmp.ne.s32.totalorder %s164, %s166
    %p173 = scmp.eq.s32.totalorder %s20, 1
    %p174 = por %p172, %p173
    %p175 = scmp.ne.s32.totalorder %s166, %s167
    %p176 = scmp.eq.s32.totalorder %s20, 0
    %p177 = por %p175, %p176
    %p178 = scmp.ne.s32.totalorder %s166, %s167
    %p179 = scmp.eq.s32.totalorder %s21, 1
    %p180 = por %p178, %p179
    %p182 = scmp.ne.s32.totalorder %s167, %s181
    %p183 = scmp.eq.s32.totalorder %s21, 0
    %p184 = por %p182, %p183
    %s186 = sadd.s32 %s185, 1
    %p189 = scmp.eq.s32.totalorder %s15, 1
    %p190 = scmp.ne.s32.totalorder %s185, %s187
    %p191 = scmp.eq.s32.totalorder %s15, 0
    %p192 = por %p190, %p191
    %p193 = scmp.ne.s32.totalorder %s185, %s187
    %p194 = scmp.eq.s32.totalorder %s20, 1
    %p195 = por %p193, %p194
    %p196 = scmp.ne.s32.totalorder %s187, %s188
    %p197 = scmp.eq.s32.totalorder %s20, 0
    %p198 = por %p196, %p197
    %p199 = scmp.ne.s32.totalorder %s187, %s188
    %p200 = scmp.eq.s32.totalorder %s21, 1
    %p201 = por %p199, %p200
    %p203 = scmp.ne.s32.totalorder %s188, %s202
    %p204 = scmp.eq.s32.totalorder %s21, 0
    %p205 = por %p203, %p204
    %s207 = sadd.s32 %s206, 1
    %p210 = scmp.eq.s32.totalorder %s15, 1
    %p211 = scmp.ne.s32.totalorder %s206, %s208
    %p212 = scmp.eq.s32.totalorder %s15, 0
    %p213 = por %p211, %p212
    %p214 = scmp.ne.s32.totalorder %s206, %s208
    %p215 = scmp.eq.s32.totalorder %s20, 1
    %p216 = por %p214, %p215
    %p217 = scmp.ne.s32.totalorder %s208, %s209
    %p218 = scmp.eq.s32.totalorder %s20, 0
    %p219 = por %p217, %p218
    %p220 = scmp.ne.s32.totalorder %s208, %s209
    %p221 = scmp.eq.s32.totalorder %s21, 1
    %p222 = por %p220, %p221
    %p224 = scmp.ne.s32.totalorder %s209, %s223
    %p225 = scmp.eq.s32.totalorder %s21, 0
    %p226 = por %p224, %p225
    %s227 = ssub.s32 %s15, %s22
    %p228 = scmp.eq.s32.totalorder %s227, 0
    %s230 = sadd.s32 %s229, 1
    %s231 = scalar_select %p228, %s229, %s230
    %p234 = pneg %p228
    %p235 = scmp.eq.s32.totalorder %s15, 1
    %p236 = por %p234, %p235
    %p237 = scmp.ne.s32.totalorder %s229, %s232
    %p238 = scmp.eq.s32.totalorder %s15, 0
    %p239 = por %p237, %p238
    %p240 = scmp.ne.s32.totalorder %s229, %s232
    %p241 = scmp.eq.s32.totalorder %s20, 1
    %p242 = por %p240, %p241
    %p243 = scmp.ne.s32.totalorder %s232, %s233
    %p244 = scmp.eq.s32.totalorder %s20, 0
    %p245 = por %p243, %p244
    %p246 = scmp.ne.s32.totalorder %s232, %s233
    %p247 = scmp.eq.s32.totalorder %s21, 1
    %p248 = por %p246, %p247
    %p250 = scmp.ne.s32.totalorder %s233, %s249
    %p251 = scmp.eq.s32.totalorder %s21, 0
    %p252 = por %p250, %p251
    %p253 = scmp.le.s32.totalorder 1, %s15
    %p254 = scmp.lt.s32.totalorder %s15, 3
    %p255 = pnand %p253, %p254
    %p256 = pneg %p255
    // Predicated region
    $region9: #{transformer_forward.18} parent=5 // pred_check
      _
    $region10: #{transformer_forward.18} parent=5 // pred_check_branch
      %258 = sbr.rel (%p255) target = $region12
    $region11: #{transformer_forward.18} parent=5 // pred_region
      %s259 = ssub.s32 %s15, 1
      // Predicated region
      $region13: #{transformer_forward.18} parent=11 // pred_check
        %p260 = pneg %p114
      $region14: #{transformer_forward.18} parent=11 // pred_check_branch
        %262 = sbr.rel (%p260) target = $region16
      $region15: #{transformer_forward.18} parent=11 // pred_region
        _
      $region16: #{transformer_forward.18} parent=11 // pred_fallthru
        _
      // Predicated region
      $region17: #{transformer_forward.18} parent=11 // pred_check
        %p263 = pneg %p135
      $region18: #{transformer_forward.18} parent=11 // pred_check_branch
        %265 = sbr.rel (%p263) target = $region20
      $region19: #{transformer_forward.18} parent=11 // pred_region
        _
      $region20: #{transformer_forward.18} parent=11 // pred_fallthru
        _
      // Predicated region
      $region21: #{transformer_forward.18} parent=11 // pred_check
        %p266 = pneg %p156
      $region22: #{transformer_forward.18} parent=11 // pred_check_branch
        %268 = sbr.rel (%p266) target = $region24
      $region23: #{transformer_forward.18} parent=11 // pred_region
        _
      $region24: #{transformer_forward.18} parent=11 // pred_fallthru
        _
      // Predicated region
      $region25: #{transformer_forward.18} parent=11 // pred_check
        %p269 = pneg %p177
      $region26: #{transformer_forward.18} parent=11 // pred_check_branch
        %271 = sbr.rel (%p269) target = $region28
      $region27: #{transformer_forward.18} parent=11 // pred_region
        _
      $region28: #{transformer_forward.18} parent=11 // pred_fallthru
        _
      // Predicated region
      $region29: #{transformer_forward.18} parent=11 // pred_check
        %p272 = pneg %p198
      $region30: #{transformer_forward.18} parent=11 // pred_check_branch
        %274 = sbr.rel (%p272) target = $region32
      $region31: #{transformer_forward.18} parent=11 // pred_region
        _
      $region32: #{transformer_forward.18} parent=11 // pred_fallthru
        _
      // Predicated region
      $region33: #{transformer_forward.18} parent=11 // pred_check
        %p275 = pneg %p219
      $region34: #{transformer_forward.18} parent=11 // pred_check_branch
        %277 = sbr.rel (%p275) target = $region36
      $region35: #{transformer_forward.18} parent=11 // pred_region
        _
      $region36: #{transformer_forward.18} parent=11 // pred_fallthru
        _
    $region12: #{transformer_forward.18} parent=5 // pred_fallthru
      _
    %p278 = scmp.lt.s32.totalorder %s15, 2
    // Predicated region
    $region37: #{transformer_forward.18} parent=5 // pred_check
      %p279 = pneg %p278
    $region38: #{transformer_forward.18} parent=5 // pred_check_branch
      %281 = sbr.rel (%p279) target = $region40
    $region39: #{transformer_forward.18} parent=5 // pred_region
      // Predicated region
      $region41: #{transformer_forward.18} parent=39 // pred_check
        %p282 = pneg %p35
      $region42: #{transformer_forward.18} parent=39 // pred_check_branch
        %284 = sbr.rel (%p282) target = $region44
      $region43: #{transformer_forward.18} parent=39 // pred_region
        %p285 = scmp.lt.s32.totalorder %s15, 1
        %s286 = scalar_select %p285, %s15, 1
        %s287 = smul.addr %s286, 8
        %s288 = scalar_lea.vmem %s0, %s287
      $region44: #{transformer_forward.18} parent=39 // pred_fallthru
        _
      // Predicated region
      $region45: #{transformer_forward.18} parent=39 // pred_check
        %p289 = pneg %p61
      $region46: #{transformer_forward.18} parent=39 // pred_check_branch
        %291 = sbr.rel (%p289) target = $region48
      $region47: #{transformer_forward.18} parent=39 // pred_region
        %p292 = scmp.lt.s32.totalorder %s15, 1
        %s293 = scalar_select %p292, %s15, 1
        %s294 = smul.addr %s293, 8
        %s295 = scalar_lea.vmem %s1, %s294
      $region48: #{transformer_forward.18} parent=39 // pred_fallthru
        _
      // Predicated region
      $region49: #{transformer_forward.18} parent=39 // pred_check
        %p296 = pneg %p87
      $region50: #{transformer_forward.18} parent=39 // pred_check_branch
        %298 = sbr.rel (%p296) target = $region52
      $region51: #{transformer_forward.18} parent=39 // pred_region
        %p299 = scmp.lt.s32.totalorder %s15, 1
        %s300 = scalar_select %p299, %s15, 1
        %s301 = scalar_lea.vmem %s2, %s300
      $region52: #{transformer_forward.18} parent=39 // pred_fallthru
        _
    $region40: #{transformer_forward.18} parent=5 // pred_fallthru
      _
    %p302 = scmp.le.s32.totalorder 1, %s15
    %p303 = scmp.lt.s32.totalorder %s15, 3
    %p304 = pnand %p302, %p303
    %p305 = pneg %p304
    // Predicated region
    $region53: #{transformer_forward.18} parent=5 // pred_check
      _
    $region54: #{transformer_forward.18} parent=5 // pred_check_branch
      %307 = sbr.rel (%p304) target = $region56
    $region55: #{transformer_forward.18} parent=5 // pred_region
      %s308 = ssub.s32 %s15, 1
      %p309 = scmp.lt.s32.totalorder %s20, 1
      %s310 = scalar_select %p309, %s20, 1
      %s311 = smul.addr %s310, 8
      %s312 = scalar_lea.vmem %s0, %s311
      %p313 = pneg %p41
      %p314 = pneg %p38
      %p315 = scmp.lt.s32.totalorder %s20, 1
      %s316 = scalar_select %p315, %s20, 1
      %s317 = smul.addr %s316, 8
      %s318 = scalar_lea.vmem %s1, %s317
      %p319 = pneg %p67
      %p320 = pneg %p64
      %p321 = scmp.lt.s32.totalorder %s20, 1
      %s322 = scalar_select %p321, %s20, 1
      %s323 = scalar_lea.vmem %s2, %s322
      %p324 = pneg %p93
      %p325 = pneg %p90
      %p326 = pneg %p114
      %p327 = pneg %p111
      %p328 = pneg %p135
      %p329 = pneg %p132
      %p330 = pneg %p156
      %p331 = pneg %p153
      %p332 = pneg %p177
      %p333 = pneg %p174
      %p334 = pneg %p198
      %p335 = pneg %p195
      %p336 = pneg %p219
      %p337 = pneg %p216
      %p338 = pneg %p245
      %p339 = pneg %p242
      %p340 = scmp.lt.s32.totalorder %s20, 1
      %s341 = scalar_select %p340, %s20, 1
      %s342 = smul.addr %s341, 8
      %s343 = scalar_lea.vmem %s9, %s342
      %p344 = scmp.lt.s32.totalorder %s20, 1
      %s345 = scalar_select %p344, %s20, 1
      %s346 = smul.addr %s345, 8
      %s347 = scalar_lea.vmem %s0, %s346
      %p348 = scmp.lt.s32.totalorder %s20, 1
      %s349 = scalar_select %p348, %s20, 1
      %s350 = smul.addr %s349, 8
      %s351 = scalar_lea.vmem %s1, %s350
      %p352 = scmp.lt.s32.totalorder %s20, 1
      %s353 = scalar_select %p352, %s20, 1
      %s354 = scalar_lea.vmem %s2, %s353
      %p355 = scmp.lt.s32.totalorder %s20, 1
      %s356 = scalar_select %p355, %s20, 1
      %s357 = smul.addr %s356, 8
      %s358 = scalar_lea.vmem %s9, %s357
      %v360 = vld [vmem:[%s347] sm:$0xff]
      %v361 = vld [vmem:[%s351] sm:$0xff]
      %v362 = vld [vmem:[%s3] sm:$0x1]
      %v363 = vld [vmem:[%s4] sm:$0x1]
      %vm364 = vcmask 261120
      %v365 = vsel %vm364, %v360, 0.0
      %366 = vadd.xlane.f32.xlu0 %v365
      %v367 = vpop.xlane.xlu0 %366
      %v368 = vrcp.pop 32.0
      %v369 = vmul.f32 %v367, %v368
      %v370 = vsub.f32 %v360, %v369
      %v371 = vmul.f32 %v370, %v370
      %v372 = vsel %vm364, %v371, 0.0
      %373 = vadd.xlane.f32.xlu0 %v372
      %v374 = vpop.xlane.xlu0 %373
      %v375 = vrcp.pop 31.0
      %v376 = vmul.f32 %v374, %v375
      %v377 = vrsqrt.pop %v376
      %v378 = vmul.f32 %v376, %v377
      %vm379 = vcmp.eq.f32.partialorder %v376, inf
      %v380 = vsel %vm379, %v376, %v378
      %vm381 = vcmp.eq.f32.partialorder %v376, 0.0
      %v382 = vand.u32 %v376, 2147483648
      %v383 = vsel %vm381, %v382, %v380
      %v384 = vadd.f32 %v383, 1e-06
      %v385 = vrcp.pop %v384
      %v387 = vlaneseq
      %v388 = vshrl.u32 %v387, 7
      %v389 = vsub.s32 0, %v388
      %v390 = vrot.slane %v362, %v389
      %v392 = vmul.f32 %v390, %v370
      %v393 = vmul.f32 %v392, %v385
      %v395 = vlaneseq
      %v396 = vshrl.u32 %v395, 7
      %v397 = vsub.s32 0, %v396
      %v398 = vrot.slane %v363, %v397
      %v400 = vadd.f32 %v393, %v398
      %v401 = vld [vmem:[%s354] sm:$0x1]
      %vm402 = vcmp.gt.f32.partialorder %v401, 0.5
      %v403 = vld [vmem:[%s5] sm:$0xf]
      %v404 = vld [vmem:[%s5 + $0x4] sm:$0xf]
      %v405 = vld [vmem:[%s5 + $0x8] sm:$0xf]
      %v406 = vld [vmem:[%s5 + $0xc] sm:$0xf]
      %v407 = vld [vmem:[%s6] sm:$0x1]
      %v408 = vld [vmem:[%s7] sm:$0xf]
      %v409 = vld [vmem:[%s7 + $0x4] sm:$0xf]
      %v410 = vld [vmem:[%s7 + $0x8] sm:$0xf]
      %v411 = vld [vmem:[%s7 + $0xc] sm:$0xf]
      %v412 = vld [vmem:[%s8] sm:$0x1]
      %v413 = vpack.c.bf16 %v400, %v400
      %v415 = vlaneseq
      %v416 = vshrl.u32 %v415, 7
      %v417 = vsub.s32 0, %v416
      %v418 = vrot.slane %v407, %v417
      %v424 = vunpack.c.l.b16 %v403
      %v425 = vunpack.c.l.b16 %v404
      %v426 = vunpack.c.l.b16 %v405
      %v427 = vunpack.c.l.b16 %v406
      %v428 = vpack.c.b16 %v425, %v424
      %v429 = vpack.c.b16 %v427, %v426
      %v433 = vsel %vm364, %v413, 0
      %435 = vmatprep.subr.bf16.mxu0 0
      %436 = vmatpush1.bf16.msra.mxu0 %v428
      %437 = vmatprep.subr.bf16.mxu0 0
      %438 = vmatpush1.bf16.msra.mxu0 %v429
      %439 = vmatprep.subr.bf16.mxu0 0
      %440 = vmatpush1.bf16.msra.mxu0 0
      %441 = vmatprep.subr.bf16.mxu0 0
      %442 = vmatpush1.bf16.msra.mxu0 0
      %443 = vmatprep.subr.bf16.mxu0 0
      %444 = vmatpush1.bf16.msra.mxu0 0
      %445 = vmatprep.subr.bf16.mxu0 0
      %446 = vmatpush1.bf16.msra.mxu0 0
      %447 = vmatprep.subr.bf16.mxu0 0
      %448 = vmatpush1.bf16.msra.mxu0 0
      %449 = vmatprep.subr.bf16.mxu0 0
      %450 = vmatpush1.bf16.msra.mxu0 0
      %451 = vmatprep.subr.bf16.mxu0 0
      %452 = vmatpush1.bf16.msra.mxu0 0
      %453 = vmatprep.subr.bf16.mxu0 0
      %454 = vmatpush1.bf16.msra.mxu0 0
      %455 = vmatprep.subr.bf16.mxu0 0
      %456 = vmatpush1.bf16.msra.mxu0 0
      %457 = vmatprep.subr.bf16.mxu0 0
      %458 = vmatpush1.bf16.msra.mxu0 0
      %459 = vmatprep.subr.bf16.mxu0 0
      %460 = vmatpush1.bf16.msra.mxu0 0
      %461 = vmatprep.subr.bf16.mxu0 0
      %462 = vmatpush1.bf16.msra.mxu0 0
      %463 = vmatprep.subr.bf16.mxu0 0
      %464 = vmatpush1.bf16.msra.mxu0 0
      %465 = vmatprep.subr.bf16.mxu0 0
      %466 = vmatpush1.bf16.msra.mxu0 0
      %467 = vmatprep.mubr.bf16.mxu0 0
      %468 = vmatmul.mubr.bf16.gmra.mrb[0].mxu0 %v433
      %v469 = vpop.f32.mrb[0].mxu0
      %v470 = vadd.f32 %v418, %v469
      %v471 = vpop.f32.mrb[0].mxu0
      %v472 = vpop.f32.mrb[0].mxu0
      %v473 = vpop.f32.mrb[0].mxu0
      %474 = vdwg.mxu0
      %v475 = vpack.c.bf16 %v361, %v361
      %476 = vrot.lane.b32.xlu0 %v428, 96
      %v477 = vpop.permute.xlu0 %476
      %478 = vrot.lane.b32.xlu0 %v429, 96
      %v479 = vpop.permute.xlu0 %478
      %482 = vrot.lane.b32.xlu0 %v418, 96
      %v483 = vpop.permute.xlu0 %482
      %v486 = vsel %vm364, %v475, 0
      %488 = vmatprep.subr.bf16.mxu0 0
      %489 = vmatpush1.bf16.msra.mxu0 %v477
      %490 = vmatprep.subr.bf16.mxu0 0
      %491 = vmatpush1.bf16.msra.mxu0 %v479
      %492 = vmatprep.subr.bf16.mxu0 0
      %493 = vmatpush1.bf16.msra.mxu0 0
      %494 = vmatprep.subr.bf16.mxu0 0
      %495 = vmatpush1.bf16.msra.mxu0 0
      %496 = vmatprep.subr.bf16.mxu0 0
      %497 = vmatpush1.bf16.msra.mxu0 0
      %498 = vmatprep.subr.bf16.mxu0 0
      %499 = vmatpush1.bf16.msra.mxu0 0
      %500 = vmatprep.subr.bf16.mxu0 0
      %501 = vmatpush1.bf16.msra.mxu0 0
      %502 = vmatprep.subr.bf16.mxu0 0
      %503 = vmatpush1.bf16.msra.mxu0 0
      %504 = vmatprep.subr.bf16.mxu0 0
      %505 = vmatpush1.bf16.msra.mxu0 0
      %506 = vmatprep.subr.bf16.mxu0 0
      %507 = vmatpush1.bf16.msra.mxu0 0
      %508 = vmatprep.subr.bf16.mxu0 0
      %509 = vmatpush1.bf16.msra.mxu0 0
      %510 = vmatprep.subr.bf16.mxu0 0
      %511 = vmatpush1.bf16.msra.mxu0 0
      %512 = vmatprep.subr.bf16.mxu0 0
      %513 = vmatpush1.bf16.msra.mxu0 0
      %514 = vmatprep.subr.bf16.mxu0 0
      %515 = vmatpush1.bf16.msra.mxu0 0
      %516 = vmatprep.subr.bf16.mxu0 0
      %517 = vmatpush1.bf16.msra.mxu0 0
      %518 = vmatprep.subr.bf16.mxu0 0
      %519 = vmatpush1.bf16.msra.mxu0 0
      %520 = vmatprep.mubr.bf16.mxu0 0
      %521 = vmatmul.mubr.bf16.gmra.mrb[0].mxu0 %v486
      %v522 = vpop.f32.mrb[0].mxu0
      %v523 = vadd.f32 %v483, %v522
      %v524 = vpop.f32.mrb[0].mxu0
      %v525 = vpop.f32.mrb[0].mxu0
      %v526 = vpop.f32.mrb[0].mxu0
      %527 = vdwg.mxu0
      %v528 = vpack.c.bf16 %v470, %v470
      %v529 = vpack.c.bf16 %v523, %v523
      %vm530 = vcmask 64512
      %v532 = vsel %vm530, %v528, 0
      %v535 = vsel %vm530, %v529, 0
      %537 = vmatprep.subr.bf16.mxu0 0
      %538 = vmatpush1.bf16.xpose.msra.mxu0 %v535
      %539 = vmatprep.subr.bf16.mxu0 0
      %540 = vmatpush1.bf16.xpose.msra.mxu0 0
      %541 = vmatprep.subr.bf16.mxu0 0
      %542 = vmatpush1.bf16.xpose.msra.mxu0 0
      %543 = vmatprep.subr.bf16.mxu0 0
      %544 = vmatpush1.bf16.xpose.msra.mxu0 0
      %545 = vmatprep.subr.bf16.mxu0 0
      %546 = vmatpush1.bf16.xpose.msra.mxu0 0
      %547 = vmatprep.subr.bf16.mxu0 0
      %548 = vmatpush1.bf16.xpose.msra.mxu0 0
      %549 = vmatprep.subr.bf16.mxu0 0
      %550 = vmatpush1.bf16.xpose.msra.mxu0 0
      %551 = vmatprep.subr.bf16.mxu0 0
      %552 = vmatpush1.bf16.xpose.msra.mxu0 0
      %553 = vmatprep.subr.bf16.mxu0 0
      %554 = vmatpush1.bf16.xpose.msra.mxu0 0
      %555 = vmatprep.subr.bf16.mxu0 0
      %556 = vmatpush1.bf16.xpose.msra.mxu0 0
      %557 = vmatprep.subr.bf16.mxu0 0
      %558 = vmatpush1.bf16.xpose.msra.mxu0 0
      %559 = vmatprep.subr.bf16.mxu0 0
      %560 = vmatpush1.bf16.xpose.msra.mxu0 0
      %561 = vmatprep.subr.bf16.mxu0 0
      %562 = vmatpush1.bf16.xpose.msra.mxu0 0
      %563 = vmatprep.subr.bf16.mxu0 0
      %564 = vmatpush1.bf16.xpose.msra.mxu0 0
      %565 = vmatprep.subr.bf16.mxu0 0
      %566 = vmatpush1.bf16.xpose.msra.mxu0 0
      %567 = vmatprep.subr.bf16.mxu0 0
      %568 = vmatpush1.bf16.xpose.msra.mxu0 0
      %569 = vmatprep.mubr.bf16.mxu0 0
      %570 = vmatmul.mubr.bf16.gmra.mrb[0].mxu0 %v532
      %v571 = vpop.f32.mrb[0].mxu0
      %v572 = vadd.f32 0.0, %v571
      %v573 = vpop.f32.mrb[0].mxu0
      %v574 = vpop.f32.mrb[0].mxu0
      %v575 = vpop.f32.mrb[0].mxu0
      %576 = vdwg.mxu0
      %v577 = vmul.f32 %v572, 0.35355338
      %v578 = vsel %vm402, 1, 0
      %v579 = vlaneseq
      %v580 = vshrl.u32 %v579, 7
      %v581 = vsub.s32 0, %v580
      %v582 = vrot.slane %v578, %v581
      %vm583 = vcmp.eq.s32.totalorder %v582, 1
      %v584 = vsel %vm583, %v577, -1e+09
      %v585 = vsel %vm530, %v584, -inf
      %586 = vmax.xlane.f32.xlu0 %v585
      %v587 = vpop.xlane.xlu0 %586
      %v588 = vsub.f32 %v584, %v587
      %v589 = vmul.f32 %v588, 1.442695
      %v590 = vpow.pop %v589
      %v591 = vsel %vm530, %v590, 0.0
      %592 = vadd.xlane.f32.xlu0 %v591
      %v593 = vpop.xlane.xlu0 %592
      %v594 = vrcp.pop %v593
      %v595 = vmul.f32 %v590, %v594
      %v596 = vpack.c.bf16 %v595, %v595
      %598 = vrot.lane.b32.xlu0 %v529, 96
      %v599 = vpop.permute.xlu0 %598
      %v601 = vsel %vm530, %v596, 0
      %vm603 = vcmask 1043456
      %v605 = vsel %vm603, %v599, 0
      %607 = vmatprep.subr.bf16.mxu0 0
      %608 = vmatpush1.bf16.msra.mxu0 %v605
      %609 = vmatprep.subr.bf16.mxu0 0
      %610 = vmatpush1.bf16.msra.mxu0 0
      %611 = vmatprep.subr.bf16.mxu0 0
      %612 = vmatpush1.bf16.msra.mxu0 0
      %613 = vmatprep.subr.bf16.mxu0 0
      %614 = vmatpush1.bf16.msra.mxu0 0
      %615 = vmatprep.subr.bf16.mxu0 0
      %616 = vmatpush1.bf16.msra.mxu0 0
      %617 = vmatprep.subr.bf16.mxu0 0
      %618 = vmatpush1.bf16.msra.mxu0 0
      %619 = vmatprep.subr.bf16.mxu0 0
      %620 = vmatpush1.bf16.msra.mxu0 0
      %621 = vmatprep.subr.bf16.mxu0 0
      %622 = vmatpush1.bf16.msra.mxu0 0
      %623 = vmatprep.subr.bf16.mxu0 0
      %624 = vmatpush1.bf16.msra.mxu0 0
      %625 = vmatprep.subr.bf16.mxu0 0
      %626 = vmatpush1.bf16.msra.mxu0 0
      %627 = vmatprep.subr.bf16.mxu0 0
      %628 = vmatpush1.bf16.msra.mxu0 0
      %629 = vmatprep.subr.bf16.mxu0 0
      %630 = vmatpush1.bf16.msra.mxu0 0
      %631 = vmatprep.subr.bf16.mxu0 0
      %632 = vmatpush1.bf16.msra.mxu0 0
      %633 = vmatprep.subr.bf16.mxu0 0
      %634 = vmatpush1.bf16.msra.mxu0 0
      %635 = vmatprep.subr.bf16.mxu0 0
      %636 = vmatpush1.bf16.msra.mxu0 0
      %637 = vmatprep.subr.bf16.mxu0 0
      %638 = vmatpush1.bf16.msra.mxu0 0
      %639 = vmatprep.mubr.bf16.mxu0 0
      %640 = vmatmul.mubr.bf16.gmra.mrb[0].mxu0 %v601
      %v641 = vpop.f32.mrb[0].mxu0
      %v642 = vadd.f32 0.0, %v641
      %v643 = vpop.f32.mrb[0].mxu0
      %v644 = vpop.f32.mrb[0].mxu0
      %v645 = vpop.f32.mrb[0].mxu0
      %646 = vdwg.mxu0
      %v647 = vpack.c.bf16 %v642, %v642
      %649 = vrot.lane.b32.xlu0 %v528, 120
      %v650 = vpop.permute.xlu0 %649
      %651 = vrot.lane.b32.xlu0 %v529, 120
      %v652 = vpop.permute.xlu0 %651
      %v654 = vsel %vm530, %v650, 0
      %v657 = vsel %vm530, %v652, 0
      %659 = vmatprep.subr.bf16.mxu0 0
      %660 = vmatpush1.bf16.xpose.msra.mxu0 %v657
      %661 = vmatprep.subr.bf16.mxu0 0
      %662 = vmatpush1.bf16.xpose.msra.mxu0 0
      %663 = vmatprep.subr.bf16.mxu0 0
      %664 = vmatpush1.bf16.xpose.msra.mxu0 0
      %665 = vmatprep.subr.bf16.mxu0 0
      %666 = vmatpush1.bf16.xpose.msra.mxu0 0
      %667 = vmatprep.subr.bf16.mxu0 0
      %668 = vmatpush1.bf16.xpose.msra.mxu0 0
      %669 = vmatprep.subr.bf16.mxu0 0
      %670 = vmatpush1.bf16.xpose.msra.mxu0 0
      %671 = vmatprep.subr.bf16.mxu0 0
      %672 = vmatpush1.bf16.xpose.msra.mxu0 0
      %673 = vmatprep.subr.bf16.mxu0 0
      %674 = vmatpush1.bf16.xpose.msra.mxu0 0
      %675 = vmatprep.subr.bf16.mxu0 0
      %676 = vmatpush1.bf16.xpose.msra.mxu0 0
      %677 = vmatprep.subr.bf16.mxu0 0
      %678 = vmatpush1.bf16.xpose.msra.mxu0 0
      %679 = vmatprep.subr.bf16.mxu0 0
      %680 = vmatpush1.bf16.xpose.msra.mxu0 0
      %681 = vmatprep.subr.bf16.mxu0 0
      %682 = vmatpush1.bf16.xpose.msra.mxu0 0
      %683 = vmatprep.subr.bf16.mxu0 0
      %684 = vmatpush1.bf16.xpose.msra.mxu0 0
      %685 = vmatprep.subr.bf16.mxu0 0
      %686 = vmatpush1.bf16.xpose.msra.mxu0 0
      %687 = vmatprep.subr.bf16.mxu0 0
      %688 = vmatpush1.bf16.xpose.msra.mxu0 0
      %689 = vmatprep.subr.bf16.mxu0 0
      %690 = vmatpush1.bf16.xpose.msra.mxu0 0
      %691 = vmatprep.mubr.bf16.mxu0 0
      %692 = vmatmul.mubr.bf16.gmra.mrb[0].mxu0 %v654
      %v693 = vpop.f32.mrb[0].mxu0
      %v694 = vadd.f32 0.0, %v693
      %v695 = vpop.f32.mrb[0].mxu0
      %v696 = vpop.f32.mrb[0].mxu0
      %v697 = vpop.f32.mrb[0].mxu0
      %698 = vdwg.mxu0
      %v699 = vmul.f32 %v694, 0.35355338
      %v700 = vsel %vm583, %v699, -1e+09
      %v701 = vsel %vm530, %v700, -inf
      %702 = vmax.xlane.f32.xlu0 %v701
      %v703 = vpop.xlane.xlu0 %702
      %v704 = vsub.f32 %v700, %v703
      %v705 = vmul.f32 %v704, 1.442695
      %v706 = vpow.pop %v705
      %v707 = vsel %vm530, %v706, 0.0
      %708 = vadd.xlane.f32.xlu0 %v707
      %v709 = vpop.xlane.xlu0 %708
      %v710 = vrcp.pop %v709
      %v711 = vmul.f32 %v706, %v710
      %v712 = vpack.c.bf16 %v711, %v711
      %713 = vrot.lane.b32.xlu0 %v529, 88
      %v714 = vpop.permute.xlu0 %713
      %v716 = vsel %vm530, %v712, 0
      %v719 = vsel %vm603, %v714, 0
      %721 = vmatprep.subr.bf16.mxu0 0
      %722 = vmatpush1.bf16.msra.mxu0 %v719
      %723 = vmatprep.subr.bf16.mxu0 0
      %724 = vmatpush1.bf16.msra.mxu0 0
      %725 = vmatprep.subr.bf16.mxu0 0
      %726 = vmatpush1.bf16.msra.mxu0 0
      %727 = vmatprep.subr.bf16.mxu0 0
      %728 = vmatpush1.bf16.msra.mxu0 0
      %729 = vmatprep.subr.bf16.mxu0 0
      %730 = vmatpush1.bf16.msra.mxu0 0
      %731 = vmatprep.subr.bf16.mxu0 0
      %732 = vmatpush1.bf16.msra.mxu0 0
      %733 = vmatprep.subr.bf16.mxu0 0
      %734 = vmatpush1.bf16.msra.mxu0 0
      %735 = vmatprep.subr.bf16.mxu0 0
      %736 = vmatpush1.bf16.msra.mxu0 0
      %737 = vmatprep.subr.bf16.mxu0 0
      %738 = vmatpush1.bf16.msra.mxu0 0
      %739 = vmatprep.subr.bf16.mxu0 0
      %740 = vmatpush1.bf16.msra.mxu0 0
      %741 = vmatprep.subr.bf16.mxu0 0
      %742 = vmatpush1.bf16.msra.mxu0 0
      %743 = vmatprep.subr.bf16.mxu0 0
      %744 = vmatpush1.bf16.msra.mxu0 0
      %745 = vmatprep.subr.bf16.mxu0 0
      %746 = vmatpush1.bf16.msra.mxu0 0
      %747 = vmatprep.subr.bf16.mxu0 0
      %748 = vmatpush1.bf16.msra.mxu0 0
      %749 = vmatprep.subr.bf16.mxu0 0
      %750 = vmatpush1.bf16.msra.mxu0 0
      %751 = vmatprep.subr.bf16.mxu0 0
      %752 = vmatpush1.bf16.msra.mxu0 0
      %753 = vmatprep.mubr.bf16.mxu0 0
      %754 = vmatmul.mubr.bf16.gmra.mrb[0].mxu0 %v716
      %v755 = vpop.f32.mrb[0].mxu0
      %v756 = vadd.f32 0.0, %v755
      %v757 = vpop.f32.mrb[0].mxu0
      %v758 = vpop.f32.mrb[0].mxu0
      %v759 = vpop.f32.mrb[0].mxu0
      %760 = vdwg.mxu0
      %v761 = vpack.c.bf16 %v756, %v756
      %v763 = vsel %vm530, %v761, 0
      %v766 = vsel %vm603, %v409, 0
      %768 = vmatprep.subr.bf16.mxu0 0
      %769 = vmatpush1.bf16.msra.mxu0 %v766
      %770 = vmatprep.subr.bf16.mxu0 0
      %771 = vmatpush1.bf16.msra.mxu0 0
      %772 = vmatprep.subr.bf16.mxu0 0
      %773 = vmatpush1.bf16.msra.mxu0 0
      %774 = vmatprep.subr.bf16.mxu0 0
      %775 = vmatpush1.bf16.msra.mxu0 0
      %776 = vmatprep.subr.bf16.mxu0 0
      %777 = vmatpush1.bf16.msra.mxu0 0
      %778 = vmatprep.subr.bf16.mxu0 0
      %779 = vmatpush1.bf16.msra.mxu0 0
      %780 = vmatprep.subr.bf16.mxu0 0
      %781 = vmatpush1.bf16.msra.mxu0 0
      %782 = vmatprep.subr.bf16.mxu0 0
      %783 = vmatpush1.bf16.msra.mxu0 0
      %784 = vmatprep.subr.bf16.mxu0 0
      %785 = vmatpush1.bf16.msra.mxu0 0
      %786 = vmatprep.subr.bf16.mxu0 0
      %787 = vmatpush1.bf16.msra.mxu0 0
      %788 = vmatprep.subr.bf16.mxu0 0
      %789 = vmatpush1.bf16.msra.mxu0 0
      %790 = vmatprep.subr.bf16.mxu0 0
      %791 = vmatpush1.bf16.msra.mxu0 0
      %792 = vmatprep.subr.bf16.mxu0 0
      %793 = vmatpush1.bf16.msra.mxu0 0
      %794 = vmatprep.subr.bf16.mxu0 0
      %795 = vmatpush1.bf16.msra.mxu0 0
      %796 = vmatprep.subr.bf16.mxu0 0
      %797 = vmatpush1.bf16.msra.mxu0 0
      %798 = vmatprep.subr.bf16.mxu0 0
      %799 = vmatpush1.bf16.msra.mxu0 0
      %800 = vmatprep.mubr.bf16.mxu0 0
      %801 = vmatmul.mubr.bf16.gmra.mrb[0].mxu0 %v763
      %v802 = vpop.f32.mrb[0].mxu0
      %v803 = vadd.f32 0.0, %v802
      %v804 = vpop.f32.mrb[0].mxu0
      %v805 = vpop.f32.mrb[0].mxu0
      %v806 = vpop.f32.mrb[0].mxu0
      %807 = vdwg.mxu0
      %v809 = vsel %vm530, %v647, 0
      %v812 = vsel %vm603, %v408, 0
      %814 = vmatprep.subr.bf16.mxu0 0
      %815 = vmatpush1.bf16.msra.mxu0 %v812
      %816 = vmatprep.subr.bf16.mxu0 0
      %817 = vmatpush1.bf16.msra.mxu0 0
      %818 = vmatprep.subr.bf16.mxu0 0
      %819 = vmatpush1.bf16.msra.mxu0 0
      %820 = vmatprep.subr.bf16.mxu0 0
      %821 = vmatpush1.bf16.msra.mxu0 0
      %822 = vmatprep.subr.bf16.mxu0 0
      %823 = vmatpush1.bf16.msra.mxu0 0
      %824 = vmatprep.subr.bf16.mxu0 0
      %825 = vmatpush1.bf16.msra.mxu0 0
      %826 = vmatprep.subr.bf16.mxu0 0
      %827 = vmatpush1.bf16.msra.mxu0 0
      %828 = vmatprep.subr.bf16.mxu0 0
      %829 = vmatpush1.bf16.msra.mxu0 0
      %830 = vmatprep.subr.bf16.mxu0 0
      %831 = vmatpush1.bf16.msra.mxu0 0
      %832 = vmatprep.subr.bf16.mxu0 0
      %833 = vmatpush1.bf16.msra.mxu0 0
      %834 = vmatprep.subr.bf16.mxu0 0
      %835 = vmatpush1.bf16.msra.mxu0 0
      %836 = vmatprep.subr.bf16.mxu0 0
      %837 = vmatpush1.bf16.msra.mxu0 0
      %838 = vmatprep.subr.bf16.mxu0 0
      %839 = vmatpush1.bf16.msra.mxu0 0
      %840 = vmatprep.subr.bf16.mxu0 0
      %841 = vmatpush1.bf16.msra.mxu0 0
      %842 = vmatprep.subr.bf16.mxu0 0
      %843 = vmatpush1.bf16.msra.mxu0 0
      %844 = vmatprep.subr.bf16.mxu0 0
      %845 = vmatpush1.bf16.msra.mxu0 0
      %846 = vmatprep.mubr.bf16.mxu0 0
      %847 = vmatmul.mubr.bf16.gmra.mrb[0].mxu0 %v809
      %v848 = vpop.f32.mrb[0].mxu0
      %v849 = vadd.f32 %v803, %v848
      %v850 = vpop.f32.mrb[0].mxu0
      %v851 = vpop.f32.mrb[0].mxu0
      %v852 = vpop.f32.mrb[0].mxu0
      %853 = vdwg.mxu0
      %854 = vrot.lane.b32.xlu0 %v528, 112
      %v855 = vpop.permute.xlu0 %854
      %856 = vrot.lane.b32.xlu0 %v529, 112
      %v857 = vpop.permute.xlu0 %856
      %v859 = vsel %vm530, %v855, 0
      %v862 = vsel %vm530, %v857, 0
      %864 = vmatprep.subr.bf16.mxu0 0
      %865 = vmatpush1.bf16.xpose.msra.mxu0 %v862
      %866 = vmatprep.subr.bf16.mxu0 0
      %867 = vmatpush1.bf16.xpose.msra.mxu0 0
      %868 = vmatprep.subr.bf16.mxu0 0
      %869 = vmatpush1.bf16.xpose.msra.mxu0 0
      %870 = vmatprep.subr.bf16.mxu0 0
      %871 = vmatpush1.bf16.xpose.msra.mxu0 0
      %872 = vmatprep.subr.bf16.mxu0 0
      %873 = vmatpush1.bf16.xpose.msra.mxu0 0
      %874 = vmatprep.subr.bf16.mxu0 0
      %875 = vmatpush1.bf16.xpose.msra.mxu0 0
      %876 = vmatprep.subr.bf16.mxu0 0
      %877 = vmatpush1.bf16.xpose.msra.mxu0 0
      %878 = vmatprep.subr.bf16.mxu0 0
      %879 = vmatpush1.bf16.xpose.msra.mxu0 0
      %880 = vmatprep.subr.bf16.mxu0 0
      %881 = vmatpush1.bf16.xpose.msra.mxu0 0
      %882 = vmatprep.subr.bf16.mxu0 0
      %883 = vmatpush1.bf16.xpose.msra.mxu0 0
      %884 = vmatprep.subr.bf16.mxu0 0
      %885 = vmatpush1.bf16.xpose.msra.mxu0 0
      %886 = vmatprep.subr.bf16.mxu0 0
      %887 = vmatpush1.bf16.xpose.msra.mxu0 0
      %888 = vmatprep.subr.bf16.mxu0 0
      %889 = vmatpush1.bf16.xpose.msra.mxu0 0
      %890 = vmatprep.subr.bf16.mxu0 0
      %891 = vmatpush1.bf16.xpose.msra.mxu0 0
      %892 = vmatprep.subr.bf16.mxu0 0
      %893 = vmatpush1.bf16.xpose.msra.mxu0 0
      %894 = vmatprep.subr.bf16.mxu0 0
      %895 = vmatpush1.bf16.xpose.msra.mxu0 0
      %896 = vmatprep.mubr.bf16.mxu0 0
      %897 = vmatmul.mubr.bf16.gmra.mrb[0].mxu0 %v859
      %v898 = vpop.f32.mrb[0].mxu0
      %v899 = vadd.f32 0.0, %v898
      %v900 = vpop.f32.mrb[0].mxu0
      %v901 = vpop.f32.mrb[0].mxu0
      %v902 = vpop.f32.mrb[0].mxu0
      %903 = vdwg.mxu0
      %v904 = vmul.f32 %v899, 0.35355338
      %v905 = vsel %vm583, %v904, -1e+09
      %v906 = vsel %vm530, %v905, -inf
      %907 = vmax.xlane.f32.xlu0 %v906
      %v908 = vpop.xlane.xlu0 %907
      %v909 = vsub.f32 %v905, %v908
      %v910 = vmul.f32 %v909, 1.442695
      %v911 = vpow.pop %v910
      %v912 = vsel %vm530, %v911, 0.0
      %913 = vadd.xlane.f32.xlu0 %v912
      %v914 = vpop.xlane.xlu0 %913
      %v915 = vrcp.pop %v914
      %v916 = vmul.f32 %v911, %v915
      %v917 = vpack.c.bf16 %v916, %v916
      %918 = vrot.lane.b32.xlu0 %v529, 80
      %v919 = vpop.permute.xlu0 %918
      %v921 = vsel %vm530, %v917, 0
      %v924 = vsel %vm603, %v919, 0
      %926 = vmatprep.subr.bf16.mxu0 0
      %927 = vmatpush1.bf16.msra.mxu0 %v924
      %928 = vmatprep.subr.bf16.mxu0 0
      %929 = vmatpush1.bf16.msra.mxu0 0
      %930 = vmatprep.subr.bf16.mxu0 0
      %931 = vmatpush1.bf16.msra.mxu0 0
      %932 = vmatprep.subr.bf16.mxu0 0
      %933 = vmatpush1.bf16.msra.mxu0 0
      %934 = vmatprep.subr.bf16.mxu0 0
      %935 = vmatpush1.bf16.msra.mxu0 0
      %936 = vmatprep.subr.bf16.mxu0 0
      %937 = vmatpush1.bf16.msra.mxu0 0
      %938 = vmatprep.subr.bf16.mxu0 0
      %939 = vmatpush1.bf16.msra.mxu0 0
      %940 = vmatprep.subr.bf16.mxu0 0
      %941 = vmatpush1.bf16.msra.mxu0 0
      %942 = vmatprep.subr.bf16.mxu0 0
      %943 = vmatpush1.bf16.msra.mxu0 0
      %944 = vmatprep.subr.bf16.mxu0 0
      %945 = vmatpush1.bf16.msra.mxu0 0
      %946 = vmatprep.subr.bf16.mxu0 0
      %947 = vmatpush1.bf16.msra.mxu0 0
      %948 = vmatprep.subr.bf16.mxu0 0
      %949 = vmatpush1.bf16.msra.mxu0 0
      %950 = vmatprep.subr.bf16.mxu0 0
      %951 = vmatpush1.bf16.msra.mxu0 0
      %952 = vmatprep.subr.bf16.mxu0 0
      %953 = vmatpush1.bf16.msra.mxu0 0
      %954 = vmatprep.subr.bf16.mxu0 0
      %955 = vmatpush1.bf16.msra.mxu0 0
      %956 = vmatprep.subr.bf16.mxu0 0
      %957 = vmatpush1.bf16.msra.mxu0 0
      %958 = vmatprep.mubr.bf16.mxu0 0
      %959 = vmatmul.mubr.bf16.gmra.mrb[0].mxu0 %v921
      %v960 = vpop.f32.mrb[0].mxu0
      %v961 = vadd.f32 0.0, %v960
      %v962 = vpop.f32.mrb[0].mxu0
      %v963 = vpop.f32.mrb[0].mxu0
      %v964 = vpop.f32.mrb[0].mxu0
      %965 = vdwg.mxu0
      %v966 = vpack.c.bf16 %v961, %v961
      %v968 = vsel %vm530, %v966, 0
      %v971 = vsel %vm603, %v410, 0
      %973 = vmatprep.subr.bf16.mxu0 0
      %974 = vmatpush1.bf16.msra.mxu0 %v971
      %975 = vmatprep.subr.bf16.mxu0 0
      %976 = vmatpush1.bf16.msra.mxu0 0
      %977 = vmatprep.subr.bf16.mxu0 0
      %978 = vmatpush1.bf16.msra.mxu0 0
      %979 = vmatprep.subr.bf16.mxu0 0
      %980 = vmatpush1.bf16.msra.mxu0 0
      %981 = vmatprep.subr.bf16.mxu0 0
      %982 = vmatpush1.bf16.msra.mxu0 0
      %983 = vmatprep.subr.bf16.mxu0 0
      %984 = vmatpush1.bf16.msra.mxu0 0
      %985 = vmatprep.subr.bf16.mxu0 0
      %986 = vmatpush1.bf16.msra.mxu0 0
      %987 = vmatprep.subr.bf16.mxu0 0
      %988 = vmatpush1.bf16.msra.mxu0 0
      %989 = vmatprep.subr.bf16.mxu0 0
      %990 = vmatpush1.bf16.msra.mxu0 0
      %991 = vmatprep.subr.bf16.mxu0 0
      %992 = vmatpush1.bf16.msra.mxu0 0
      %993 = vmatprep.subr.bf16.mxu0 0
      %994 = vmatpush1.bf16.msra.mxu0 0
      %995 = vmatprep.subr.bf16.mxu0 0
      %996 = vmatpush1.bf16.msra.mxu0 0
      %997 = vmatprep.subr.bf16.mxu0 0
      %998 = vmatpush1.bf16.msra.mxu0 0
      %999 = vmatprep.subr.bf16.mxu0 0
      %1000 = vmatpush1.bf16.msra.mxu0 0
      %1001 = vmatprep.subr.bf16.mxu0 0
      %1002 = vmatpush1.bf16.msra.mxu0 0
      %1003 = vmatprep.subr.bf16.mxu0 0
      %1004 = vmatpush1.bf16.msra.mxu0 0
      %1005 = vmatprep.mubr.bf16.mxu0 0
      %1006 = vmatmul.mubr.bf16.gmra.mrb[0].mxu0 %v968
      %v1007 = vpop.f32.mrb[0].mxu0
      %v1008 = vadd.f32 0.0, %v1007
      %v1009 = vpop.f32.mrb[0].mxu0
      %v1010 = vpop.f32.mrb[0].mxu0
      %v1011 = vpop.f32.mrb[0].mxu0
      %1012 = vdwg.mxu0
      %v1013 = vadd.f32 %v849, %v1008
      %1014 = vrot.lane.b32.xlu0 %v528, 104
      %v1015 = vpop.permute.xlu0 %1014
      %1016 = vrot.lane.b32.xlu0 %v529, 104
      %v1017 = vpop.permute.xlu0 %1016
      %v1019 = vsel %vm530, %v1015, 0
      %v1022 = vsel %vm530, %v1017, 0
      %1024 = vmatprep.subr.bf16.mxu0 0
      %1025 = vmatpush1.bf16.xpose.msra.mxu0 %v1022
      %1026 = vmatprep.subr.bf16.mxu0 0
      %1027 = vmatpush1.bf16.xpose.msra.mxu0 0
      %1028 = vmatprep.subr.bf16.mxu0 0
      %1029 = vmatpush1.bf16.xpose.msra.mxu0 0
      %1030 = vmatprep.subr.bf16.mxu0 0
      %1031 = vmatpush1.bf16.xpose.msra.mxu0 0
      %1032 = vmatprep.subr.bf16.mxu0 0
      %1033 = vmatpush1.bf16.xpose.msra.mxu0 0
      %1034 = vmatprep.subr.bf16.mxu0 0
      %1035 = vmatpush1.bf16.xpose.msra.mxu0 0
      %1036 = vmatprep.subr.bf16.mxu0 0
      %1037 = vmatpush1.bf16.xpose.msra.mxu0 0
      %1038 = vmatprep.subr.bf16.mxu0 0
      %1039 = vmatpush1.bf16.xpose.msra.mxu0 0
      %1040 = vmatprep.subr.bf16.mxu0 0
      %1041 = vmatpush1.bf16.xpose.msra.mxu0 0
      %1042 = vmatprep.subr.bf16.mxu0 0
      %1043 = vmatpush1.bf16.xpose.msra.mxu0 0
      %1044 = vmatprep.subr.bf16.mxu0 0
      %1045 = vmatpush1.bf16.xpose.msra.mxu0 0
      %1046 = vmatprep.subr.bf16.mxu0 0
      %1047 = vmatpush1.bf16.xpose.msra.mxu0 0
      %1048 = vmatprep.subr.bf16.mxu0 0
      %1049 = vmatpush1.bf16.xpose.msra.mxu0 0
      %1050 = vmatprep.subr.bf16.mxu0 0
      %1051 = vmatpush1.bf16.xpose.msra.mxu0 0
      %1052 = vmatprep.subr.bf16.mxu0 0
      %1053 = vmatpush1.bf16.xpose.msra.mxu0 0
      %1054 = vmatprep.subr.bf16.mxu0 0
      %1055 = vmatpush1.bf16.xpose.msra.mxu0 0
      %1056 = vmatprep.mubr.bf16.mxu0 0
      %1057 = vmatmul.mubr.bf16.gmra.mrb[0].mxu0 %v1019
      %v1058 = vpop.f32.mrb[0].mxu0
      %v1059 = vadd.f32 0.0, %v1058
      %v1060 = vpop.f32.mrb[0].mxu0
      %v1061 = vpop.f32.mrb[0].mxu0
      %v1062 = vpop.f32.mrb[0].mxu0
      %1063 = vdwg.mxu0
      %v1064 = vmul.f32 %v1059, 0.35355338
      %v1065 = vsel %vm583, %v1064, -1e+09
      %v1066 = vsel %vm530, %v1065, -inf
      %1067 = vmax.xlane.f32.xlu0 %v1066
      %v1068 = vpop.xlane.xlu0 %1067
      %v1069 = vsub.f32 %v1065, %v1068
      %v1070 = vmul.f32 %v1069, 1.442695
      %v1071 = vpow.pop %v1070
      %v1072 = vsel %vm530, %v1071, 0.0
      %1073 = vadd.xlane.f32.xlu0 %v1072
      %v1074 = vpop.xlane.xlu0 %1073
      %v1075 = vrcp.pop %v1074
      %v1076 = vmul.f32 %v1071, %v1075
      %v1077 = vpack.c.bf16 %v1076, %v1076
      %1078 = vrot.lane.b32.xlu0 %v529, 72
      %v1079 = vpop.permute.xlu0 %1078
      %v1081 = vsel %vm530, %v1077, 0
      %v1084 = vsel %vm603, %v1079, 0
      %1086 = vmatprep.subr.bf16.mxu0 0
      %1087 = vmatpush1.bf16.msra.mxu0 %v1084
      %1088 = vmatprep.subr.bf16.mxu0 0
      %1089 = vmatpush1.bf16.msra.mxu0 0
      %1090 = vmatprep.subr.bf16.mxu0 0
      %1091 = vmatpush1.bf16.msra.mxu0 0
      %1092 = vmatprep.subr.bf16.mxu0 0
      %1093 = vmatpush1.bf16.msra.mxu0 0
      %1094 = vmatprep.subr.bf16.mxu0 0
      %1095 = vmatpush1.bf16.msra.mxu0 0
      %1096 = vmatprep.subr.bf16.mxu0 0
      %1097 = vmatpush1.bf16.msra.mxu0 0
      %1098 = vmatprep.subr.bf16.mxu0 0
      %1099 = vmatpush1.bf16.msra.mxu0 0
      %1100 = vmatprep.subr.bf16.mxu0 0
      %1101 = vmatpush1.bf16.msra.mxu0 0
      %1102 = vmatprep.subr.bf16.mxu0 0
      %1103 = vmatpush1.bf16.msra.mxu0 0
      %1104 = vmatprep.subr.bf16.mxu0 0
      %1105 = vmatpush1.bf16.msra.mxu0 0
      %1106 = vmatprep.subr.bf16.mxu0 0
      %1107 = vmatpush1.bf16.msra.mxu0 0
      %1108 = vmatprep.subr.bf16.mxu0 0
      %1109 = vmatpush1.bf16.msra.mxu0 0
      %1110 = vmatprep.subr.bf16.mxu0 0
      %1111 = vmatpush1.bf16.msra.mxu0 0
      %1112 = vmatprep.subr.bf16.mxu0 0
      %1113 = vmatpush1.bf16.msra.mxu0 0
      %1114 = vmatprep.subr.bf16.mxu0 0
      %1115 = vmatpush1.bf16.msra.mxu0 0
      %1116 = vmatprep.subr.bf16.mxu0 0
      %1117 = vmatpush1.bf16.msra.mxu0 0
      %1118 = vmatprep.mubr.bf16.mxu0 0
      %1119 = vmatmul.mubr.bf16.gmra.mrb[0].mxu0 %v1081
      %v1120 = vpop.f32.mrb[0].mxu0
      %v1121 = vadd.f32 0.0, %v1120
      %v1122 = vpop.f32.mrb[0].mxu0
      %v1123 = vpop.f32.mrb[0].mxu0
      %v1124 = vpop.f32.mrb[0].mxu0
      %1125 = vdwg.mxu0
      %v1126 = vpack.c.bf16 %v1121, %v1121
      %v1128 = vsel %vm530, %v1126, 0
      %v1131 = vsel %vm603, %v411, 0
      %1133 = vmatprep.subr.bf16.mxu0 0
      %1134 = vmatpush1.bf16.msra.mxu0 %v1131
      %1135 = vmatprep.subr.bf16.mxu0 0
      %1136 = vmatpush1.bf16.msra.mxu0 0
      %1137 = vmatprep.subr.bf16.mxu0 0
      %1138 = vmatpush1.bf16.msra.mxu0 0
      %1139 = vmatprep.subr.bf16.mxu0 0
      %1140 = vmatpush1.bf16.msra.mxu0 0
      %1141 = vmatprep.subr.bf16.mxu0 0
      %1142 = vmatpush1.bf16.msra.mxu0 0
      %1143 = vmatprep.subr.bf16.mxu0 0
      %1144 = vmatpush1.bf16.msra.mxu0 0
      %1145 = vmatprep.subr.bf16.mxu0 0
      %1146 = vmatpush1.bf16.msra.mxu0 0
      %1147 = vmatprep.subr.bf16.mxu0 0
      %1148 = vmatpush1.bf16.msra.mxu0 0
      %1149 = vmatprep.subr.bf16.mxu0 0
      %1150 = vmatpush1.bf16.msra.mxu0 0
      %1151 = vmatprep.subr.bf16.mxu0 0
      %1152 = vmatpush1.bf16.msra.mxu0 0
      %1153 = vmatprep.subr.bf16.mxu0 0
      %1154 = vmatpush1.bf16.msra.mxu0 0
      %1155 = vmatprep.subr.bf16.mxu0 0
      %1156 = vmatpush1.bf16.msra.mxu0 0
      %1157 = vmatprep.subr.bf16.mxu0 0
      %1158 = vmatpush1.bf16.msra.mxu0 0
      %1159 = vmatprep.subr.bf16.mxu0 0
      %1160 = vmatpush1.bf16.msra.mxu0 0
      %1161 = vmatprep.subr.bf16.mxu0 0
      %1162 = vmatpush1.bf16.msra.mxu0 0
      %1163 = vmatprep.subr.bf16.mxu0 0
      %1164 = vmatpush1.bf16.msra.mxu0 0
      %1165 = vmatprep.mubr.bf16.mxu0 0
      %1166 = vmatmul.mubr.bf16.gmra.mrb[0].mxu0 %v1128
      %v1167 = vpop.f32.mrb[0].mxu0
      %v1168 = vadd.f32 0.0, %v1167
      %v1169 = vpop.f32.mrb[0].mxu0
      %v1170 = vpop.f32.mrb[0].mxu0
      %v1171 = vpop.f32.mrb[0].mxu0
      %1172 = vdwg.mxu0
      %v1173 = vadd.f32 %v1013, %v1168
      %v1175 = vlaneseq
      %v1176 = vshrl.u32 %v1175, 7
      %v1177 = vsub.s32 0, %v1176
      %v1178 = vrot.slane %v412, %v1177
      %v1180 = vadd.f32 %v1173, %v1178
      %v1181 = vadd.f32 %v360, %v1180
      %1182 = vst.msk [vmem:[%s358] sm:$0xff] %vm364, %v1181
      %p1183 = scmp.lt.s32.totalorder %s20, 1
      %s1184 = scalar_select %p1183, %s20, 1
      %s1185 = smul.addr %s1184, 8
      %s1186 = scalar_lea.vmem %s9, %s1185
      // Predicated region
      $region57: #{transformer_forward.18} parent=55 // pred_check
        %p1187 = pneg %p242
      $region58: #{transformer_forward.18} parent=55 // pred_check_branch
        %1189 = sbr.rel (%p1187) target = $region60
      $region59: #{transformer_forward.18} parent=55 // pred_region
        _
      $region60: #{transformer_forward.18} parent=55 // pred_fallthru
        _
    $region56: #{transformer_forward.18} parent=5 // pred_fallthru
      _
    %p1190 = scmp.le.s32.totalorder 2, %s15
    // Predicated region
    $region61: #{transformer_forward.18} parent=5 // pred_check
      %p1191 = pneg %p1190
    $region62: #{transformer_forward.18} parent=5 // pred_check_branch
      %1193 = sbr.rel (%p1191) target = $region64
    $region63: #{transformer_forward.18} parent=5 // pred_region
      %s1194 = ssub.s32 %s15, 2
      // Predicated region
      $region65: #{transformer_forward.18} parent=63 // pred_check
        %p1195 = pneg %p248
      $region66: #{transformer_forward.18} parent=63 // pred_check_branch
        %1197 = sbr.rel (%p1195) target = $region68
      $region67: #{transformer_forward.18} parent=63 // pred_region
        %p1198 = scmp.lt.s32.totalorder %s21, 1
        %s1199 = scalar_select %p1198, %s21, 1
        %s1200 = smul.addr %s1199, 8
        %s1201 = scalar_lea.vmem %s9, %s1200
      $region68: #{transformer_forward.18} parent=63 // pred_fallthru
        _
    $region64: #{transformer_forward.18} parent=5 // pred_fallthru
      _
  $region6: #{transformer_forward.18} parent=0 // loop_footer
    %s19 = sadd.s32 1, %s15
  $region7: #{transformer_forward.18} parent=0 // loop_footer_branch
    %14 = sbr.rel target = $region3
  $region8: #{transformer_forward.18} parent=0 // loop_exit
    _

</llo_original>
